<compile_context>
chip_gen: v6e
topology: v6e:2x2x1
jax: 0.10.0
libtpu: 0.0.40
codegen_flags: <defaults>
</compile_context>

<pallas_src>
import jax
import jax.numpy as jnp
from jax.experimental import pallas as pl
from jax.experimental.pallas import tpu as pltpu


# -----------------------------------------------------------------------------
# Pallas kernel: all BG graphs in one step.
# -----------------------------------------------------------------------------
def _tokenizer_kernel(x_ref, eemb_ref, gat_ref, sca_ref,
                      w1T_ref, b1_ref, w2T_ref, b2_ref,
                      o_ref):
    G = o_ref.shape[0]                 # number of graphs (BG)
    GN = x_ref.shape[0]                # BG * N
    N = GN // G                        # nodes per graph
    H = w1T_ref.shape[1]

    x = x_ref[...]                                                        # (G*N, C) f32

    # Gather source-node features: one block-diagonal (G*E, G*N) @ (G*N, C)
    # matmul. gat holds exact 0/1 values in bf16; promotion to f32 at the dot
    # is exact.
    x_src = jnp.dot(gat_ref[...], x,
                    preferred_element_type=jnp.float32)                   # (G*E, C)
    msg = jnp.maximum(x_src + eemb_ref[...], 0.0)                         # (G*E, C)

    # Scatter-sum messages to destination nodes: one (G*N, G*E) @ (G*E, C)
    # block-diagonal matmul.
    agg = jnp.dot(sca_ref[...], msg,
                  preferred_element_type=jnp.float32)                     # (G*N, C)

    # GINE update (eps = 0), then Linear1 over all G*N nodes at once.
    h = x + agg                                                           # (G*N, C)
    h1 = jnp.maximum(
        jnp.dot(h, w1T_ref[...], preferred_element_type=jnp.float32)
        + b1_ref[...],
        0.0)                                                              # (G*N, H)

    # global_mean_pool over nodes BEFORE Linear2 (exact: Linear2 is affine,
    # mean is linear). N is a multiple of the 8-sublane tile, so the reshape
    # is layout-free and the mean is an XLU sublane reduction (no MXU work).
    # TODO(synk): if real graphs pad/vary node counts, replace the fixed 1/N
    # mean with a per-graph valid-node-count reduction.
    pooled = jnp.mean(h1.reshape(G, N, H), axis=1)                        # (G, H)

    # Linear2 applied to the pooled tokens only: (G, H) @ (H, D), lane-dense D.
    o_ref[...] = (jnp.dot(pooled, w2T_ref[...],
                          preferred_element_type=jnp.float32)
                  + b2_ref[...])                                          # (G, D)


def connectome_tokenizer(x, edge_attr, src, dst, params, batch_size, num_bands):
    """
    x:         (BG, N, C)  node features, f32 (BG = batch_size * num_bands)
    edge_attr: (BG, E, 1)  scalar edge attributes, f32
    src, dst:  (BG, E)     int32 edge endpoints (edge_index[0], edge_index[1])
    params:    dict of weights (transposed for right-multiplication)
    returns:   (batch_size, num_bands, out_dim)
    """
    BG, N, C = x.shape
    E = edge_attr.shape[1]
    H = params["w1T"].shape[1]
    D = params["w2T"].shape[1]

    # Edge embedding Linear(1 -> C) precomputed outside the kernel (rank-1
    # affine map of a scalar; XLA fuses it trivially), shipped lane-dense.
    edge_emb = (edge_attr * params["lin_wT"] + params["lin_b"]).reshape(BG * E, C)

    # Block-diagonal one-hot operands (built once with plain jnp ops): gather
    # and scatter become ONE matmul each. bf16 is exact for 0/1 and halves DMA.
    # TODO(synk): if real connectomes grow to hundreds of nodes / thousands of
    # edges, add an edge-chunk grid axis (accumulate agg in VMEM scratch with
    # pl.when init/finalize) instead of letting these O(E*N) operands blow
    # past v7x's 64 MiB VMEM.
    g_off = jnp.arange(BG, dtype=src.dtype)[:, None] * N                  # (BG, 1)
    gat = jax.nn.one_hot((g_off + src).reshape(BG * E), BG * N,
                         dtype=jnp.bfloat16)                              # (BG*E, BG*N)
    sca = jax.nn.one_hot((g_off + dst).reshape(BG * E), BG * N,
                         dtype=jnp.bfloat16).T                            # (BG*N, BG*E)

    x_flat = x.reshape(BG * N, C)

    def full(shape):
        # Whole-array block, constant index_map -> VMEM-resident, no tiling.
        return pl.BlockSpec(shape, lambda i, _s=len(shape): (0,) * _s)

    # Advisory cost so XLA treats this as a tiny kernel and overlaps neighbors.
    flops = 2 * ((BG * E) * (BG * N) * C        # gather matmul
                 + (BG * N) * (BG * E) * C      # scatter matmul
                 + (BG * N) * C * H             # Linear1
                 + BG * H * D)                  # Linear2 (pooled)
    bytes_accessed = (x_flat.size * 4 + edge_emb.size * 4
                      + gat.size * 2 + sca.size * 2
                      + (C * H + H + H * D + D) * 4
                      + BG * D * 4)

    # Single grid step: workload is latency/overhead-bound; splitting it only
    # helps if it actually engages a 2nd TensorCore (v7x), which at ~2 MFLOP
    # it does not pay for. TODO(synk): revisit a 2-way "parallel" split on v7x
    # if the real problem size grows enough to be compute-bound.
    out = pl.pallas_call(
        _tokenizer_kernel,
        out_shape=jax.ShapeDtypeStruct((BG, D), jnp.float32),
        grid_spec=pltpu.PrefetchScalarGridSpec(
            num_scalar_prefetch=0,
            grid=(1,),
            in_specs=[
                full((BG * N, C)),       # x (flattened)
                full((BG * E, C)),       # edge_emb (precomputed)
                full((BG * E, BG * N)),  # gather one-hot, block-diag, bf16
                full((BG * N, BG * E)),  # scatter one-hot, block-diag, bf16
                full((C, H)),            # w1T
                full((1, H)),            # b1
                full((H, D)),            # w2T
                full((1, D)),            # b2
            ],
            out_specs=full((BG, D)),
        ),
        compiler_params=pltpu.CompilerParams(
            dimension_semantics=("arbitrary",)),
        cost_estimate=pl.CostEstimate(flops=flops, transcendentals=0,
                                      bytes_accessed=bytes_accessed),
    )(x_flat, edge_emb, gat, sca,
      params["w1T"], params["b1"], params["w2T"], params["b2"])

    # Flat-graph order is (sample-major, band-minor), matching the module's
    # [B, 9, out_dim] stacking.
    return out.reshape(batch_size, num_bands, D)


# -----------------------------------------------------------------------------
# Pure-JAX reference implementing the original module order (per-node Linear2,
# then mean pool) with explicit gather / segment-sum, for a correctness check.
# -----------------------------------------------------------------------------
def reference(x, edge_attr, src, dst, params, B, bands):
    BG, N, C = x.shape
    edge_emb = edge_attr * params["lin_wT"] + params["lin_b"]          # (BG,E,C)
    x_src = jax.vmap(lambda xi, si: xi[si])(x, src)                    # (BG,E,C)
    msg = jax.nn.relu(x_src + edge_emb)
    agg = jax.vmap(lambda d, m: jax.ops.segment_sum(m, d, num_segments=N))(dst, msg)
    h = x + agg                                                        # eps = 0
    h1 = jax.nn.relu(h @ params["w1T"] + params["b1"])
    out = h1 @ params["w2T"] + params["b2"]                            # (BG,N,D)
    tok = out.mean(axis=1)                                             # (BG,D)
    return tok.reshape(B, bands, -1)


if __name__ == "__main__":
    # Small, deterministic synthetic problem consistent with the module defaults.
    B, BANDS = 2, 9
    N, E = 16, 32                    # nodes / edges per graph (fixed, synthetic)
    C, H, D = 32, 64, 128            # in_channels, hidden_dim, out_dim
    BG = B * BANDS

    key = jax.random.PRNGKey(0)
    k = jax.random.split(key, 10)

    # Graph data (stands in for the list of PyG graphs).
    x = jax.random.normal(k[0], (BG, N, C), dtype=jnp.float32)
    edge_attr = jax.random.normal(k[1], (BG, E, 1), dtype=jnp.float32)
    src = jax.random.randint(k[2], (BG, E), 0, N)
    dst = jax.random.randint(k[3], (BG, E), 0, N)

    # Deterministic parameter init (GINEConv edge lin + nn1 = Lin->ReLU->Lin),
    # weights stored transposed for right-multiplication.
    params = {
        "lin_wT": 0.1 * jax.random.normal(k[4], (1, C), dtype=jnp.float32),  # Linear(1, C).W^T
        "lin_b":  0.1 * jax.random.normal(k[5], (1, C), dtype=jnp.float32),
        "w1T":    0.1 * jax.random.normal(k[6], (C, H), dtype=jnp.float32),  # Linear(C, H).W^T
        "b1":     0.1 * jax.random.normal(k[7], (1, H), dtype=jnp.float32),
        "w2T":    0.1 * jax.random.normal(k[8], (H, D), dtype=jnp.float32),  # Linear(H, D).W^T
        "b2":     0.1 * jax.random.normal(k[9], (1, D), dtype=jnp.float32),
    }

    tokens = connectome_tokenizer(x, edge_attr, src, dst, params, B, BANDS)
    tokens = jax.block_until_ready(tokens)
    assert tokens.shape == (B, BANDS, D)

    ref = reference(x, edge_attr, src, dst, params, B, BANDS)
    assert jnp.allclose(tokens, ref, atol=1e-4, rtol=1e-4), "mismatch vs reference"

    print("KERNEL_OK")
</pallas_src>

<mosaic_0001>
module attributes {stable_mosaic.version = 11 : i64} {
  func.func @_tokenizer_kernel(%arg0: i32, %arg1: memref<288x32xf32, #tpu.memory_space<vmem>>, %arg2: memref<576x32xf32, #tpu.memory_space<vmem>>, %arg3: memref<576x288xbf16, #tpu.memory_space<vmem>>, %arg4: memref<288x576xbf16, #tpu.memory_space<vmem>>, %arg5: memref<32x64xf32, #tpu.memory_space<vmem>>, %arg6: memref<1x64xf32, #tpu.memory_space<vmem>>, %arg7: memref<64x128xf32, #tpu.memory_space<vmem>>, %arg8: memref<1x128xf32, #tpu.memory_space<vmem>>, %arg9: memref<18x128xf32, #tpu.memory_space<vmem>>) attributes {dimension_semantics = [#tpu.dimension_semantics<arbitrary>], iteration_bounds = array<i64: 1>, scalar_prefetch = 0 : i64, scratch_operands = 0 : i64, tpu.core_type = #tpu.core_type<tc>, window_params = [{pipeline_mode = #tpu.pipeline_mode<synchronous>, transform_indices = @transform_0, window_bounds = array<i64: 288, 32>}, {pipeline_mode = #tpu.pipeline_mode<synchronous>, transform_indices = @transform_1, window_bounds = array<i64: 576, 32>}, {pipeline_mode = #tpu.pipeline_mode<synchronous>, transform_indices = @transform_2, window_bounds = array<i64: 576, 288>}, {pipeline_mode = #tpu.pipeline_mode<synchronous>, transform_indices = @transform_3, window_bounds = array<i64: 288, 576>}, {pipeline_mode = #tpu.pipeline_mode<synchronous>, transform_indices = @transform_4, window_bounds = array<i64: 32, 64>}, {pipeline_mode = #tpu.pipeline_mode<synchronous>, transform_indices = @transform_5, window_bounds = array<i64: 1, 64>}, {pipeline_mode = #tpu.pipeline_mode<synchronous>, transform_indices = @transform_6, window_bounds = array<i64: 64, 128>}, {pipeline_mode = #tpu.pipeline_mode<synchronous>, transform_indices = @transform_7, window_bounds = array<i64: 1, 128>}, {pipeline_mode = #tpu.pipeline_mode<synchronous>, transform_indices = @transform_8, window_bounds = array<i64: 18, 128>}]} {
    %c0 = arith.constant 0 : index
    %c0_0 = arith.constant 0 : index
    %0 = vector.load %arg1[%c0, %c0_0] : memref<288x32xf32, #tpu.memory_space<vmem>>, vector<288x32xf32>
    %c0_1 = arith.constant 0 : index
    %c0_2 = arith.constant 0 : index
    %1 = vector.load %arg3[%c0_1, %c0_2] : memref<576x288xbf16, #tpu.memory_space<vmem>>, vector<576x288xbf16>
    %cst = arith.constant dense<0.000000e+00> : vector<576x32xf32>
    %2 = tpu.matmul %1, %0, %cst {dimension_numbers = #tpu.dot_dimension_numbers<[1], [0], [0], [1], [0, 0, 1, 1], [], []>} : vector<576x288xbf16>, vector<288x32xf32>, vector<576x32xf32> -> vector<576x32xf32>
    %c0_3 = arith.constant 0 : index
    %c0_4 = arith.constant 0 : index
    %3 = vector.load %arg2[%c0_3, %c0_4] : memref<576x32xf32, #tpu.memory_space<vmem>>, vector<576x32xf32>
    %4 = arith.addf %2, %3 : vector<576x32xf32>
    %cst_5 = arith.constant 0.000000e+00 : f32
    %5 = vector.broadcast %cst_5 : f32 to vector<576x32xf32>
    %6 = arith.maximumf %4, %5 : vector<576x32xf32>
    %c0_6 = arith.constant 0 : index
    %c0_7 = arith.constant 0 : index
    %7 = vector.load %arg4[%c0_6, %c0_7] : memref<288x576xbf16, #tpu.memory_space<vmem>>, vector<288x576xbf16>
    %cst_8 = arith.constant dense<0.000000e+00> : vector<288x32xf32>
    %8 = tpu.matmul %7, %6, %cst_8 {dimension_numbers = #tpu.dot_dimension_numbers<[1], [0], [0], [1], [0, 0, 1, 1], [], []>} : vector<288x576xbf16>, vector<576x32xf32>, vector<288x32xf32> -> vector<288x32xf32>
    %9 = arith.addf %0, %8 : vector<288x32xf32>
    %c0_9 = arith.constant 0 : index
    %c0_10 = arith.constant 0 : index
    %10 = vector.load %arg5[%c0_9, %c0_10] : memref<32x64xf32, #tpu.memory_space<vmem>>, vector<32x64xf32>
    %cst_11 = arith.constant dense<0.000000e+00> : vector<288x64xf32>
    %11 = tpu.matmul %9, %10, %cst_11 {dimension_numbers = #tpu.dot_dimension_numbers<[1], [0], [0], [1], [0, 0, 1, 1], [], []>} : vector<288x32xf32>, vector<32x64xf32>, vector<288x64xf32> -> vector<288x64xf32>
    %c0_12 = arith.constant 0 : index
    %c0_13 = arith.constant 0 : index
    %12 = vector.load %arg6[%c0_12, %c0_13] : memref<1x64xf32, #tpu.memory_space<vmem>>, vector<1x64xf32>
    %13 = vector.broadcast %12 : vector<1x64xf32> to vector<288x64xf32>
    %14 = arith.addf %11, %13 : vector<288x64xf32>
    %cst_14 = arith.constant 0.000000e+00 : f32
    %15 = vector.broadcast %cst_14 : f32 to vector<288x64xf32>
    %16 = arith.maximumf %14, %15 : vector<288x64xf32>
    %17 = vector.shape_cast %16 : vector<288x64xf32> to vector<18x16x64xf32>
    %cst_15 = arith.constant dense<0.000000e+00> : vector<18x64xf32>
    %18 = vector.multi_reduction <add>, %17, %cst_15 [1] : vector<18x16x64xf32> to vector<18x64xf32>
    %cst_16 = arith.constant 1.600000e+01 : f32
    %19 = vector.broadcast %cst_16 : f32 to vector<18x64xf32>
    %20 = arith.divf %18, %19 : vector<18x64xf32>
    %c0_17 = arith.constant 0 : index
    %c0_18 = arith.constant 0 : index
    %21 = vector.load %arg7[%c0_17, %c0_18] : memref<64x128xf32, #tpu.memory_space<vmem>>, vector<64x128xf32>
    %cst_19 = arith.constant dense<0.000000e+00> : vector<18x128xf32>
    %22 = tpu.matmul %20, %21, %cst_19 {dimension_numbers = #tpu.dot_dimension_numbers<[1], [0], [0], [1], [0, 0, 1, 1], [], []>} : vector<18x64xf32>, vector<64x128xf32>, vector<18x128xf32> -> vector<18x128xf32>
    %c0_20 = arith.constant 0 : index
    %c0_21 = arith.constant 0 : index
    %23 = vector.load %arg8[%c0_20, %c0_21] : memref<1x128xf32, #tpu.memory_space<vmem>>, vector<1x128xf32>
    %24 = vector.broadcast %23 : vector<1x128xf32> to vector<18x128xf32>
    %25 = arith.addf %22, %24 : vector<18x128xf32>
    %c0_22 = arith.constant 0 : index
    %c0_23 = arith.constant 0 : index
    %26 = vector.load %arg9[%c0_22, %c0_23] : memref<18x128xf32, #tpu.memory_space<vmem>>, vector<18x128xf32>
    tpu.vector_store %arg9[%c0_22, %c0_23], %25 {strides = array<i32>} : memref<18x128xf32, #tpu.memory_space<vmem>>, vector<18x128xf32>,
    return
  }
  func.func @transform_0(%arg0: i32) -> (i32, i32) {
    %c0_i32 = arith.constant 0 : i32
    %c0_i32_0 = arith.constant 0 : i32
    %c0_i32_1 = arith.constant 0 : i32
    return %c0_i32, %c0_i32_0 : i32, i32
  }
  func.func @transform_1(%arg0: i32) -> (i32, i32) {
    %c0_i32 = arith.constant 0 : i32
    %c0_i32_0 = arith.constant 0 : i32
    %c0_i32_1 = arith.constant 0 : i32
    return %c0_i32, %c0_i32_0 : i32, i32
  }
  func.func @transform_2(%arg0: i32) -> (i32, i32) {
    %c0_i32 = arith.constant 0 : i32
    %c0_i32_0 = arith.constant 0 : i32
    %c0_i32_1 = arith.constant 0 : i32
    return %c0_i32, %c0_i32_0 : i32, i32
  }
  func.func @transform_3(%arg0: i32) -> (i32, i32) {
    %c0_i32 = arith.constant 0 : i32
    %c0_i32_0 = arith.constant 0 : i32
    %c0_i32_1 = arith.constant 0 : i32
    return %c0_i32, %c0_i32_0 : i32, i32
  }
  func.func @transform_4(%arg0: i32) -> (i32, i32) {
    %c0_i32 = arith.constant 0 : i32
    %c0_i32_0 = arith.constant 0 : i32
    %c0_i32_1 = arith.constant 0 : i32
    return %c0_i32, %c0_i32_0 : i32, i32
  }
  func.func @transform_5(%arg0: i32) -> (i32, i32) {
    %c0_i32 = arith.constant 0 : i32
    %c0_i32_0 = arith.constant 0 : i32
    %c0_i32_1 = arith.constant 0 : i32
    return %c0_i32, %c0_i32_0 : i32, i32
  }
  func.func @transform_6(%arg0: i32) -> (i32, i32) {
    %c0_i32 = arith.constant 0 : i32
    %c0_i32_0 = arith.constant 0 : i32
    %c0_i32_1 = arith.constant 0 : i32
    return %c0_i32, %c0_i32_0 : i32, i32
  }
  func.func @transform_7(%arg0: i32) -> (i32, i32) {
    %c0_i32 = arith.constant 0 : i32
    %c0_i32_0 = arith.constant 0 : i32
    %c0_i32_1 = arith.constant 0 : i32
    return %c0_i32, %c0_i32_0 : i32, i32
  }
  func.func @transform_8(%arg0: i32) -> (i32, i32) {
    %c0_i32 = arith.constant 0 : i32
    %c0_i32_0 = arith.constant 0 : i32
    %c0_i32_1 = arith.constant 0 : i32
    return %c0_i32, %c0_i32_0 : i32, i32
  }
}

</mosaic_0001>

<llo_original>
// kernel: tpu_custom_call.1
$region0: #{tpu_custom_call.1}
  #allocation0 [shape = 'u32[]', space=smem, size = 0x4, offset = 0x4, fixed_abs, tag = 'smem constant byte address 0x4 - core index']
  #allocation1 [shape = 'u32[144,128]{1,0:T(1,128)}', space=vmem, size = 0x12000, scoped, tag = 'internal scratch']
  %s0 = inlined_call_operand.vmem [shape: f32[288,32], index: 0, kind: input, shape index: {}]
  %s1 = inlined_call_operand.vmem [shape: f32[576,32], index: 1, kind: input, shape index: {}]
  %s2 = inlined_call_operand.vmem [shape: bf16[576,288], index: 2, kind: input, shape index: {}]
  %s3 = inlined_call_operand.vmem [shape: bf16[288,576], index: 3, kind: input, shape index: {}]
  %s4 = inlined_call_operand.vmem [shape: f32[32,64], index: 4, kind: input, shape index: {}]
  %s5 = inlined_call_operand.vmem [shape: f32[1,64], index: 5, kind: input, shape index: {}]
  %s6 = inlined_call_operand.vmem [shape: f32[64,128], index: 6, kind: input, shape index: {}]
  %s7 = inlined_call_operand.vmem [shape: f32[1,128], index: 7, kind: input, shape index: {}]
  %s8 = inlined_call_operand.hbm [shape: f32[18,128], index: 8, kind: output, shape index: {}]
  %s9 = sld [smem:[#allocation0]]
  $region42: #{tpu_custom_call.1} parent=0
    _
  %s11 = ssub.s32 1, %s9
  %s12 = scalar_select 0, %s11, %s9
  $region1: #{tpu_custom_call.1} parent=0
    #allocation2 [shape = 'u8[12288]{0}', space=vmem, size = 0x3000, scoped, tag = 'output window, operand 0, single buffered']
    #allocation3 [shape = 's32[1]{0}', space=sflag, size = 0x4, scoped, tag = 'scoped memory for tpu_custom_call.1']
    %13 = vsyncpa [#allocation3], 0
    // Predicated region
    $region2: #{tpu_custom_call.1} parent=1 // pred_check
      _
    $region3: #{tpu_custom_call.1} parent=1 // pred_check_branch
      %15 = sbr.rel (0) target = $region5
    $region4: #{tpu_custom_call.1} parent=1 // pred_region
      _
    $region5: #{tpu_custom_call.1} parent=1 // pred_fallthru
      _
    // Predicated region
    $region6: #{tpu_custom_call.1} parent=1 // pred_check
      _
    $region7: #{tpu_custom_call.1} parent=1 // pred_check_branch
      %17 = sbr.rel (0) target = $region9
    $region8: #{tpu_custom_call.1} parent=1 // pred_region
      _
    $region9: #{tpu_custom_call.1} parent=1 // pred_fallthru
      _
    // Predicated region
    $region10: #{tpu_custom_call.1} parent=1 // pred_check
      _
    $region11: #{tpu_custom_call.1} parent=1 // pred_check_branch
      %19 = sbr.rel (0) target = $region13
    $region12: #{tpu_custom_call.1} parent=1 // pred_region
      _
    $region13: #{tpu_custom_call.1} parent=1 // pred_fallthru
      _
    // Predicated region
    $region14: #{tpu_custom_call.1} parent=1 // pred_check
      _
    $region15: #{tpu_custom_call.1} parent=1 // pred_check_branch
      %21 = sbr.rel (0) target = $region17
    $region16: #{tpu_custom_call.1} parent=1 // pred_region
      _
    $region17: #{tpu_custom_call.1} parent=1 // pred_fallthru
      _
    // Predicated region
    $region18: #{tpu_custom_call.1} parent=1 // pred_check
      _
    $region19: #{tpu_custom_call.1} parent=1 // pred_check_branch
      %23 = sbr.rel (0) target = $region21
    $region20: #{tpu_custom_call.1} parent=1 // pred_region
      _
    $region21: #{tpu_custom_call.1} parent=1 // pred_fallthru
      _
    // Predicated region
    $region22: #{tpu_custom_call.1} parent=1 // pred_check
      _
    $region23: #{tpu_custom_call.1} parent=1 // pred_check_branch
      %25 = sbr.rel (0) target = $region25
    $region24: #{tpu_custom_call.1} parent=1 // pred_region
      _
    $region25: #{tpu_custom_call.1} parent=1 // pred_fallthru
      _
    // Predicated region
    $region26: #{tpu_custom_call.1} parent=1 // pred_check
      _
    $region27: #{tpu_custom_call.1} parent=1 // pred_check_branch
      %27 = sbr.rel (0) target = $region29
    $region28: #{tpu_custom_call.1} parent=1 // pred_region
      _
    $region29: #{tpu_custom_call.1} parent=1 // pred_fallthru
      _
    // Predicated region
    $region30: #{tpu_custom_call.1} parent=1 // pred_check
      _
    $region31: #{tpu_custom_call.1} parent=1 // pred_check_branch
      %29 = sbr.rel (0) target = $region33
    $region32: #{tpu_custom_call.1} parent=1 // pred_region
      _
    $region33: #{tpu_custom_call.1} parent=1 // pred_fallthru
      _
    %v31 = vld [vmem:[%s0] sm:$0xff]
    %v32 = vld [vmem:[%s0 + $0x8] sm:$0xff]
    %v33 = vld [vmem:[%s0 + $0x10] sm:$0xff]
    %v34 = vld [vmem:[%s0 + $0x18] sm:$0xff]
    %v35 = vld [vmem:[%s0 + $0x20] sm:$0xff]
    %v36 = vld [vmem:[%s0 + $0x28] sm:$0xff]
    %v37 = vld [vmem:[%s0 + $0x30] sm:$0xff]
    %v38 = vld [vmem:[%s0 + $0x38] sm:$0xff]
    %v39 = vld [vmem:[%s0 + $0x40] sm:$0xff]
    %v40 = vld [vmem:[%s0 + $0x48] sm:$0xff]
    %v41 = vld [vmem:[%s0 + $0x50] sm:$0xff]
    %v42 = vld [vmem:[%s0 + $0x58] sm:$0xff]
    %v43 = vld [vmem:[%s0 + $0x60] sm:$0xff]
    %v44 = vld [vmem:[%s0 + $0x68] sm:$0xff]
    %v45 = vld [vmem:[%s0 + $0x70] sm:$0xff]
    %v46 = vld [vmem:[%s0 + $0x78] sm:$0xff]
    %v47 = vld [vmem:[%s0 + $0x80] sm:$0xff]
    %v48 = vld [vmem:[%s0 + $0x88] sm:$0xff]
    %v49 = vld [vmem:[%s0 + $0x90] sm:$0xff]
    %v50 = vld [vmem:[%s0 + $0x98] sm:$0xff]
    %v51 = vld [vmem:[%s0 + $0xa0] sm:$0xff]
    %v52 = vld [vmem:[%s0 + $0xa8] sm:$0xff]
    %v53 = vld [vmem:[%s0 + $0xb0] sm:$0xff]
    %v54 = vld [vmem:[%s0 + $0xb8] sm:$0xff]
    %v55 = vld [vmem:[%s0 + $0xc0] sm:$0xff]
    %v56 = vld [vmem:[%s0 + $0xc8] sm:$0xff]
    %v57 = vld [vmem:[%s0 + $0xd0] sm:$0xff]
    %v58 = vld [vmem:[%s0 + $0xd8] sm:$0xff]
    %v59 = vld [vmem:[%s0 + $0xe0] sm:$0xff]
    %v60 = vld [vmem:[%s0 + $0xe8] sm:$0xff]
    %v61 = vld [vmem:[%s0 + $0xf0] sm:$0xff]
    %v62 = vld [vmem:[%s0 + $0xf8] sm:$0xff]
    %v63 = vld [vmem:[%s0 + $0x100] sm:$0xff]
    %v64 = vld [vmem:[%s0 + $0x108] sm:$0xff]
    %v65 = vld [vmem:[%s0 + $0x110] sm:$0xff]
    %v66 = vld [vmem:[%s0 + $0x118] sm:$0xff]
    %v67 = vld [vmem:[%s2] sm:$0xff]
    %v68 = vld [vmem:[%s2 + $0x8] sm:$0xf]
    %v69 = vld [vmem:[%s2 + $0xc] sm:$0xff]
    %v70 = vld [vmem:[%s2 + $0x14] sm:$0xf]
    %v71 = vld [vmem:[%s2 + $0x18] sm:$0xff]
    %v72 = vld [vmem:[%s2 + $0x20] sm:$0xf]
    %v73 = vld [vmem:[%s2 + $0x24] sm:$0xff]
    %v74 = vld [vmem:[%s2 + $0x2c] sm:$0xf]
    %v75 = vld [vmem:[%s2 + $0x30] sm:$0xff]
    %v76 = vld [vmem:[%s2 + $0x38] sm:$0xf]
    %v77 = vld [vmem:[%s2 + $0x3c] sm:$0xff]
    %v78 = vld [vmem:[%s2 + $0x44] sm:$0xf]
    %v79 = vld [vmem:[%s2 + $0x48] sm:$0xff]
    %v80 = vld [vmem:[%s2 + $0x50] sm:$0xf]
    %v81 = vld [vmem:[%s2 + $0x54] sm:$0xff]
    %v82 = vld [vmem:[%s2 + $0x5c] sm:$0xf]
    %v83 = vld [vmem:[%s2 + $0x60] sm:$0xff]
    %v84 = vld [vmem:[%s2 + $0x68] sm:$0xf]
    %v85 = vld [vmem:[%s2 + $0x6c] sm:$0xff]
    %v86 = vld [vmem:[%s2 + $0x74] sm:$0xf]
    %v87 = vld [vmem:[%s2 + $0x78] sm:$0xff]
    %v88 = vld [vmem:[%s2 + $0x80] sm:$0xf]
    %v89 = vld [vmem:[%s2 + $0x84] sm:$0xff]
    %v90 = vld [vmem:[%s2 + $0x8c] sm:$0xf]
    %v91 = vld [vmem:[%s2 + $0x90] sm:$0xff]
    %v92 = vld [vmem:[%s2 + $0x98] sm:$0xf]
    %v93 = vld [vmem:[%s2 + $0x9c] sm:$0xff]
    %v94 = vld [vmem:[%s2 + $0xa4] sm:$0xf]
    %v95 = vld [vmem:[%s2 + $0xa8] sm:$0xff]
    %v96 = vld [vmem:[%s2 + $0xb0] sm:$0xf]
    %v97 = vld [vmem:[%s2 + $0xb4] sm:$0xff]
    %v98 = vld [vmem:[%s2 + $0xbc] sm:$0xf]
    %v99 = vld [vmem:[%s2 + $0xc0] sm:$0xff]
    %v100 = vld [vmem:[%s2 + $0xc8] sm:$0xf]
    %v101 = vld [vmem:[%s2 + $0xcc] sm:$0xff]
    %v102 = vld [vmem:[%s2 + $0xd4] sm:$0xf]
    %v103 = vld [vmem:[%s2 + $0xd8] sm:$0xff]
    %v104 = vld [vmem:[%s2 + $0xe0] sm:$0xf]
    %v105 = vld [vmem:[%s2 + $0xe4] sm:$0xff]
    %v106 = vld [vmem:[%s2 + $0xec] sm:$0xf]
    %v107 = vld [vmem:[%s2 + $0xf0] sm:$0xff]
    %v108 = vld [vmem:[%s2 + $0xf8] sm:$0xf]
    %v109 = vld [vmem:[%s2 + $0xfc] sm:$0xff]
    %v110 = vld [vmem:[%s2 + $0x104] sm:$0xf]
    %v111 = vld [vmem:[%s2 + $0x108] sm:$0xff]
    %v112 = vld [vmem:[%s2 + $0x110] sm:$0xf]
    %v113 = vld [vmem:[%s2 + $0x114] sm:$0xff]
    %v114 = vld [vmem:[%s2 + $0x11c] sm:$0xf]
    %v115 = vld [vmem:[%s2 + $0x120] sm:$0xff]
    %v116 = vld [vmem:[%s2 + $0x128] sm:$0xf]
    %v117 = vld [vmem:[%s2 + $0x12c] sm:$0xff]
    %v118 = vld [vmem:[%s2 + $0x134] sm:$0xf]
    %v119 = vld [vmem:[%s2 + $0x138] sm:$0xff]
    %v120 = vld [vmem:[%s2 + $0x140] sm:$0xf]
    %v121 = vld [vmem:[%s2 + $0x144] sm:$0xff]
    %v122 = vld [vmem:[%s2 + $0x14c] sm:$0xf]
    %v123 = vld [vmem:[%s2 + $0x150] sm:$0xff]
    %v124 = vld [vmem:[%s2 + $0x158] sm:$0xf]
    %v125 = vld [vmem:[%s2 + $0x15c] sm:$0xff]
    %v126 = vld [vmem:[%s2 + $0x164] sm:$0xf]
    %v127 = vld [vmem:[%s2 + $0x168] sm:$0xff]
    %v128 = vld [vmem:[%s2 + $0x170] sm:$0xf]
    %v129 = vld [vmem:[%s2 + $0x174] sm:$0xff]
    %v130 = vld [vmem:[%s2 + $0x17c] sm:$0xf]
    %v131 = vld [vmem:[%s2 + $0x180] sm:$0xff]
    %v132 = vld [vmem:[%s2 + $0x188] sm:$0xf]
    %v133 = vld [vmem:[%s2 + $0x18c] sm:$0xff]
    %v134 = vld [vmem:[%s2 + $0x194] sm:$0xf]
    %v135 = vld [vmem:[%s2 + $0x198] sm:$0xff]
    %v136 = vld [vmem:[%s2 + $0x1a0] sm:$0xf]
    %v137 = vld [vmem:[%s2 + $0x1a4] sm:$0xff]
    %v138 = vld [vmem:[%s2 + $0x1ac] sm:$0xf]
    %v139 = vld [vmem:[%s2 + $0x1b0] sm:$0xff]
    %v140 = vld [vmem:[%s2 + $0x1b8] sm:$0xf]
    %v141 = vld [vmem:[%s2 + $0x1bc] sm:$0xff]
    %v142 = vld [vmem:[%s2 + $0x1c4] sm:$0xf]
    %v143 = vld [vmem:[%s2 + $0x1c8] sm:$0xff]
    %v144 = vld [vmem:[%s2 + $0x1d0] sm:$0xf]
    %v145 = vld [vmem:[%s2 + $0x1d4] sm:$0xff]
    %v146 = vld [vmem:[%s2 + $0x1dc] sm:$0xf]
    %v147 = vld [vmem:[%s2 + $0x1e0] sm:$0xff]
    %v148 = vld [vmem:[%s2 + $0x1e8] sm:$0xf]
    %v149 = vld [vmem:[%s2 + $0x1ec] sm:$0xff]
    %v150 = vld [vmem:[%s2 + $0x1f4] sm:$0xf]
    %v151 = vld [vmem:[%s2 + $0x1f8] sm:$0xff]
    %v152 = vld [vmem:[%s2 + $0x200] sm:$0xf]
    %v153 = vld [vmem:[%s2 + $0x204] sm:$0xff]
    %v154 = vld [vmem:[%s2 + $0x20c] sm:$0xf]
    %v155 = vld [vmem:[%s2 + $0x210] sm:$0xff]
    %v156 = vld [vmem:[%s2 + $0x218] sm:$0xf]
    %v157 = vld [vmem:[%s2 + $0x21c] sm:$0xff]
    %v158 = vld [vmem:[%s2 + $0x224] sm:$0xf]
    %v159 = vld [vmem:[%s2 + $0x228] sm:$0xff]
    %v160 = vld [vmem:[%s2 + $0x230] sm:$0xf]
    %v161 = vld [vmem:[%s2 + $0x234] sm:$0xff]
    %v162 = vld [vmem:[%s2 + $0x23c] sm:$0xf]
    %v163 = vld [vmem:[%s2 + $0x240] sm:$0xff]
    %v164 = vld [vmem:[%s2 + $0x248] sm:$0xf]
    %v165 = vld [vmem:[%s2 + $0x24c] sm:$0xff]
    %v166 = vld [vmem:[%s2 + $0x254] sm:$0xf]
    %v167 = vld [vmem:[%s2 + $0x258] sm:$0xff]
    %v168 = vld [vmem:[%s2 + $0x260] sm:$0xf]
    %v169 = vld [vmem:[%s2 + $0x264] sm:$0xff]
    %v170 = vld [vmem:[%s2 + $0x26c] sm:$0xf]
    %v171 = vld [vmem:[%s2 + $0x270] sm:$0xff]
    %v172 = vld [vmem:[%s2 + $0x278] sm:$0xf]
    %v173 = vld [vmem:[%s2 + $0x27c] sm:$0xff]
    %v174 = vld [vmem:[%s2 + $0x284] sm:$0xf]
    %v175 = vld [vmem:[%s2 + $0x288] sm:$0xff]
    %v176 = vld [vmem:[%s2 + $0x290] sm:$0xf]
    %v177 = vld [vmem:[%s2 + $0x294] sm:$0xff]
    %v178 = vld [vmem:[%s2 + $0x29c] sm:$0xf]
    %v179 = vld [vmem:[%s2 + $0x2a0] sm:$0xff]
    %v180 = vld [vmem:[%s2 + $0x2a8] sm:$0xf]
    %v181 = vld [vmem:[%s2 + $0x2ac] sm:$0xff]
    %v182 = vld [vmem:[%s2 + $0x2b4] sm:$0xf]
    %v183 = vld [vmem:[%s2 + $0x2b8] sm:$0xff]
    %v184 = vld [vmem:[%s2 + $0x2c0] sm:$0xf]
    %v185 = vld [vmem:[%s2 + $0x2c4] sm:$0xff]
    %v186 = vld [vmem:[%s2 + $0x2cc] sm:$0xf]
    %v187 = vld [vmem:[%s2 + $0x2d0] sm:$0xff]
    %v188 = vld [vmem:[%s2 + $0x2d8] sm:$0xf]
    %v189 = vld [vmem:[%s2 + $0x2dc] sm:$0xff]
    %v190 = vld [vmem:[%s2 + $0x2e4] sm:$0xf]
    %v191 = vld [vmem:[%s2 + $0x2e8] sm:$0xff]
    %v192 = vld [vmem:[%s2 + $0x2f0] sm:$0xf]
    %v193 = vld [vmem:[%s2 + $0x2f4] sm:$0xff]
    %v194 = vld [vmem:[%s2 + $0x2fc] sm:$0xf]
    %v195 = vld [vmem:[%s2 + $0x300] sm:$0xff]
    %v196 = vld [vmem:[%s2 + $0x308] sm:$0xf]
    %v197 = vld [vmem:[%s2 + $0x30c] sm:$0xff]
    %v198 = vld [vmem:[%s2 + $0x314] sm:$0xf]
    %v199 = vld [vmem:[%s2 + $0x318] sm:$0xff]
    %v200 = vld [vmem:[%s2 + $0x320] sm:$0xf]
    %v201 = vld [vmem:[%s2 + $0x324] sm:$0xff]
    %v202 = vld [vmem:[%s2 + $0x32c] sm:$0xf]
    %v203 = vld [vmem:[%s2 + $0x330] sm:$0xff]
    %v204 = vld [vmem:[%s2 + $0x338] sm:$0xf]
    %v205 = vld [vmem:[%s2 + $0x33c] sm:$0xff]
    %v206 = vld [vmem:[%s2 + $0x344] sm:$0xf]
    %v207 = vld [vmem:[%s2 + $0x348] sm:$0xff]
    %v208 = vld [vmem:[%s2 + $0x350] sm:$0xf]
    %v209 = vld [vmem:[%s2 + $0x354] sm:$0xff]
    %v210 = vld [vmem:[%s2 + $0x35c] sm:$0xf]
    %v211 = vld [vmem:[%s1] sm:$0xff]
    %v212 = vld [vmem:[%s1 + $0x8] sm:$0xff]
    %v213 = vld [vmem:[%s1 + $0x10] sm:$0xff]
    %v214 = vld [vmem:[%s1 + $0x18] sm:$0xff]
    %v215 = vld [vmem:[%s1 + $0x20] sm:$0xff]
    %v216 = vld [vmem:[%s1 + $0x28] sm:$0xff]
    %v217 = vld [vmem:[%s1 + $0x30] sm:$0xff]
    %v218 = vld [vmem:[%s1 + $0x38] sm:$0xff]
    %v219 = vld [vmem:[%s1 + $0x40] sm:$0xff]
    %v220 = vld [vmem:[%s1 + $0x48] sm:$0xff]
    %v221 = vld [vmem:[%s1 + $0x50] sm:$0xff]
    %v222 = vld [vmem:[%s1 + $0x58] sm:$0xff]
    %v223 = vld [vmem:[%s1 + $0x60] sm:$0xff]
    %v224 = vld [vmem:[%s1 + $0x68] sm:$0xff]
    %v225 = vld [vmem:[%s1 + $0x70] sm:$0xff]
    %v226 = vld [vmem:[%s1 + $0x78] sm:$0xff]
    %v227 = vld [vmem:[%s1 + $0x80] sm:$0xff]
    %v228 = vld [vmem:[%s1 + $0x88] sm:$0xff]
    %v229 = vld [vmem:[%s1 + $0x90] sm:$0xff]
    %v230 = vld [vmem:[%s1 + $0x98] sm:$0xff]
    %v231 = vld [vmem:[%s1 + $0xa0] sm:$0xff]
    %v232 = vld [vmem:[%s1 + $0xa8] sm:$0xff]
    %v233 = vld [vmem:[%s1 + $0xb0] sm:$0xff]
    %v234 = vld [vmem:[%s1 + $0xb8] sm:$0xff]
    %v235 = vld [vmem:[%s1 + $0xc0] sm:$0xff]
    %v236 = vld [vmem:[%s1 + $0xc8] sm:$0xff]
    %v237 = vld [vmem:[%s1 + $0xd0] sm:$0xff]
    %v238 = vld [vmem:[%s1 + $0xd8] sm:$0xff]
    %v239 = vld [vmem:[%s1 + $0xe0] sm:$0xff]
    %v240 = vld [vmem:[%s1 + $0xe8] sm:$0xff]
    %v241 = vld [vmem:[%s1 + $0xf0] sm:$0xff]
    %v242 = vld [vmem:[%s1 + $0xf8] sm:$0xff]
    %v243 = vld [vmem:[%s1 + $0x100] sm:$0xff]
    %v244 = vld [vmem:[%s1 + $0x108] sm:$0xff]
    %v245 = vld [vmem:[%s1 + $0x110] sm:$0xff]
    %v246 = vld [vmem:[%s1 + $0x118] sm:$0xff]
    %v247 = vld [vmem:[%s1 + $0x120] sm:$0xff]
    %v248 = vld [vmem:[%s1 + $0x128] sm:$0xff]
    %v249 = vld [vmem:[%s1 + $0x130] sm:$0xff]
    %v250 = vld [vmem:[%s1 + $0x138] sm:$0xff]
    %v251 = vld [vmem:[%s1 + $0x140] sm:$0xff]
    %v252 = vld [vmem:[%s1 + $0x148] sm:$0xff]
    %v253 = vld [vmem:[%s1 + $0x150] sm:$0xff]
    %v254 = vld [vmem:[%s1 + $0x158] sm:$0xff]
    %v255 = vld [vmem:[%s1 + $0x160] sm:$0xff]
    %v256 = vld [vmem:[%s1 + $0x168] sm:$0xff]
    %v257 = vld [vmem:[%s1 + $0x170] sm:$0xff]
    %v258 = vld [vmem:[%s1 + $0x178] sm:$0xff]
    %v259 = vld [vmem:[%s1 + $0x180] sm:$0xff]
    %v260 = vld [vmem:[%s1 + $0x188] sm:$0xff]
    %v261 = vld [vmem:[%s1 + $0x190] sm:$0xff]
    %v262 = vld [vmem:[%s1 + $0x198] sm:$0xff]
    %v263 = vld [vmem:[%s1 + $0x1a0] sm:$0xff]
    %v264 = vld [vmem:[%s1 + $0x1a8] sm:$0xff]
    %v265 = vld [vmem:[%s1 + $0x1b0] sm:$0xff]
    %v266 = vld [vmem:[%s1 + $0x1b8] sm:$0xff]
    %v267 = vld [vmem:[%s1 + $0x1c0] sm:$0xff]
    %v268 = vld [vmem:[%s1 + $0x1c8] sm:$0xff]
    %v269 = vld [vmem:[%s1 + $0x1d0] sm:$0xff]
    %v270 = vld [vmem:[%s1 + $0x1d8] sm:$0xff]
    %v271 = vld [vmem:[%s1 + $0x1e0] sm:$0xff]
    %v272 = vld [vmem:[%s1 + $0x1e8] sm:$0xff]
    %v273 = vld [vmem:[%s1 + $0x1f0] sm:$0xff]
    %v274 = vld [vmem:[%s1 + $0x1f8] sm:$0xff]
    %v275 = vld [vmem:[%s1 + $0x200] sm:$0xff]
    %v276 = vld [vmem:[%s1 + $0x208] sm:$0xff]
    %v277 = vld [vmem:[%s1 + $0x210] sm:$0xff]
    %v278 = vld [vmem:[%s1 + $0x218] sm:$0xff]
    %v279 = vld [vmem:[%s1 + $0x220] sm:$0xff]
    %v280 = vld [vmem:[%s1 + $0x228] sm:$0xff]
    %v281 = vld [vmem:[%s1 + $0x230] sm:$0xff]
    %v282 = vld [vmem:[%s1 + $0x238] sm:$0xff]
    %v427 = vunpack.c.l.b16 %v67
    %v428 = vunpack.c.h.b16 %v67
    %v429 = vunpack.c.l.b16 %v68
    %v430 = vunpack.c.l.b16 %v69
    %v431 = vunpack.c.h.b16 %v69
    %v432 = vunpack.c.l.b16 %v70
    %v433 = vunpack.c.l.b16 %v71
    %v434 = vunpack.c.h.b16 %v71
    %v435 = vunpack.c.l.b16 %v72
    %v436 = vunpack.c.l.b16 %v73
    %v437 = vunpack.c.h.b16 %v73
    %v438 = vunpack.c.l.b16 %v74
    %v439 = vunpack.c.l.b16 %v75
    %v440 = vunpack.c.h.b16 %v75
    %v441 = vunpack.c.l.b16 %v76
    %v442 = vunpack.c.l.b16 %v77
    %v443 = vunpack.c.h.b16 %v77
    %v444 = vunpack.c.l.b16 %v78
    %v445 = vunpack.c.l.b16 %v79
    %v446 = vunpack.c.h.b16 %v79
    %v447 = vunpack.c.l.b16 %v80
    %v448 = vunpack.c.l.b16 %v81
    %v449 = vunpack.c.h.b16 %v81
    %v450 = vunpack.c.l.b16 %v82
    %v451 = vunpack.c.l.b16 %v83
    %v452 = vunpack.c.h.b16 %v83
    %v453 = vunpack.c.l.b16 %v84
    %v454 = vunpack.c.l.b16 %v85
    %v455 = vunpack.c.h.b16 %v85
    %v456 = vunpack.c.l.b16 %v86
    %v457 = vunpack.c.l.b16 %v87
    %v458 = vunpack.c.h.b16 %v87
    %v459 = vunpack.c.l.b16 %v88
    %v460 = vunpack.c.l.b16 %v89
    %v461 = vunpack.c.h.b16 %v89
    %v462 = vunpack.c.l.b16 %v90
    %v463 = vunpack.c.l.b16 %v91
    %v464 = vunpack.c.h.b16 %v91
    %v465 = vunpack.c.l.b16 %v92
    %v466 = vunpack.c.l.b16 %v93
    %v467 = vunpack.c.h.b16 %v93
    %v468 = vunpack.c.l.b16 %v94
    %v469 = vunpack.c.l.b16 %v95
    %v470 = vunpack.c.h.b16 %v95
    %v471 = vunpack.c.l.b16 %v96
    %v472 = vunpack.c.l.b16 %v97
    %v473 = vunpack.c.h.b16 %v97
    %v474 = vunpack.c.l.b16 %v98
    %v475 = vunpack.c.l.b16 %v99
    %v476 = vunpack.c.h.b16 %v99
    %v477 = vunpack.c.l.b16 %v100
    %v478 = vunpack.c.l.b16 %v101
    %v479 = vunpack.c.h.b16 %v101
    %v480 = vunpack.c.l.b16 %v102
    %v481 = vunpack.c.l.b16 %v103
    %v482 = vunpack.c.h.b16 %v103
    %v483 = vunpack.c.l.b16 %v104
    %v484 = vunpack.c.l.b16 %v105
    %v485 = vunpack.c.h.b16 %v105
    %v486 = vunpack.c.l.b16 %v106
    %v487 = vunpack.c.l.b16 %v107
    %v488 = vunpack.c.h.b16 %v107
    %v489 = vunpack.c.l.b16 %v108
    %v490 = vunpack.c.l.b16 %v109
    %v491 = vunpack.c.h.b16 %v109
    %v492 = vunpack.c.l.b16 %v110
    %v493 = vunpack.c.l.b16 %v111
    %v494 = vunpack.c.h.b16 %v111
    %v495 = vunpack.c.l.b16 %v112
    %v496 = vunpack.c.l.b16 %v113
    %v497 = vunpack.c.h.b16 %v113
    %v498 = vunpack.c.l.b16 %v114
    %v499 = vunpack.c.l.b16 %v115
    %v500 = vunpack.c.h.b16 %v115
    %v501 = vunpack.c.l.b16 %v116
    %v502 = vunpack.c.l.b16 %v117
    %v503 = vunpack.c.h.b16 %v117
    %v504 = vunpack.c.l.b16 %v118
    %v505 = vunpack.c.l.b16 %v119
    %v506 = vunpack.c.h.b16 %v119
    %v507 = vunpack.c.l.b16 %v120
    %v508 = vunpack.c.l.b16 %v121
    %v509 = vunpack.c.h.b16 %v121
    %v510 = vunpack.c.l.b16 %v122
    %v511 = vunpack.c.l.b16 %v123
    %v512 = vunpack.c.h.b16 %v123
    %v513 = vunpack.c.l.b16 %v124
    %v514 = vunpack.c.l.b16 %v125
    %v515 = vunpack.c.h.b16 %v125
    %v516 = vunpack.c.l.b16 %v126
    %v517 = vunpack.c.l.b16 %v127
    %v518 = vunpack.c.h.b16 %v127
    %v519 = vunpack.c.l.b16 %v128
    %v520 = vunpack.c.l.b16 %v129
    %v521 = vunpack.c.h.b16 %v129
    %v522 = vunpack.c.l.b16 %v130
    %v523 = vunpack.c.l.b16 %v131
    %v524 = vunpack.c.h.b16 %v131
    %v525 = vunpack.c.l.b16 %v132
    %v526 = vunpack.c.l.b16 %v133
    %v527 = vunpack.c.h.b16 %v133
    %v528 = vunpack.c.l.b16 %v134
    %v529 = vunpack.c.l.b16 %v135
    %v530 = vunpack.c.h.b16 %v135
    %v531 = vunpack.c.l.b16 %v136
    %v532 = vunpack.c.l.b16 %v137
    %v533 = vunpack.c.h.b16 %v137
    %v534 = vunpack.c.l.b16 %v138
    %v535 = vunpack.c.l.b16 %v139
    %v536 = vunpack.c.h.b16 %v139
    %v537 = vunpack.c.l.b16 %v140
    %v538 = vunpack.c.l.b16 %v141
    %v539 = vunpack.c.h.b16 %v141
    %v540 = vunpack.c.l.b16 %v142
    %v541 = vunpack.c.l.b16 %v143
    %v542 = vunpack.c.h.b16 %v143
    %v543 = vunpack.c.l.b16 %v144
    %v544 = vunpack.c.l.b16 %v145
    %v545 = vunpack.c.h.b16 %v145
    %v546 = vunpack.c.l.b16 %v146
    %v547 = vunpack.c.l.b16 %v147
    %v548 = vunpack.c.h.b16 %v147
    %v549 = vunpack.c.l.b16 %v148
    %v550 = vunpack.c.l.b16 %v149
    %v551 = vunpack.c.h.b16 %v149
    %v552 = vunpack.c.l.b16 %v150
    %v553 = vunpack.c.l.b16 %v151
    %v554 = vunpack.c.h.b16 %v151
    %v555 = vunpack.c.l.b16 %v152
    %v556 = vunpack.c.l.b16 %v153
    %v557 = vunpack.c.h.b16 %v153
    %v558 = vunpack.c.l.b16 %v154
    %v559 = vunpack.c.l.b16 %v155
    %v560 = vunpack.c.h.b16 %v155
    %v561 = vunpack.c.l.b16 %v156
    %v562 = vunpack.c.l.b16 %v157
    %v563 = vunpack.c.h.b16 %v157
    %v564 = vunpack.c.l.b16 %v158
    %v565 = vunpack.c.l.b16 %v159
    %v566 = vunpack.c.h.b16 %v159
    %v567 = vunpack.c.l.b16 %v160
    %v568 = vunpack.c.l.b16 %v161
    %v569 = vunpack.c.h.b16 %v161
    %v570 = vunpack.c.l.b16 %v162
    %v571 = vunpack.c.l.b16 %v163
    %v572 = vunpack.c.h.b16 %v163
    %v573 = vunpack.c.l.b16 %v164
    %v574 = vunpack.c.l.b16 %v165
    %v575 = vunpack.c.h.b16 %v165
    %v576 = vunpack.c.l.b16 %v166
    %v577 = vunpack.c.l.b16 %v167
    %v578 = vunpack.c.h.b16 %v167
    %v579 = vunpack.c.l.b16 %v168
    %v580 = vunpack.c.l.b16 %v169
    %v581 = vunpack.c.h.b16 %v169
    %v582 = vunpack.c.l.b16 %v170
    %v583 = vunpack.c.l.b16 %v171
    %v584 = vunpack.c.h.b16 %v171
    %v585 = vunpack.c.l.b16 %v172
    %v586 = vunpack.c.l.b16 %v173
    %v587 = vunpack.c.h.b16 %v173
    %v588 = vunpack.c.l.b16 %v174
    %v589 = vunpack.c.l.b16 %v175
    %v590 = vunpack.c.h.b16 %v175
    %v591 = vunpack.c.l.b16 %v176
    %v592 = vunpack.c.l.b16 %v177
    %v593 = vunpack.c.h.b16 %v177
    %v594 = vunpack.c.l.b16 %v178
    %v595 = vunpack.c.l.b16 %v179
    %v596 = vunpack.c.h.b16 %v179
    %v597 = vunpack.c.l.b16 %v180
    %v598 = vunpack.c.l.b16 %v181
    %v599 = vunpack.c.h.b16 %v181
    %v600 = vunpack.c.l.b16 %v182
    %v601 = vunpack.c.l.b16 %v183
    %v602 = vunpack.c.h.b16 %v183
    %v603 = vunpack.c.l.b16 %v184
    %v604 = vunpack.c.l.b16 %v185
    %v605 = vunpack.c.h.b16 %v185
    %v606 = vunpack.c.l.b16 %v186
    %v607 = vunpack.c.l.b16 %v187
    %v608 = vunpack.c.h.b16 %v187
    %v609 = vunpack.c.l.b16 %v188
    %v610 = vunpack.c.l.b16 %v189
    %v611 = vunpack.c.h.b16 %v189
    %v612 = vunpack.c.l.b16 %v190
    %v613 = vunpack.c.l.b16 %v191
    %v614 = vunpack.c.h.b16 %v191
    %v615 = vunpack.c.l.b16 %v192
    %v616 = vunpack.c.l.b16 %v193
    %v617 = vunpack.c.h.b16 %v193
    %v618 = vunpack.c.l.b16 %v194
    %v619 = vunpack.c.l.b16 %v195
    %v620 = vunpack.c.h.b16 %v195
    %v621 = vunpack.c.l.b16 %v196
    %v622 = vunpack.c.l.b16 %v197
    %v623 = vunpack.c.h.b16 %v197
    %v624 = vunpack.c.l.b16 %v198
    %v625 = vunpack.c.l.b16 %v199
    %v626 = vunpack.c.h.b16 %v199
    %v627 = vunpack.c.l.b16 %v200
    %v628 = vunpack.c.l.b16 %v201
    %v629 = vunpack.c.h.b16 %v201
    %v630 = vunpack.c.l.b16 %v202
    %v631 = vunpack.c.l.b16 %v203
    %v632 = vunpack.c.h.b16 %v203
    %v633 = vunpack.c.l.b16 %v204
    %v634 = vunpack.c.l.b16 %v205
    %v635 = vunpack.c.h.b16 %v205
    %v636 = vunpack.c.l.b16 %v206
    %v637 = vunpack.c.l.b16 %v207
    %v638 = vunpack.c.h.b16 %v207
    %v639 = vunpack.c.l.b16 %v208
    %v640 = vunpack.c.l.b16 %v209
    %v641 = vunpack.c.h.b16 %v209
    %v642 = vunpack.c.l.b16 %v210
    %v643 = vpack.c.b16 %v430, %v427
    %v644 = vpack.c.b16 %v431, %v428
    %v645 = vpack.c.b16 %v432, %v429
    %v646 = vpack.c.b16 %v436, %v433
    %v647 = vpack.c.b16 %v437, %v434
    %v648 = vpack.c.b16 %v438, %v435
    %v649 = vpack.c.b16 %v442, %v439
    %v650 = vpack.c.b16 %v443, %v440
    %v651 = vpack.c.b16 %v444, %v441
    %v652 = vpack.c.b16 %v448, %v445
    %v653 = vpack.c.b16 %v449, %v446
    %v654 = vpack.c.b16 %v450, %v447
    %v655 = vpack.c.b16 %v454, %v451
    %v656 = vpack.c.b16 %v455, %v452
    %v657 = vpack.c.b16 %v456, %v453
    %v658 = vpack.c.b16 %v460, %v457
    %v659 = vpack.c.b16 %v461, %v458
    %v660 = vpack.c.b16 %v462, %v459
    %v661 = vpack.c.b16 %v466, %v463
    %v662 = vpack.c.b16 %v467, %v464
    %v663 = vpack.c.b16 %v468, %v465
    %v664 = vpack.c.b16 %v472, %v469
    %v665 = vpack.c.b16 %v473, %v470
    %v666 = vpack.c.b16 %v474, %v471
    %v667 = vpack.c.b16 %v478, %v475
    %v668 = vpack.c.b16 %v479, %v476
    %v669 = vpack.c.b16 %v480, %v477
    %v670 = vpack.c.b16 %v484, %v481
    %v671 = vpack.c.b16 %v485, %v482
    %v672 = vpack.c.b16 %v486, %v483
    %v673 = vpack.c.b16 %v490, %v487
    %v674 = vpack.c.b16 %v491, %v488
    %v675 = vpack.c.b16 %v492, %v489
    %v676 = vpack.c.b16 %v496, %v493
    %v677 = vpack.c.b16 %v497, %v494
    %v678 = vpack.c.b16 %v498, %v495
    %v679 = vpack.c.b16 %v502, %v499
    %v680 = vpack.c.b16 %v503, %v500
    %v681 = vpack.c.b16 %v504, %v501
    %v682 = vpack.c.b16 %v508, %v505
    %v683 = vpack.c.b16 %v509, %v506
    %v684 = vpack.c.b16 %v510, %v507
    %v685 = vpack.c.b16 %v514, %v511
    %v686 = vpack.c.b16 %v515, %v512
    %v687 = vpack.c.b16 %v516, %v513
    %v688 = vpack.c.b16 %v520, %v517
    %v689 = vpack.c.b16 %v521, %v518
    %v690 = vpack.c.b16 %v522, %v519
    %v691 = vpack.c.b16 %v526, %v523
    %v692 = vpack.c.b16 %v527, %v524
    %v693 = vpack.c.b16 %v528, %v525
    %v694 = vpack.c.b16 %v532, %v529
    %v695 = vpack.c.b16 %v533, %v530
    %v696 = vpack.c.b16 %v534, %v531
    %v697 = vpack.c.b16 %v538, %v535
    %v698 = vpack.c.b16 %v539, %v536
    %v699 = vpack.c.b16 %v540, %v537
    %v700 = vpack.c.b16 %v544, %v541
    %v701 = vpack.c.b16 %v545, %v542
    %v702 = vpack.c.b16 %v546, %v543
    %v703 = vpack.c.b16 %v550, %v547
    %v704 = vpack.c.b16 %v551, %v548
    %v705 = vpack.c.b16 %v552, %v549
    %v706 = vpack.c.b16 %v556, %v553
    %v707 = vpack.c.b16 %v557, %v554
    %v708 = vpack.c.b16 %v558, %v555
    %v709 = vpack.c.b16 %v562, %v559
    %v710 = vpack.c.b16 %v563, %v560
    %v711 = vpack.c.b16 %v564, %v561
    %v712 = vpack.c.b16 %v568, %v565
    %v713 = vpack.c.b16 %v569, %v566
    %v714 = vpack.c.b16 %v570, %v567
    %v715 = vpack.c.b16 %v574, %v571
    %v716 = vpack.c.b16 %v575, %v572
    %v717 = vpack.c.b16 %v576, %v573
    %v718 = vpack.c.b16 %v580, %v577
    %v719 = vpack.c.b16 %v581, %v578
    %v720 = vpack.c.b16 %v582, %v579
    %v721 = vpack.c.b16 %v586, %v583
    %v722 = vpack.c.b16 %v587, %v584
    %v723 = vpack.c.b16 %v588, %v585
    %v724 = vpack.c.b16 %v592, %v589
    %v725 = vpack.c.b16 %v593, %v590
    %v726 = vpack.c.b16 %v594, %v591
    %v727 = vpack.c.b16 %v598, %v595
    %v728 = vpack.c.b16 %v599, %v596
    %v729 = vpack.c.b16 %v600, %v597
    %v730 = vpack.c.b16 %v604, %v601
    %v731 = vpack.c.b16 %v605, %v602
    %v732 = vpack.c.b16 %v606, %v603
    %v733 = vpack.c.b16 %v610, %v607
    %v734 = vpack.c.b16 %v611, %v608
    %v735 = vpack.c.b16 %v612, %v609
    %v736 = vpack.c.b16 %v616, %v613
    %v737 = vpack.c.b16 %v617, %v614
    %v738 = vpack.c.b16 %v618, %v615
    %v739 = vpack.c.b16 %v622, %v619
    %v740 = vpack.c.b16 %v623, %v620
    %v741 = vpack.c.b16 %v624, %v621
    %v742 = vpack.c.b16 %v628, %v625
    %v743 = vpack.c.b16 %v629, %v626
    %v744 = vpack.c.b16 %v630, %v627
    %v745 = vpack.c.b16 %v634, %v631
    %v746 = vpack.c.b16 %v635, %v632
    %v747 = vpack.c.b16 %v636, %v633
    %v748 = vpack.c.b16 %v640, %v637
    %v749 = vpack.c.b16 %v641, %v638
    %v750 = vpack.c.b16 %v642, %v639
    %vm823 = vcmask 261120
    %v825 = vsel %vm823, %v645, 0
    %v828 = vsel %vm823, %v648, 0
    %v831 = vsel %vm823, %v651, 0
    %v834 = vsel %vm823, %v654, 0
    %v837 = vsel %vm823, %v657, 0
    %v840 = vsel %vm823, %v660, 0
    %v843 = vsel %vm823, %v663, 0
    %v846 = vsel %vm823, %v666, 0
    %v849 = vsel %vm823, %v669, 0
    %v852 = vsel %vm823, %v672, 0
    %v855 = vsel %vm823, %v675, 0
    %v858 = vsel %vm823, %v678, 0
    %v861 = vsel %vm823, %v681, 0
    %v864 = vsel %vm823, %v684, 0
    %v867 = vsel %vm823, %v687, 0
    %v870 = vsel %vm823, %v690, 0
    %v873 = vsel %vm823, %v693, 0
    %v876 = vsel %vm823, %v696, 0
    %v879 = vsel %vm823, %v699, 0
    %v882 = vsel %vm823, %v702, 0
    %v885 = vsel %vm823, %v705, 0
    %v888 = vsel %vm823, %v708, 0
    %v891 = vsel %vm823, %v711, 0
    %v894 = vsel %vm823, %v714, 0
    %v897 = vsel %vm823, %v717, 0
    %v900 = vsel %vm823, %v720, 0
    %v903 = vsel %vm823, %v723, 0
    %v906 = vsel %vm823, %v726, 0
    %v909 = vsel %vm823, %v729, 0
    %v912 = vsel %vm823, %v732, 0
    %v915 = vsel %vm823, %v735, 0
    %v918 = vsel %vm823, %v738, 0
    %v921 = vsel %vm823, %v741, 0
    %v924 = vsel %vm823, %v744, 0
    %v927 = vsel %vm823, %v747, 0
    %v930 = vsel %vm823, %v750, 0
    %932 = vmatprep.subr.mxu0 0.0
    %933 = vmatpush1.msra.mxu0 %v46
    %934 = vmatprep.subr.mxu0 0.0
    %935 = vmatpush1.msra.mxu0 %v45
    %936 = vmatprep.subr.mxu0 0.0
    %937 = vmatpush1.msra.mxu0 %v44
    %938 = vmatprep.subr.mxu0 0.0
    %939 = vmatpush1.msra.mxu0 %v43
    %940 = vmatprep.subr.mxu0 0.0
    %941 = vmatpush1.msra.mxu0 %v42
    %942 = vmatprep.subr.mxu0 0.0
    %943 = vmatpush1.msra.mxu0 %v41
    %944 = vmatprep.subr.mxu0 0.0
    %945 = vmatpush1.msra.mxu0 %v40
    %946 = vmatprep.subr.mxu0 0.0
    %947 = vmatpush1.msra.mxu0 %v39
    %948 = vmatprep.subr.mxu0 0.0
    %949 = vmatpush1.msra.mxu0 %v38
    %950 = vmatprep.subr.mxu0 0.0
    %951 = vmatpush1.msra.mxu0 %v37
    %952 = vmatprep.subr.mxu0 0.0
    %953 = vmatpush1.msra.mxu0 %v36
    %954 = vmatprep.subr.mxu0 0.0
    %955 = vmatpush1.msra.mxu0 %v35
    %956 = vmatprep.subr.mxu0 0.0
    %957 = vmatpush1.msra.mxu0 %v34
    %958 = vmatprep.subr.mxu0 0.0
    %959 = vmatpush1.msra.mxu0 %v33
    %960 = vmatprep.subr.mxu0 0.0
    %961 = vmatpush1.msra.mxu0 %v32
    %962 = vmatprep.subr.mxu0 0.0
    %963 = vmatpush1.msra.mxu0 %v31
    %964 = vmatprep.subr.mxu0 0.0
    %965 = vmatpush2.msra.mxu0 %v62
    %966 = vmatprep.subr.mxu0 0.0
    %967 = vmatpush2.msra.mxu0 %v61
    %968 = vmatprep.subr.mxu0 0.0
    %969 = vmatpush2.msra.mxu0 %v60
    %970 = vmatprep.subr.mxu0 0.0
    %971 = vmatpush2.msra.mxu0 %v59
    %972 = vmatprep.subr.mxu0 0.0
    %973 = vmatpush2.msra.mxu0 %v58
    %974 = vmatprep.subr.mxu0 0.0
    %975 = vmatpush2.msra.mxu0 %v57
    %976 = vmatprep.subr.mxu0 0.0
    %977 = vmatpush2.msra.mxu0 %v56
    %978 = vmatprep.subr.mxu0 0.0
    %979 = vmatpush2.msra.mxu0 %v55
    %980 = vmatprep.subr.mxu0 0.0
    %981 = vmatpush2.msra.mxu0 %v54
    %982 = vmatprep.subr.mxu0 0.0
    %983 = vmatpush2.msra.mxu0 %v53
    %984 = vmatprep.subr.mxu0 0.0
    %985 = vmatpush2.msra.mxu0 %v52
    %986 = vmatprep.subr.mxu0 0.0
    %987 = vmatpush2.msra.mxu0 %v51
    %988 = vmatprep.subr.mxu0 0.0
    %989 = vmatpush2.msra.mxu0 %v50
    %990 = vmatprep.subr.mxu0 0.0
    %991 = vmatpush2.msra.mxu0 %v49
    %992 = vmatprep.subr.mxu0 0.0
    %993 = vmatpush2.msra.mxu0 %v48
    %994 = vmatprep.subr.mxu0 0.0
    %995 = vmatpush2.msra.mxu0 %v47
    %996 = vmatprep.mubr.bf16.mxu0 %v644
    %997 = vmatmul.mubr.bf16.gmra.mxu0 %v643
    %v998 = vpop.f32.mrf.mxu0
    %v999 = vadd.f32 %v211, %v998
    %v1000 = vpop.f32.mrf.mxu0
    %v1001 = vpop.f32.mrf.mxu0
    %v1002 = vadd.f32 %v212, %v1001
    %v1003 = vpop.f32.mrf.mxu0
    %1004 = vmatprep.mubr.bf16.mxu0 %v647
    %1005 = vmatmul.mubr.bf16.gmra.mxu0 %v646
    %v1006 = vpop.f32.mrf.mxu0
    %v1007 = vadd.f32 %v213, %v1006
    %v1008 = vpop.f32.mrf.mxu0
    %v1009 = vpop.f32.mrf.mxu0
    %v1010 = vadd.f32 %v214, %v1009
    %v1011 = vpop.f32.mrf.mxu0
    %1012 = vmatprep.mubr.bf16.mxu0 %v650
    %1013 = vmatmul.mubr.bf16.gmra.mxu0 %v649
    %v1014 = vpop.f32.mrf.mxu0
    %v1015 = vadd.f32 %v215, %v1014
    %v1016 = vpop.f32.mrf.mxu0
    %v1017 = vpop.f32.mrf.mxu0
    %v1018 = vadd.f32 %v216, %v1017
    %v1019 = vpop.f32.mrf.mxu0
    %1020 = vmatprep.mubr.bf16.mxu0 %v653
    %1021 = vmatmul.mubr.bf16.gmra.mxu0 %v652
    %v1022 = vpop.f32.mrf.mxu0
    %v1023 = vadd.f32 %v217, %v1022
    %v1024 = vpop.f32.mrf.mxu0
    %v1025 = vpop.f32.mrf.mxu0
    %v1026 = vadd.f32 %v218, %v1025
    %v1027 = vpop.f32.mrf.mxu0
    %1028 = vmatprep.mubr.bf16.mxu0 %v656
    %1029 = vmatmul.mubr.bf16.gmra.mxu0 %v655
    %v1030 = vpop.f32.mrf.mxu0
    %v1031 = vadd.f32 %v219, %v1030
    %v1032 = vpop.f32.mrf.mxu0
    %v1033 = vpop.f32.mrf.mxu0
    %v1034 = vadd.f32 %v220, %v1033
    %v1035 = vpop.f32.mrf.mxu0
    %1036 = vmatprep.mubr.bf16.mxu0 %v659
    %1037 = vmatmul.mubr.bf16.gmra.mxu0 %v658
    %v1038 = vpop.f32.mrf.mxu0
    %v1039 = vadd.f32 %v221, %v1038
    %v1040 = vpop.f32.mrf.mxu0
    %v1041 = vpop.f32.mrf.mxu0
    %v1042 = vadd.f32 %v222, %v1041
    %v1043 = vpop.f32.mrf.mxu0
    %1044 = vmatprep.mubr.bf16.mxu0 %v662
    %1045 = vmatmul.mubr.bf16.gmra.mxu0 %v661
    %v1046 = vpop.f32.mrf.mxu0
    %v1047 = vadd.f32 %v223, %v1046
    %v1048 = vpop.f32.mrf.mxu0
    %v1049 = vpop.f32.mrf.mxu0
    %v1050 = vadd.f32 %v224, %v1049
    %v1051 = vpop.f32.mrf.mxu0
    %1052 = vmatprep.mubr.bf16.mxu0 %v665
    %1053 = vmatmul.mubr.bf16.gmra.mxu0 %v664
    %v1054 = vpop.f32.mrf.mxu0
    %v1055 = vadd.f32 %v225, %v1054
    %v1056 = vpop.f32.mrf.mxu0
    %v1057 = vpop.f32.mrf.mxu0
    %v1058 = vadd.f32 %v226, %v1057
    %v1059 = vpop.f32.mrf.mxu0
    %1060 = vmatprep.mubr.bf16.mxu0 %v668
    %1061 = vmatmul.mubr.bf16.gmra.mxu0 %v667
    %v1062 = vpop.f32.mrf.mxu0
    %v1063 = vadd.f32 %v227, %v1062
    %v1064 = vpop.f32.mrf.mxu0
    %v1065 = vpop.f32.mrf.mxu0
    %v1066 = vadd.f32 %v228, %v1065
    %v1067 = vpop.f32.mrf.mxu0
    %1068 = vmatprep.mubr.bf16.mxu0 %v671
    %1069 = vmatmul.mubr.bf16.gmra.mxu0 %v670
    %v1070 = vpop.f32.mrf.mxu0
    %v1071 = vadd.f32 %v229, %v1070
    %v1072 = vpop.f32.mrf.mxu0
    %v1073 = vpop.f32.mrf.mxu0
    %v1074 = vadd.f32 %v230, %v1073
    %v1075 = vpop.f32.mrf.mxu0
    %1076 = vmatprep.mubr.bf16.mxu0 %v674
    %1077 = vmatmul.mubr.bf16.gmra.mxu0 %v673
    %v1078 = vpop.f32.mrf.mxu0
    %v1079 = vadd.f32 %v231, %v1078
    %v1080 = vpop.f32.mrf.mxu0
    %v1081 = vpop.f32.mrf.mxu0
    %v1082 = vadd.f32 %v232, %v1081
    %v1083 = vpop.f32.mrf.mxu0
    %1084 = vmatprep.mubr.bf16.mxu0 %v677
    %1085 = vmatmul.mubr.bf16.gmra.mxu0 %v676
    %v1086 = vpop.f32.mrf.mxu0
    %v1087 = vadd.f32 %v233, %v1086
    %v1088 = vpop.f32.mrf.mxu0
    %v1089 = vpop.f32.mrf.mxu0
    %v1090 = vadd.f32 %v234, %v1089
    %v1091 = vpop.f32.mrf.mxu0
    %1092 = vmatprep.mubr.bf16.mxu0 %v680
    %1093 = vmatmul.mubr.bf16.gmra.mxu0 %v679
    %v1094 = vpop.f32.mrf.mxu0
    %v1095 = vadd.f32 %v235, %v1094
    %v1096 = vpop.f32.mrf.mxu0
    %v1097 = vpop.f32.mrf.mxu0
    %v1098 = vadd.f32 %v236, %v1097
    %v1099 = vpop.f32.mrf.mxu0
    %1100 = vmatprep.mubr.bf16.mxu0 %v683
    %1101 = vmatmul.mubr.bf16.gmra.mxu0 %v682
    %v1102 = vpop.f32.mrf.mxu0
    %v1103 = vadd.f32 %v237, %v1102
    %v1104 = vpop.f32.mrf.mxu0
    %v1105 = vpop.f32.mrf.mxu0
    %v1106 = vadd.f32 %v238, %v1105
    %v1107 = vpop.f32.mrf.mxu0
    %1108 = vmatprep.mubr.bf16.mxu0 %v686
    %1109 = vmatmul.mubr.bf16.gmra.mxu0 %v685
    %v1110 = vpop.f32.mrf.mxu0
    %v1111 = vadd.f32 %v239, %v1110
    %v1112 = vpop.f32.mrf.mxu0
    %v1113 = vpop.f32.mrf.mxu0
    %v1114 = vadd.f32 %v240, %v1113
    %v1115 = vpop.f32.mrf.mxu0
    %1116 = vmatprep.mubr.bf16.mxu0 %v689
    %1117 = vmatmul.mubr.bf16.gmra.mxu0 %v688
    %v1118 = vpop.f32.mrf.mxu0
    %v1119 = vadd.f32 %v241, %v1118
    %v1120 = vpop.f32.mrf.mxu0
    %v1121 = vpop.f32.mrf.mxu0
    %v1122 = vadd.f32 %v242, %v1121
    %v1123 = vpop.f32.mrf.mxu0
    %1124 = vmatprep.mubr.bf16.mxu0 %v692
    %1125 = vmatmul.mubr.bf16.gmra.mxu0 %v691
    %v1126 = vpop.f32.mrf.mxu0
    %v1127 = vadd.f32 %v243, %v1126
    %v1128 = vpop.f32.mrf.mxu0
    %v1129 = vpop.f32.mrf.mxu0
    %v1130 = vadd.f32 %v244, %v1129
    %v1131 = vpop.f32.mrf.mxu0
    %1132 = vmatprep.mubr.bf16.mxu0 %v695
    %1133 = vmatmul.mubr.bf16.gmra.mxu0 %v694
    %v1134 = vpop.f32.mrf.mxu0
    %v1135 = vadd.f32 %v245, %v1134
    %v1136 = vpop.f32.mrf.mxu0
    %v1137 = vpop.f32.mrf.mxu0
    %v1138 = vadd.f32 %v246, %v1137
    %v1139 = vpop.f32.mrf.mxu0
    %1140 = vmatprep.mubr.bf16.mxu0 %v698
    %1141 = vmatmul.mubr.bf16.gmra.mxu0 %v697
    %v1142 = vpop.f32.mrf.mxu0
    %v1143 = vadd.f32 %v247, %v1142
    %v1144 = vpop.f32.mrf.mxu0
    %v1145 = vpop.f32.mrf.mxu0
    %v1146 = vadd.f32 %v248, %v1145
    %v1147 = vpop.f32.mrf.mxu0
    %1148 = vmatprep.mubr.bf16.mxu0 %v701
    %1149 = vmatmul.mubr.bf16.gmra.mxu0 %v700
    %v1150 = vpop.f32.mrf.mxu0
    %v1151 = vadd.f32 %v249, %v1150
    %v1152 = vpop.f32.mrf.mxu0
    %v1153 = vpop.f32.mrf.mxu0
    %v1154 = vadd.f32 %v250, %v1153
    %v1155 = vpop.f32.mrf.mxu0
    %1156 = vmatprep.mubr.bf16.mxu0 %v704
    %1157 = vmatmul.mubr.bf16.gmra.mxu0 %v703
    %v1158 = vpop.f32.mrf.mxu0
    %v1159 = vadd.f32 %v251, %v1158
    %v1160 = vpop.f32.mrf.mxu0
    %v1161 = vpop.f32.mrf.mxu0
    %v1162 = vadd.f32 %v252, %v1161
    %v1163 = vpop.f32.mrf.mxu0
    %1164 = vmatprep.mubr.bf16.mxu0 %v707
    %1165 = vmatmul.mubr.bf16.gmra.mxu0 %v706
    %v1166 = vpop.f32.mrf.mxu0
    %v1167 = vadd.f32 %v253, %v1166
    %v1168 = vpop.f32.mrf.mxu0
    %v1169 = vpop.f32.mrf.mxu0
    %v1170 = vadd.f32 %v254, %v1169
    %v1171 = vpop.f32.mrf.mxu0
    %1172 = vmatprep.mubr.bf16.mxu0 %v710
    %1173 = vmatmul.mubr.bf16.gmra.mxu0 %v709
    %v1174 = vpop.f32.mrf.mxu0
    %v1175 = vadd.f32 %v255, %v1174
    %v1176 = vpop.f32.mrf.mxu0
    %v1177 = vpop.f32.mrf.mxu0
    %v1178 = vadd.f32 %v256, %v1177
    %v1179 = vpop.f32.mrf.mxu0
    %1180 = vmatprep.mubr.bf16.mxu0 %v713
    %1181 = vmatmul.mubr.bf16.gmra.mxu0 %v712
    %v1182 = vpop.f32.mrf.mxu0
    %v1183 = vadd.f32 %v257, %v1182
    %v1184 = vpop.f32.mrf.mxu0
    %v1185 = vpop.f32.mrf.mxu0
    %v1186 = vadd.f32 %v258, %v1185
    %v1187 = vpop.f32.mrf.mxu0
    %1188 = vmatprep.mubr.bf16.mxu0 %v716
    %1189 = vmatmul.mubr.bf16.gmra.mxu0 %v715
    %v1190 = vpop.f32.mrf.mxu0
    %v1191 = vadd.f32 %v259, %v1190
    %v1192 = vpop.f32.mrf.mxu0
    %v1193 = vpop.f32.mrf.mxu0
    %v1194 = vadd.f32 %v260, %v1193
    %v1195 = vpop.f32.mrf.mxu0
    %1196 = vmatprep.mubr.bf16.mxu0 %v719
    %1197 = vmatmul.mubr.bf16.gmra.mxu0 %v718
    %v1198 = vpop.f32.mrf.mxu0
    %v1199 = vadd.f32 %v261, %v1198
    %v1200 = vpop.f32.mrf.mxu0
    %v1201 = vpop.f32.mrf.mxu0
    %v1202 = vadd.f32 %v262, %v1201
    %v1203 = vpop.f32.mrf.mxu0
    %1204 = vmatprep.mubr.bf16.mxu0 %v722
    %1205 = vmatmul.mubr.bf16.gmra.mxu0 %v721
    %v1206 = vpop.f32.mrf.mxu0
    %v1207 = vadd.f32 %v263, %v1206
    %v1208 = vpop.f32.mrf.mxu0
    %v1209 = vpop.f32.mrf.mxu0
    %v1210 = vadd.f32 %v264, %v1209
    %v1211 = vpop.f32.mrf.mxu0
    %1212 = vmatprep.mubr.bf16.mxu0 %v725
    %1213 = vmatmul.mubr.bf16.gmra.mxu0 %v724
    %v1214 = vpop.f32.mrf.mxu0
    %v1215 = vadd.f32 %v265, %v1214
    %v1216 = vpop.f32.mrf.mxu0
    %v1217 = vpop.f32.mrf.mxu0
    %v1218 = vadd.f32 %v266, %v1217
    %v1219 = vpop.f32.mrf.mxu0
    %1220 = vmatprep.mubr.bf16.mxu0 %v728
    %1221 = vmatmul.mubr.bf16.gmra.mxu0 %v727
    %v1222 = vpop.f32.mrf.mxu0
    %v1223 = vadd.f32 %v267, %v1222
    %v1224 = vpop.f32.mrf.mxu0
    %v1225 = vpop.f32.mrf.mxu0
    %v1226 = vadd.f32 %v268, %v1225
    %v1227 = vpop.f32.mrf.mxu0
    %1228 = vmatprep.mubr.bf16.mxu0 %v731
    %1229 = vmatmul.mubr.bf16.gmra.mxu0 %v730
    %v1230 = vpop.f32.mrf.mxu0
    %v1231 = vadd.f32 %v269, %v1230
    %v1232 = vpop.f32.mrf.mxu0
    %v1233 = vpop.f32.mrf.mxu0
    %v1234 = vadd.f32 %v270, %v1233
    %v1235 = vpop.f32.mrf.mxu0
    %1236 = vmatprep.mubr.bf16.mxu0 %v734
    %1237 = vmatmul.mubr.bf16.gmra.mxu0 %v733
    %v1238 = vpop.f32.mrf.mxu0
    %v1239 = vadd.f32 %v271, %v1238
    %v1240 = vpop.f32.mrf.mxu0
    %v1241 = vpop.f32.mrf.mxu0
    %v1242 = vadd.f32 %v272, %v1241
    %v1243 = vpop.f32.mrf.mxu0
    %1244 = vmatprep.mubr.bf16.mxu0 %v737
    %1245 = vmatmul.mubr.bf16.gmra.mxu0 %v736
    %v1246 = vpop.f32.mrf.mxu0
    %v1247 = vadd.f32 %v273, %v1246
    %v1248 = vpop.f32.mrf.mxu0
    %v1249 = vpop.f32.mrf.mxu0
    %v1250 = vadd.f32 %v274, %v1249
    %v1251 = vpop.f32.mrf.mxu0
    %1252 = vmatprep.mubr.bf16.mxu0 %v740
    %1253 = vmatmul.mubr.bf16.gmra.mxu0 %v739
    %v1254 = vpop.f32.mrf.mxu0
    %v1255 = vadd.f32 %v275, %v1254
    %v1256 = vpop.f32.mrf.mxu0
    %v1257 = vpop.f32.mrf.mxu0
    %v1258 = vadd.f32 %v276, %v1257
    %v1259 = vpop.f32.mrf.mxu0
    %1260 = vmatprep.mubr.bf16.mxu0 %v743
    %1261 = vmatmul.mubr.bf16.gmra.mxu0 %v742
    %v1262 = vpop.f32.mrf.mxu0
    %v1263 = vadd.f32 %v277, %v1262
    %v1264 = vpop.f32.mrf.mxu0
    %v1265 = vpop.f32.mrf.mxu0
    %v1266 = vadd.f32 %v278, %v1265
    %v1267 = vpop.f32.mrf.mxu0
    %1268 = vmatprep.mubr.bf16.mxu0 %v746
    %1269 = vmatmul.mubr.bf16.gmra.mxu0 %v745
    %v1270 = vpop.f32.mrf.mxu0
    %v1271 = vadd.f32 %v279, %v1270
    %v1272 = vpop.f32.mrf.mxu0
    %v1273 = vpop.f32.mrf.mxu0
    %v1274 = vadd.f32 %v280, %v1273
    %v1275 = vpop.f32.mrf.mxu0
    %1276 = vmatprep.mubr.bf16.mxu0 %v749
    %1277 = vmatmul.mubr.bf16.gmra.mxu0 %v748
    %v1278 = vpop.f32.mrf.mxu0
    %v1279 = vadd.f32 %v281, %v1278
    %v1280 = vpop.f32.mrf.mxu0
    %v1281 = vpop.f32.mrf.mxu0
    %v1282 = vadd.f32 %v282, %v1281
    %v1283 = vpop.f32.mrf.mxu0
    %1284 = vdwg.mxu0
    %1285 = vmatprep.subr.mxu0 0.0
    %1286 = vmatpush1.msra.mxu0 0.0
    %1287 = vmatprep.subr.mxu0 0.0
    %1288 = vmatpush1.msra.mxu0 0.0
    %1289 = vmatprep.subr.mxu0 0.0
    %1290 = vmatpush1.msra.mxu0 0.0
    %1291 = vmatprep.subr.mxu0 0.0
    %1292 = vmatpush1.msra.mxu0 0.0
    %1293 = vmatprep.subr.mxu0 0.0
    %1294 = vmatpush1.msra.mxu0 0.0
    %1295 = vmatprep.subr.mxu0 0.0
    %1296 = vmatpush1.msra.mxu0 0.0
    %1297 = vmatprep.subr.mxu0 0.0
    %1298 = vmatpush1.msra.mxu0 0.0
    %1299 = vmatprep.subr.mxu0 0.0
    %1300 = vmatpush1.msra.mxu0 0.0
    %1301 = vmatprep.subr.mxu0 0.0
    %1302 = vmatpush1.msra.mxu0 0.0
    %1303 = vmatprep.subr.mxu0 0.0
    %1304 = vmatpush1.msra.mxu0 0.0
    %1305 = vmatprep.subr.mxu0 0.0
    %1306 = vmatpush1.msra.mxu0 0.0
    %1307 = vmatprep.subr.mxu0 0.0
    %1308 = vmatpush1.msra.mxu0 0.0
    %1309 = vmatprep.subr.mxu0 0.0
    %1310 = vmatpush1.msra.mxu0 %v66
    %1311 = vmatprep.subr.mxu0 0.0
    %1312 = vmatpush1.msra.mxu0 %v65
    %1313 = vmatprep.subr.mxu0 0.0
    %1314 = vmatpush1.msra.mxu0 %v64
    %1315 = vmatprep.subr.mxu0 0.0
    %1316 = vmatpush1.msra.mxu0 %v63
    %1317 = vmatprep.subr.mxu0 0.0
    %1318 = vmatpush2.msra.mxu0 0.0
    %1319 = vmatprep.subr.mxu0 0.0
    %1320 = vmatpush2.msra.mxu0 0.0
    %1321 = vmatprep.subr.mxu0 0.0
    %1322 = vmatpush2.msra.mxu0 0.0
    %1323 = vmatprep.subr.mxu0 0.0
    %1324 = vmatpush2.msra.mxu0 0.0
    %1325 = vmatprep.subr.mxu0 0.0
    %1326 = vmatpush2.msra.mxu0 0.0
    %1327 = vmatprep.subr.mxu0 0.0
    %1328 = vmatpush2.msra.mxu0 0.0
    %1329 = vmatprep.subr.mxu0 0.0
    %1330 = vmatpush2.msra.mxu0 0.0
    %1331 = vmatprep.subr.mxu0 0.0
    %1332 = vmatpush2.msra.mxu0 0.0
    %1333 = vmatprep.subr.mxu0 0.0
    %1334 = vmatpush2.msra.mxu0 0.0
    %1335 = vmatprep.subr.mxu0 0.0
    %1336 = vmatpush2.msra.mxu0 0.0
    %1337 = vmatprep.subr.mxu0 0.0
    %1338 = vmatpush2.msra.mxu0 0.0
    %1339 = vmatprep.subr.mxu0 0.0
    %1340 = vmatpush2.msra.mxu0 0.0
    %1341 = vmatprep.subr.mxu0 0.0
    %1342 = vmatpush2.msra.mxu0 0.0
    %1343 = vmatprep.subr.mxu0 0.0
    %1344 = vmatpush2.msra.mxu0 0.0
    %1345 = vmatprep.subr.mxu0 0.0
    %1346 = vmatpush2.msra.mxu0 0.0
    %1347 = vmatprep.subr.mxu0 0.0
    %1348 = vmatpush2.msra.mxu0 0.0
    %1349 = vmatprep.mubr.bf16.mxu0 0
    %1350 = vmatmul.mubr.bf16.gmra.mxu0 %v825
    %v1351 = vpop.f32.mrf.mxu0
    %v1352 = vadd.f32 %v999, %v1351
    %v1353 = vpop.f32.mrf.mxu0
    %v1354 = vpop.f32.mrf.mxu0
    %v1355 = vadd.f32 %v1002, %v1354
    %v1356 = vpop.f32.mrf.mxu0
    %1357 = vmatprep.mubr.bf16.mxu0 0
    %1358 = vmatmul.mubr.bf16.gmra.mxu0 %v828
    %v1359 = vpop.f32.mrf.mxu0
    %v1360 = vadd.f32 %v1007, %v1359
    %v1361 = vpop.f32.mrf.mxu0
    %v1362 = vpop.f32.mrf.mxu0
    %v1363 = vadd.f32 %v1010, %v1362
    %v1364 = vpop.f32.mrf.mxu0
    %1365 = vmatprep.mubr.bf16.mxu0 0
    %1366 = vmatmul.mubr.bf16.gmra.mxu0 %v831
    %v1367 = vpop.f32.mrf.mxu0
    %v1368 = vadd.f32 %v1015, %v1367
    %v1369 = vpop.f32.mrf.mxu0
    %v1370 = vpop.f32.mrf.mxu0
    %v1371 = vadd.f32 %v1018, %v1370
    %v1372 = vpop.f32.mrf.mxu0
    %1373 = vmatprep.mubr.bf16.mxu0 0
    %1374 = vmatmul.mubr.bf16.gmra.mxu0 %v834
    %v1375 = vpop.f32.mrf.mxu0
    %v1376 = vadd.f32 %v1023, %v1375
    %v1377 = vpop.f32.mrf.mxu0
    %v1378 = vpop.f32.mrf.mxu0
    %v1379 = vadd.f32 %v1026, %v1378
    %v1380 = vpop.f32.mrf.mxu0
    %1381 = vmatprep.mubr.bf16.mxu0 0
    %1382 = vmatmul.mubr.bf16.gmra.mxu0 %v837
    %v1383 = vpop.f32.mrf.mxu0
    %v1384 = vadd.f32 %v1031, %v1383
    %v1385 = vpop.f32.mrf.mxu0
    %v1386 = vpop.f32.mrf.mxu0
    %v1387 = vadd.f32 %v1034, %v1386
    %v1388 = vpop.f32.mrf.mxu0
    %1389 = vmatprep.mubr.bf16.mxu0 0
    %1390 = vmatmul.mubr.bf16.gmra.mxu0 %v840
    %v1391 = vpop.f32.mrf.mxu0
    %v1392 = vadd.f32 %v1039, %v1391
    %v1393 = vpop.f32.mrf.mxu0
    %v1394 = vpop.f32.mrf.mxu0
    %v1395 = vadd.f32 %v1042, %v1394
    %v1396 = vpop.f32.mrf.mxu0
    %1397 = vmatprep.mubr.bf16.mxu0 0
    %1398 = vmatmul.mubr.bf16.gmra.mxu0 %v843
    %v1399 = vpop.f32.mrf.mxu0
    %v1400 = vadd.f32 %v1047, %v1399
    %v1401 = vpop.f32.mrf.mxu0
    %v1402 = vpop.f32.mrf.mxu0
    %v1403 = vadd.f32 %v1050, %v1402
    %v1404 = vpop.f32.mrf.mxu0
    %1405 = vmatprep.mubr.bf16.mxu0 0
    %1406 = vmatmul.mubr.bf16.gmra.mxu0 %v846
    %v1407 = vpop.f32.mrf.mxu0
    %v1408 = vadd.f32 %v1055, %v1407
    %v1409 = vpop.f32.mrf.mxu0
    %v1410 = vpop.f32.mrf.mxu0
    %v1411 = vadd.f32 %v1058, %v1410
    %v1412 = vpop.f32.mrf.mxu0
    %1413 = vmatprep.mubr.bf16.mxu0 0
    %1414 = vmatmul.mubr.bf16.gmra.mxu0 %v849
    %v1415 = vpop.f32.mrf.mxu0
    %v1416 = vadd.f32 %v1063, %v1415
    %v1417 = vpop.f32.mrf.mxu0
    %v1418 = vpop.f32.mrf.mxu0
    %v1419 = vadd.f32 %v1066, %v1418
    %v1420 = vpop.f32.mrf.mxu0
    %1421 = vmatprep.mubr.bf16.mxu0 0
    %1422 = vmatmul.mubr.bf16.gmra.mxu0 %v852
    %v1423 = vpop.f32.mrf.mxu0
    %v1424 = vadd.f32 %v1071, %v1423
    %v1425 = vpop.f32.mrf.mxu0
    %v1426 = vpop.f32.mrf.mxu0
    %v1427 = vadd.f32 %v1074, %v1426
    %v1428 = vpop.f32.mrf.mxu0
    %1429 = vmatprep.mubr.bf16.mxu0 0
    %1430 = vmatmul.mubr.bf16.gmra.mxu0 %v855
    %v1431 = vpop.f32.mrf.mxu0
    %v1432 = vadd.f32 %v1079, %v1431
    %v1433 = vpop.f32.mrf.mxu0
    %v1434 = vpop.f32.mrf.mxu0
    %v1435 = vadd.f32 %v1082, %v1434
    %v1436 = vpop.f32.mrf.mxu0
    %1437 = vmatprep.mubr.bf16.mxu0 0
    %1438 = vmatmul.mubr.bf16.gmra.mxu0 %v858
    %v1439 = vpop.f32.mrf.mxu0
    %v1440 = vadd.f32 %v1087, %v1439
    %v1441 = vpop.f32.mrf.mxu0
    %v1442 = vpop.f32.mrf.mxu0
    %v1443 = vadd.f32 %v1090, %v1442
    %v1444 = vpop.f32.mrf.mxu0
    %1445 = vmatprep.mubr.bf16.mxu0 0
    %1446 = vmatmul.mubr.bf16.gmra.mxu0 %v861
    %v1447 = vpop.f32.mrf.mxu0
    %v1448 = vadd.f32 %v1095, %v1447
    %v1449 = vpop.f32.mrf.mxu0
    %v1450 = vpop.f32.mrf.mxu0
    %v1451 = vadd.f32 %v1098, %v1450
    %v1452 = vpop.f32.mrf.mxu0
    %1453 = vmatprep.mubr.bf16.mxu0 0
    %1454 = vmatmul.mubr.bf16.gmra.mxu0 %v864
    %v1455 = vpop.f32.mrf.mxu0
    %v1456 = vadd.f32 %v1103, %v1455
    %v1457 = vpop.f32.mrf.mxu0
    %v1458 = vpop.f32.mrf.mxu0
    %v1459 = vadd.f32 %v1106, %v1458
    %v1460 = vpop.f32.mrf.mxu0
    %1461 = vmatprep.mubr.bf16.mxu0 0
    %1462 = vmatmul.mubr.bf16.gmra.mxu0 %v867
    %v1463 = vpop.f32.mrf.mxu0
    %v1464 = vadd.f32 %v1111, %v1463
    %v1465 = vpop.f32.mrf.mxu0
    %v1466 = vpop.f32.mrf.mxu0
    %v1467 = vadd.f32 %v1114, %v1466
    %v1468 = vpop.f32.mrf.mxu0
    %1469 = vmatprep.mubr.bf16.mxu0 0
    %1470 = vmatmul.mubr.bf16.gmra.mxu0 %v870
    %v1471 = vpop.f32.mrf.mxu0
    %v1472 = vadd.f32 %v1119, %v1471
    %v1473 = vpop.f32.mrf.mxu0
    %v1474 = vpop.f32.mrf.mxu0
    %v1475 = vadd.f32 %v1122, %v1474
    %v1476 = vpop.f32.mrf.mxu0
    %1477 = vmatprep.mubr.bf16.mxu0 0
    %1478 = vmatmul.mubr.bf16.gmra.mxu0 %v873
    %v1479 = vpop.f32.mrf.mxu0
    %v1480 = vadd.f32 %v1127, %v1479
    %v1481 = vpop.f32.mrf.mxu0
    %v1482 = vpop.f32.mrf.mxu0
    %v1483 = vadd.f32 %v1130, %v1482
    %v1484 = vpop.f32.mrf.mxu0
    %1485 = vmatprep.mubr.bf16.mxu0 0
    %1486 = vmatmul.mubr.bf16.gmra.mxu0 %v876
    %v1487 = vpop.f32.mrf.mxu0
    %v1488 = vadd.f32 %v1135, %v1487
    %v1489 = vpop.f32.mrf.mxu0
    %v1490 = vpop.f32.mrf.mxu0
    %v1491 = vadd.f32 %v1138, %v1490
    %v1492 = vpop.f32.mrf.mxu0
    %1493 = vmatprep.mubr.bf16.mxu0 0
    %1494 = vmatmul.mubr.bf16.gmra.mxu0 %v879
    %v1495 = vpop.f32.mrf.mxu0
    %v1496 = vadd.f32 %v1143, %v1495
    %v1497 = vpop.f32.mrf.mxu0
    %v1498 = vpop.f32.mrf.mxu0
    %v1499 = vadd.f32 %v1146, %v1498
    %v1500 = vpop.f32.mrf.mxu0
    %1501 = vmatprep.mubr.bf16.mxu0 0
    %1502 = vmatmul.mubr.bf16.gmra.mxu0 %v882
    %v1503 = vpop.f32.mrf.mxu0
    %v1504 = vadd.f32 %v1151, %v1503
    %v1505 = vpop.f32.mrf.mxu0
    %v1506 = vpop.f32.mrf.mxu0
    %v1507 = vadd.f32 %v1154, %v1506
    %v1508 = vpop.f32.mrf.mxu0
    %1509 = vmatprep.mubr.bf16.mxu0 0
    %1510 = vmatmul.mubr.bf16.gmra.mxu0 %v885
    %v1511 = vpop.f32.mrf.mxu0
    %v1512 = vadd.f32 %v1159, %v1511
    %v1513 = vpop.f32.mrf.mxu0
    %v1514 = vpop.f32.mrf.mxu0
    %v1515 = vadd.f32 %v1162, %v1514
    %v1516 = vpop.f32.mrf.mxu0
    %1517 = vmatprep.mubr.bf16.mxu0 0
    %1518 = vmatmul.mubr.bf16.gmra.mxu0 %v888
    %v1519 = vpop.f32.mrf.mxu0
    %v1520 = vadd.f32 %v1167, %v1519
    %v1521 = vpop.f32.mrf.mxu0
    %v1522 = vpop.f32.mrf.mxu0
    %v1523 = vadd.f32 %v1170, %v1522
    %v1524 = vpop.f32.mrf.mxu0
    %1525 = vmatprep.mubr.bf16.mxu0 0
    %1526 = vmatmul.mubr.bf16.gmra.mxu0 %v891
    %v1527 = vpop.f32.mrf.mxu0
    %v1528 = vadd.f32 %v1175, %v1527
    %v1529 = vpop.f32.mrf.mxu0
    %v1530 = vpop.f32.mrf.mxu0
    %v1531 = vadd.f32 %v1178, %v1530
    %v1532 = vpop.f32.mrf.mxu0
    %1533 = vmatprep.mubr.bf16.mxu0 0
    %1534 = vmatmul.mubr.bf16.gmra.mxu0 %v894
    %v1535 = vpop.f32.mrf.mxu0
    %v1536 = vadd.f32 %v1183, %v1535
    %v1537 = vpop.f32.mrf.mxu0
    %v1538 = vpop.f32.mrf.mxu0
    %v1539 = vadd.f32 %v1186, %v1538
    %v1540 = vpop.f32.mrf.mxu0
    %1541 = vmatprep.mubr.bf16.mxu0 0
    %1542 = vmatmul.mubr.bf16.gmra.mxu0 %v897
    %v1543 = vpop.f32.mrf.mxu0
    %v1544 = vadd.f32 %v1191, %v1543
    %v1545 = vpop.f32.mrf.mxu0
    %v1546 = vpop.f32.mrf.mxu0
    %v1547 = vadd.f32 %v1194, %v1546
    %v1548 = vpop.f32.mrf.mxu0
    %1549 = vmatprep.mubr.bf16.mxu0 0
    %1550 = vmatmul.mubr.bf16.gmra.mxu0 %v900
    %v1551 = vpop.f32.mrf.mxu0
    %v1552 = vadd.f32 %v1199, %v1551
    %v1553 = vpop.f32.mrf.mxu0
    %v1554 = vpop.f32.mrf.mxu0
    %v1555 = vadd.f32 %v1202, %v1554
    %v1556 = vpop.f32.mrf.mxu0
    %1557 = vmatprep.mubr.bf16.mxu0 0
    %1558 = vmatmul.mubr.bf16.gmra.mxu0 %v903
    %v1559 = vpop.f32.mrf.mxu0
    %v1560 = vadd.f32 %v1207, %v1559
    %v1561 = vpop.f32.mrf.mxu0
    %v1562 = vpop.f32.mrf.mxu0
    %v1563 = vadd.f32 %v1210, %v1562
    %v1564 = vpop.f32.mrf.mxu0
    %1565 = vmatprep.mubr.bf16.mxu0 0
    %1566 = vmatmul.mubr.bf16.gmra.mxu0 %v906
    %v1567 = vpop.f32.mrf.mxu0
    %v1568 = vadd.f32 %v1215, %v1567
    %v1569 = vpop.f32.mrf.mxu0
    %v1570 = vpop.f32.mrf.mxu0
    %v1571 = vadd.f32 %v1218, %v1570
    %v1572 = vpop.f32.mrf.mxu0
    %1573 = vmatprep.mubr.bf16.mxu0 0
    %1574 = vmatmul.mubr.bf16.gmra.mxu0 %v909
    %v1575 = vpop.f32.mrf.mxu0
    %v1576 = vadd.f32 %v1223, %v1575
    %v1577 = vpop.f32.mrf.mxu0
    %v1578 = vpop.f32.mrf.mxu0
    %v1579 = vadd.f32 %v1226, %v1578
    %v1580 = vpop.f32.mrf.mxu0
    %1581 = vmatprep.mubr.bf16.mxu0 0
    %1582 = vmatmul.mubr.bf16.gmra.mxu0 %v912
    %v1583 = vpop.f32.mrf.mxu0
    %v1584 = vadd.f32 %v1231, %v1583
    %v1585 = vpop.f32.mrf.mxu0
    %v1586 = vpop.f32.mrf.mxu0
    %v1587 = vadd.f32 %v1234, %v1586
    %v1588 = vpop.f32.mrf.mxu0
    %1589 = vmatprep.mubr.bf16.mxu0 0
    %1590 = vmatmul.mubr.bf16.gmra.mxu0 %v915
    %v1591 = vpop.f32.mrf.mxu0
    %v1592 = vadd.f32 %v1239, %v1591
    %v1593 = vpop.f32.mrf.mxu0
    %v1594 = vpop.f32.mrf.mxu0
    %v1595 = vadd.f32 %v1242, %v1594
    %v1596 = vpop.f32.mrf.mxu0
    %1597 = vmatprep.mubr.bf16.mxu0 0
    %1598 = vmatmul.mubr.bf16.gmra.mxu0 %v918
    %v1599 = vpop.f32.mrf.mxu0
    %v1600 = vadd.f32 %v1247, %v1599
    %v1601 = vpop.f32.mrf.mxu0
    %v1602 = vpop.f32.mrf.mxu0
    %v1603 = vadd.f32 %v1250, %v1602
    %v1604 = vpop.f32.mrf.mxu0
    %1605 = vmatprep.mubr.bf16.mxu0 0
    %1606 = vmatmul.mubr.bf16.gmra.mxu0 %v921
    %v1607 = vpop.f32.mrf.mxu0
    %v1608 = vadd.f32 %v1255, %v1607
    %v1609 = vpop.f32.mrf.mxu0
    %v1610 = vpop.f32.mrf.mxu0
    %v1611 = vadd.f32 %v1258, %v1610
    %v1612 = vpop.f32.mrf.mxu0
    %1613 = vmatprep.mubr.bf16.mxu0 0
    %1614 = vmatmul.mubr.bf16.gmra.mxu0 %v924
    %v1615 = vpop.f32.mrf.mxu0
    %v1616 = vadd.f32 %v1263, %v1615
    %v1617 = vpop.f32.mrf.mxu0
    %v1618 = vpop.f32.mrf.mxu0
    %v1619 = vadd.f32 %v1266, %v1618
    %v1620 = vpop.f32.mrf.mxu0
    %1621 = vmatprep.mubr.bf16.mxu0 0
    %1622 = vmatmul.mubr.bf16.gmra.mxu0 %v927
    %v1623 = vpop.f32.mrf.mxu0
    %v1624 = vadd.f32 %v1271, %v1623
    %v1625 = vpop.f32.mrf.mxu0
    %v1626 = vpop.f32.mrf.mxu0
    %v1627 = vadd.f32 %v1274, %v1626
    %v1628 = vpop.f32.mrf.mxu0
    %1629 = vmatprep.mubr.bf16.mxu0 0
    %1630 = vmatmul.mubr.bf16.gmra.mxu0 %v930
    %v1631 = vpop.f32.mrf.mxu0
    %v1632 = vadd.f32 %v1279, %v1631
    %v1633 = vpop.f32.mrf.mxu0
    %v1634 = vpop.f32.mrf.mxu0
    %v1635 = vadd.f32 %v1282, %v1634
    %v1636 = vpop.f32.mrf.mxu0
    %1637 = vdwg.mxu0
    %v1638 = vmax.f32 %v1352, 0.0
    %v1639 = vmax.f32 %v1355, 0.0
    %v1640 = vmax.f32 %v1360, 0.0
    %v1641 = vmax.f32 %v1363, 0.0
    %v1642 = vmax.f32 %v1368, 0.0
    %v1643 = vmax.f32 %v1371, 0.0
    %v1644 = vmax.f32 %v1376, 0.0
    %v1645 = vmax.f32 %v1379, 0.0
    %v1646 = vmax.f32 %v1384, 0.0
    %v1647 = vmax.f32 %v1387, 0.0
    %v1648 = vmax.f32 %v1392, 0.0
    %v1649 = vmax.f32 %v1395, 0.0
    %v1650 = vmax.f32 %v1400, 0.0
    %v1651 = vmax.f32 %v1403, 0.0
    %v1652 = vmax.f32 %v1408, 0.0
    %v1653 = vmax.f32 %v1411, 0.0
    %v1654 = vmax.f32 %v1416, 0.0
    %v1655 = vmax.f32 %v1419, 0.0
    %v1656 = vmax.f32 %v1424, 0.0
    %v1657 = vmax.f32 %v1427, 0.0
    %v1658 = vmax.f32 %v1432, 0.0
    %v1659 = vmax.f32 %v1435, 0.0
    %v1660 = vmax.f32 %v1440, 0.0
    %v1661 = vmax.f32 %v1443, 0.0
    %v1662 = vmax.f32 %v1448, 0.0
    %v1663 = vmax.f32 %v1451, 0.0
    %v1664 = vmax.f32 %v1456, 0.0
    %v1665 = vmax.f32 %v1459, 0.0
    %v1666 = vmax.f32 %v1464, 0.0
    %v1667 = vmax.f32 %v1467, 0.0
    %v1668 = vmax.f32 %v1472, 0.0
    %v1669 = vmax.f32 %v1475, 0.0
    %v1670 = vmax.f32 %v1480, 0.0
    %v1671 = vmax.f32 %v1483, 0.0
    %v1672 = vmax.f32 %v1488, 0.0
    %v1673 = vmax.f32 %v1491, 0.0
    %v1674 = vmax.f32 %v1496, 0.0
    %v1675 = vmax.f32 %v1499, 0.0
    %v1676 = vmax.f32 %v1504, 0.0
    %v1677 = vmax.f32 %v1507, 0.0
    %v1678 = vmax.f32 %v1512, 0.0
    %v1679 = vmax.f32 %v1515, 0.0
    %v1680 = vmax.f32 %v1520, 0.0
    %v1681 = vmax.f32 %v1523, 0.0
    %v1682 = vmax.f32 %v1528, 0.0
    %v1683 = vmax.f32 %v1531, 0.0
    %v1684 = vmax.f32 %v1536, 0.0
    %v1685 = vmax.f32 %v1539, 0.0
    %v1686 = vmax.f32 %v1544, 0.0
    %v1687 = vmax.f32 %v1547, 0.0
    %v1688 = vmax.f32 %v1552, 0.0
    %v1689 = vmax.f32 %v1555, 0.0
    %v1690 = vmax.f32 %v1560, 0.0
    %v1691 = vmax.f32 %v1563, 0.0
    %v1692 = vmax.f32 %v1568, 0.0
    %v1693 = vmax.f32 %v1571, 0.0
    %v1694 = vmax.f32 %v1576, 0.0
    %v1695 = vmax.f32 %v1579, 0.0
    %v1696 = vmax.f32 %v1584, 0.0
    %v1697 = vmax.f32 %v1587, 0.0
    %v1698 = vmax.f32 %v1592, 0.0
    %v1699 = vmax.f32 %v1595, 0.0
    %v1700 = vmax.f32 %v1600, 0.0
    %v1701 = vmax.f32 %v1603, 0.0
    %v1702 = vmax.f32 %v1608, 0.0
    %v1703 = vmax.f32 %v1611, 0.0
    %v1704 = vmax.f32 %v1616, 0.0
    %v1705 = vmax.f32 %v1619, 0.0
    %v1706 = vmax.f32 %v1624, 0.0
    %v1707 = vmax.f32 %v1627, 0.0
    %v1708 = vmax.f32 %v1632, 0.0
    %v1709 = vmax.f32 %v1635, 0.0
    %v1710 = vld [vmem:[%s3] sm:$0xff]
    %v1711 = vld [vmem:[%s3 + $0x8] sm:$0xff]
    %v1712 = vld [vmem:[%s3 + $0x10] sm:$0xf]
    %v1713 = vld [vmem:[%s3 + $0x14] sm:$0xff]
    %v1714 = vld [vmem:[%s3 + $0x1c] sm:$0xff]
    %v1715 = vld [vmem:[%s3 + $0x24] sm:$0xf]
    %v1716 = vld [vmem:[%s3 + $0x28] sm:$0xff]
    %v1717 = vld [vmem:[%s3 + $0x30] sm:$0xff]
    %v1718 = vld [vmem:[%s3 + $0x38] sm:$0xf]
    %v1719 = vld [vmem:[%s3 + $0x3c] sm:$0xff]
    %v1720 = vld [vmem:[%s3 + $0x44] sm:$0xff]
    %v1721 = vld [vmem:[%s3 + $0x4c] sm:$0xf]
    %v1722 = vld [vmem:[%s3 + $0x50] sm:$0xff]
    %v1723 = vld [vmem:[%s3 + $0x58] sm:$0xff]
    %v1724 = vld [vmem:[%s3 + $0x60] sm:$0xf]
    %v1725 = vld [vmem:[%s3 + $0x64] sm:$0xff]
    %v1726 = vld [vmem:[%s3 + $0x6c] sm:$0xff]
    %v1727 = vld [vmem:[%s3 + $0x74] sm:$0xf]
    %v1728 = vld [vmem:[%s3 + $0x78] sm:$0xff]
    %v1729 = vld [vmem:[%s3 + $0x80] sm:$0xff]
    %v1730 = vld [vmem:[%s3 + $0x88] sm:$0xf]
    %v1731 = vld [vmem:[%s3 + $0x8c] sm:$0xff]
    %v1732 = vld [vmem:[%s3 + $0x94] sm:$0xff]
    %v1733 = vld [vmem:[%s3 + $0x9c] sm:$0xf]
    %v1734 = vld [vmem:[%s3 + $0xa0] sm:$0xff]
    %v1735 = vld [vmem:[%s3 + $0xa8] sm:$0xff]
    %v1736 = vld [vmem:[%s3 + $0xb0] sm:$0xf]
    %v1737 = vld [vmem:[%s3 + $0xb4] sm:$0xff]
    %v1738 = vld [vmem:[%s3 + $0xbc] sm:$0xff]
    %v1739 = vld [vmem:[%s3 + $0xc4] sm:$0xf]
    %v1740 = vld [vmem:[%s3 + $0xc8] sm:$0xff]
    %v1741 = vld [vmem:[%s3 + $0xd0] sm:$0xff]
    %v1742 = vld [vmem:[%s3 + $0xd8] sm:$0xf]
    %v1743 = vld [vmem:[%s3 + $0xdc] sm:$0xff]
    %v1744 = vld [vmem:[%s3 + $0xe4] sm:$0xff]
    %v1745 = vld [vmem:[%s3 + $0xec] sm:$0xf]
    %v1746 = vld [vmem:[%s3 + $0xf0] sm:$0xff]
    %v1747 = vld [vmem:[%s3 + $0xf8] sm:$0xff]
    %v1748 = vld [vmem:[%s3 + $0x100] sm:$0xf]
    %v1749 = vld [vmem:[%s3 + $0x104] sm:$0xff]
    %v1750 = vld [vmem:[%s3 + $0x10c] sm:$0xff]
    %v1751 = vld [vmem:[%s3 + $0x114] sm:$0xf]
    %v1752 = vld [vmem:[%s3 + $0x118] sm:$0xff]
    %v1753 = vld [vmem:[%s3 + $0x120] sm:$0xff]
    %v1754 = vld [vmem:[%s3 + $0x128] sm:$0xf]
    %v1755 = vld [vmem:[%s3 + $0x12c] sm:$0xff]
    %v1756 = vld [vmem:[%s3 + $0x134] sm:$0xff]
    %v1757 = vld [vmem:[%s3 + $0x13c] sm:$0xf]
    %v1758 = vld [vmem:[%s3 + $0x140] sm:$0xff]
    %v1759 = vld [vmem:[%s3 + $0x148] sm:$0xff]
    %v1760 = vld [vmem:[%s3 + $0x150] sm:$0xf]
    %v1761 = vld [vmem:[%s3 + $0x154] sm:$0xff]
    %v1762 = vld [vmem:[%s3 + $0x15c] sm:$0xff]
    %v1763 = vld [vmem:[%s3 + $0x164] sm:$0xf]
    %v1764 = vld [vmem:[%s3 + $0x168] sm:$0xff]
    %v1765 = vld [vmem:[%s3 + $0x170] sm:$0xff]
    %v1766 = vld [vmem:[%s3 + $0x178] sm:$0xf]
    %v1767 = vld [vmem:[%s3 + $0x17c] sm:$0xff]
    %v1768 = vld [vmem:[%s3 + $0x184] sm:$0xff]
    %v1769 = vld [vmem:[%s3 + $0x18c] sm:$0xf]
    %v1770 = vld [vmem:[%s3 + $0x190] sm:$0xff]
    %v1771 = vld [vmem:[%s3 + $0x198] sm:$0xff]
    %v1772 = vld [vmem:[%s3 + $0x1a0] sm:$0xf]
    %v1773 = vld [vmem:[%s3 + $0x1a4] sm:$0xff]
    %v1774 = vld [vmem:[%s3 + $0x1ac] sm:$0xff]
    %v1775 = vld [vmem:[%s3 + $0x1b4] sm:$0xf]
    %v1776 = vld [vmem:[%s3 + $0x1b8] sm:$0xff]
    %v1777 = vld [vmem:[%s3 + $0x1c0] sm:$0xff]
    %v1778 = vld [vmem:[%s3 + $0x1c8] sm:$0xf]
    %v1779 = vld [vmem:[%s3 + $0x1cc] sm:$0xff]
    %v1780 = vld [vmem:[%s3 + $0x1d4] sm:$0xff]
    %v1781 = vld [vmem:[%s3 + $0x1dc] sm:$0xf]
    %v1782 = vld [vmem:[%s3 + $0x1e0] sm:$0xff]
    %v1783 = vld [vmem:[%s3 + $0x1e8] sm:$0xff]
    %v1784 = vld [vmem:[%s3 + $0x1f0] sm:$0xf]
    %v1785 = vld [vmem:[%s3 + $0x1f4] sm:$0xff]
    %v1786 = vld [vmem:[%s3 + $0x1fc] sm:$0xff]
    %v1787 = vld [vmem:[%s3 + $0x204] sm:$0xf]
    %v1788 = vld [vmem:[%s3 + $0x208] sm:$0xff]
    %v1789 = vld [vmem:[%s3 + $0x210] sm:$0xff]
    %v1790 = vld [vmem:[%s3 + $0x218] sm:$0xf]
    %v1791 = vld [vmem:[%s3 + $0x21c] sm:$0xff]
    %v1792 = vld [vmem:[%s3 + $0x224] sm:$0xff]
    %v1793 = vld [vmem:[%s3 + $0x22c] sm:$0xf]
    %v1794 = vld [vmem:[%s3 + $0x230] sm:$0xff]
    %v1795 = vld [vmem:[%s3 + $0x238] sm:$0xff]
    %v1796 = vld [vmem:[%s3 + $0x240] sm:$0xf]
    %v1797 = vld [vmem:[%s3 + $0x244] sm:$0xff]
    %v1798 = vld [vmem:[%s3 + $0x24c] sm:$0xff]
    %v1799 = vld [vmem:[%s3 + $0x254] sm:$0xf]
    %v1800 = vld [vmem:[%s3 + $0x258] sm:$0xff]
    %v1801 = vld [vmem:[%s3 + $0x260] sm:$0xff]
    %v1802 = vld [vmem:[%s3 + $0x268] sm:$0xf]
    %v1803 = vld [vmem:[%s3 + $0x26c] sm:$0xff]
    %v1804 = vld [vmem:[%s3 + $0x274] sm:$0xff]
    %v1805 = vld [vmem:[%s3 + $0x27c] sm:$0xf]
    %v1806 = vld [vmem:[%s3 + $0x280] sm:$0xff]
    %v1807 = vld [vmem:[%s3 + $0x288] sm:$0xff]
    %v1808 = vld [vmem:[%s3 + $0x290] sm:$0xf]
    %v1809 = vld [vmem:[%s3 + $0x294] sm:$0xff]
    %v1810 = vld [vmem:[%s3 + $0x29c] sm:$0xff]
    %v1811 = vld [vmem:[%s3 + $0x2a4] sm:$0xf]
    %v1812 = vld [vmem:[%s3 + $0x2a8] sm:$0xff]
    %v1813 = vld [vmem:[%s3 + $0x2b0] sm:$0xff]
    %v1814 = vld [vmem:[%s3 + $0x2b8] sm:$0xf]
    %v1815 = vld [vmem:[%s3 + $0x2bc] sm:$0xff]
    %v1816 = vld [vmem:[%s3 + $0x2c4] sm:$0xff]
    %v1817 = vld [vmem:[%s3 + $0x2cc] sm:$0xf]
    %v1926 = vunpack.c.l.b16 %v1710
    %v1927 = vunpack.c.h.b16 %v1710
    %v1928 = vunpack.c.l.b16 %v1711
    %v1929 = vunpack.c.h.b16 %v1711
    %v1930 = vunpack.c.l.b16 %v1712
    %v1931 = vunpack.c.l.b16 %v1713
    %v1932 = vunpack.c.h.b16 %v1713
    %v1933 = vunpack.c.l.b16 %v1714
    %v1934 = vunpack.c.h.b16 %v1714
    %v1935 = vunpack.c.l.b16 %v1715
    %v1936 = vunpack.c.l.b16 %v1716
    %v1937 = vunpack.c.h.b16 %v1716
    %v1938 = vunpack.c.l.b16 %v1717
    %v1939 = vunpack.c.h.b16 %v1717
    %v1940 = vunpack.c.l.b16 %v1718
    %v1941 = vunpack.c.l.b16 %v1719
    %v1942 = vunpack.c.h.b16 %v1719
    %v1943 = vunpack.c.l.b16 %v1720
    %v1944 = vunpack.c.h.b16 %v1720
    %v1945 = vunpack.c.l.b16 %v1721
    %v1946 = vunpack.c.l.b16 %v1722
    %v1947 = vunpack.c.h.b16 %v1722
    %v1948 = vunpack.c.l.b16 %v1723
    %v1949 = vunpack.c.h.b16 %v1723
    %v1950 = vunpack.c.l.b16 %v1724
    %v1951 = vunpack.c.l.b16 %v1725
    %v1952 = vunpack.c.h.b16 %v1725
    %v1953 = vunpack.c.l.b16 %v1726
    %v1954 = vunpack.c.h.b16 %v1726
    %v1955 = vunpack.c.l.b16 %v1727
    %v1956 = vunpack.c.l.b16 %v1728
    %v1957 = vunpack.c.h.b16 %v1728
    %v1958 = vunpack.c.l.b16 %v1729
    %v1959 = vunpack.c.h.b16 %v1729
    %v1960 = vunpack.c.l.b16 %v1730
    %v1961 = vunpack.c.l.b16 %v1731
    %v1962 = vunpack.c.h.b16 %v1731
    %v1963 = vunpack.c.l.b16 %v1732
    %v1964 = vunpack.c.h.b16 %v1732
    %v1965 = vunpack.c.l.b16 %v1733
    %v1966 = vunpack.c.l.b16 %v1734
    %v1967 = vunpack.c.h.b16 %v1734
    %v1968 = vunpack.c.l.b16 %v1735
    %v1969 = vunpack.c.h.b16 %v1735
    %v1970 = vunpack.c.l.b16 %v1736
    %v1971 = vunpack.c.l.b16 %v1737
    %v1972 = vunpack.c.h.b16 %v1737
    %v1973 = vunpack.c.l.b16 %v1738
    %v1974 = vunpack.c.h.b16 %v1738
    %v1975 = vunpack.c.l.b16 %v1739
    %v1976 = vunpack.c.l.b16 %v1740
    %v1977 = vunpack.c.h.b16 %v1740
    %v1978 = vunpack.c.l.b16 %v1741
    %v1979 = vunpack.c.h.b16 %v1741
    %v1980 = vunpack.c.l.b16 %v1742
    %v1981 = vunpack.c.l.b16 %v1743
    %v1982 = vunpack.c.h.b16 %v1743
    %v1983 = vunpack.c.l.b16 %v1744
    %v1984 = vunpack.c.h.b16 %v1744
    %v1985 = vunpack.c.l.b16 %v1745
    %v1986 = vunpack.c.l.b16 %v1746
    %v1987 = vunpack.c.h.b16 %v1746
    %v1988 = vunpack.c.l.b16 %v1747
    %v1989 = vunpack.c.h.b16 %v1747
    %v1990 = vunpack.c.l.b16 %v1748
    %v1991 = vunpack.c.l.b16 %v1749
    %v1992 = vunpack.c.h.b16 %v1749
    %v1993 = vunpack.c.l.b16 %v1750
    %v1994 = vunpack.c.h.b16 %v1750
    %v1995 = vunpack.c.l.b16 %v1751
    %v1996 = vunpack.c.l.b16 %v1752
    %v1997 = vunpack.c.h.b16 %v1752
    %v1998 = vunpack.c.l.b16 %v1753
    %v1999 = vunpack.c.h.b16 %v1753
    %v2000 = vunpack.c.l.b16 %v1754
    %v2001 = vunpack.c.l.b16 %v1755
    %v2002 = vunpack.c.h.b16 %v1755
    %v2003 = vunpack.c.l.b16 %v1756
    %v2004 = vunpack.c.h.b16 %v1756
    %v2005 = vunpack.c.l.b16 %v1757
    %v2006 = vunpack.c.l.b16 %v1758
    %v2007 = vunpack.c.h.b16 %v1758
    %v2008 = vunpack.c.l.b16 %v1759
    %v2009 = vunpack.c.h.b16 %v1759
    %v2010 = vunpack.c.l.b16 %v1760
    %v2011 = vunpack.c.l.b16 %v1761
    %v2012 = vunpack.c.h.b16 %v1761
    %v2013 = vunpack.c.l.b16 %v1762
    %v2014 = vunpack.c.h.b16 %v1762
    %v2015 = vunpack.c.l.b16 %v1763
    %v2016 = vunpack.c.l.b16 %v1764
    %v2017 = vunpack.c.h.b16 %v1764
    %v2018 = vunpack.c.l.b16 %v1765
    %v2019 = vunpack.c.h.b16 %v1765
    %v2020 = vunpack.c.l.b16 %v1766
    %v2021 = vunpack.c.l.b16 %v1767
    %v2022 = vunpack.c.h.b16 %v1767
    %v2023 = vunpack.c.l.b16 %v1768
    %v2024 = vunpack.c.h.b16 %v1768
    %v2025 = vunpack.c.l.b16 %v1769
    %v2026 = vunpack.c.l.b16 %v1770
    %v2027 = vunpack.c.h.b16 %v1770
    %v2028 = vunpack.c.l.b16 %v1771
    %v2029 = vunpack.c.h.b16 %v1771
    %v2030 = vunpack.c.l.b16 %v1772
    %v2031 = vunpack.c.l.b16 %v1773
    %v2032 = vunpack.c.h.b16 %v1773
    %v2033 = vunpack.c.l.b16 %v1774
    %v2034 = vunpack.c.h.b16 %v1774
    %v2035 = vunpack.c.l.b16 %v1775
    %v2036 = vunpack.c.l.b16 %v1776
    %v2037 = vunpack.c.h.b16 %v1776
    %v2038 = vunpack.c.l.b16 %v1777
    %v2039 = vunpack.c.h.b16 %v1777
    %v2040 = vunpack.c.l.b16 %v1778
    %v2041 = vunpack.c.l.b16 %v1779
    %v2042 = vunpack.c.h.b16 %v1779
    %v2043 = vunpack.c.l.b16 %v1780
    %v2044 = vunpack.c.h.b16 %v1780
    %v2045 = vunpack.c.l.b16 %v1781
    %v2046 = vunpack.c.l.b16 %v1782
    %v2047 = vunpack.c.h.b16 %v1782
    %v2048 = vunpack.c.l.b16 %v1783
    %v2049 = vunpack.c.h.b16 %v1783
    %v2050 = vunpack.c.l.b16 %v1784
    %v2051 = vunpack.c.l.b16 %v1785
    %v2052 = vunpack.c.h.b16 %v1785
    %v2053 = vunpack.c.l.b16 %v1786
    %v2054 = vunpack.c.h.b16 %v1786
    %v2055 = vunpack.c.l.b16 %v1787
    %v2056 = vunpack.c.l.b16 %v1788
    %v2057 = vunpack.c.h.b16 %v1788
    %v2058 = vunpack.c.l.b16 %v1789
    %v2059 = vunpack.c.h.b16 %v1789
    %v2060 = vunpack.c.l.b16 %v1790
    %v2061 = vunpack.c.l.b16 %v1791
    %v2062 = vunpack.c.h.b16 %v1791
    %v2063 = vunpack.c.l.b16 %v1792
    %v2064 = vunpack.c.h.b16 %v1792
    %v2065 = vunpack.c.l.b16 %v1793
    %v2066 = vunpack.c.l.b16 %v1794
    %v2067 = vunpack.c.h.b16 %v1794
    %v2068 = vunpack.c.l.b16 %v1795
    %v2069 = vunpack.c.h.b16 %v1795
    %v2070 = vunpack.c.l.b16 %v1796
    %v2071 = vunpack.c.l.b16 %v1797
    %v2072 = vunpack.c.h.b16 %v1797
    %v2073 = vunpack.c.l.b16 %v1798
    %v2074 = vunpack.c.h.b16 %v1798
    %v2075 = vunpack.c.l.b16 %v1799
    %v2076 = vunpack.c.l.b16 %v1800
    %v2077 = vunpack.c.h.b16 %v1800
    %v2078 = vunpack.c.l.b16 %v1801
    %v2079 = vunpack.c.h.b16 %v1801
    %v2080 = vunpack.c.l.b16 %v1802
    %v2081 = vunpack.c.l.b16 %v1803
    %v2082 = vunpack.c.h.b16 %v1803
    %v2083 = vunpack.c.l.b16 %v1804
    %v2084 = vunpack.c.h.b16 %v1804
    %v2085 = vunpack.c.l.b16 %v1805
    %v2086 = vunpack.c.l.b16 %v1806
    %v2087 = vunpack.c.h.b16 %v1806
    %v2088 = vunpack.c.l.b16 %v1807
    %v2089 = vunpack.c.h.b16 %v1807
    %v2090 = vunpack.c.l.b16 %v1808
    %v2091 = vunpack.c.l.b16 %v1809
    %v2092 = vunpack.c.h.b16 %v1809
    %v2093 = vunpack.c.l.b16 %v1810
    %v2094 = vunpack.c.h.b16 %v1810
    %v2095 = vunpack.c.l.b16 %v1811
    %v2096 = vunpack.c.l.b16 %v1812
    %v2097 = vunpack.c.h.b16 %v1812
    %v2098 = vunpack.c.l.b16 %v1813
    %v2099 = vunpack.c.h.b16 %v1813
    %v2100 = vunpack.c.l.b16 %v1814
    %v2101 = vunpack.c.l.b16 %v1815
    %v2102 = vunpack.c.h.b16 %v1815
    %v2103 = vunpack.c.l.b16 %v1816
    %v2104 = vunpack.c.h.b16 %v1816
    %v2105 = vunpack.c.l.b16 %v1817
    %v2106 = vpack.c.b16 %v1931, %v1926
    %v2107 = vpack.c.b16 %v1932, %v1927
    %v2108 = vpack.c.b16 %v1933, %v1928
    %v2109 = vpack.c.b16 %v1934, %v1929
    %v2110 = vpack.c.b16 %v1935, %v1930
    %v2111 = vpack.c.b16 %v1941, %v1936
    %v2112 = vpack.c.b16 %v1942, %v1937
    %v2113 = vpack.c.b16 %v1943, %v1938
    %v2114 = vpack.c.b16 %v1944, %v1939
    %v2115 = vpack.c.b16 %v1945, %v1940
    %v2116 = vpack.c.b16 %v1951, %v1946
    %v2117 = vpack.c.b16 %v1952, %v1947
    %v2118 = vpack.c.b16 %v1953, %v1948
    %v2119 = vpack.c.b16 %v1954, %v1949
    %v2120 = vpack.c.b16 %v1955, %v1950
    %v2121 = vpack.c.b16 %v1961, %v1956
    %v2122 = vpack.c.b16 %v1962, %v1957
    %v2123 = vpack.c.b16 %v1963, %v1958
    %v2124 = vpack.c.b16 %v1964, %v1959
    %v2125 = vpack.c.b16 %v1965, %v1960
    %v2126 = vpack.c.b16 %v1971, %v1966
    %v2127 = vpack.c.b16 %v1972, %v1967
    %v2128 = vpack.c.b16 %v1973, %v1968
    %v2129 = vpack.c.b16 %v1974, %v1969
    %v2130 = vpack.c.b16 %v1975, %v1970
    %v2131 = vpack.c.b16 %v1981, %v1976
    %v2132 = vpack.c.b16 %v1982, %v1977
    %v2133 = vpack.c.b16 %v1983, %v1978
    %v2134 = vpack.c.b16 %v1984, %v1979
    %v2135 = vpack.c.b16 %v1985, %v1980
    %v2136 = vpack.c.b16 %v1991, %v1986
    %v2137 = vpack.c.b16 %v1992, %v1987
    %v2138 = vpack.c.b16 %v1993, %v1988
    %v2139 = vpack.c.b16 %v1994, %v1989
    %v2140 = vpack.c.b16 %v1995, %v1990
    %v2141 = vpack.c.b16 %v2001, %v1996
    %v2142 = vpack.c.b16 %v2002, %v1997
    %v2143 = vpack.c.b16 %v2003, %v1998
    %v2144 = vpack.c.b16 %v2004, %v1999
    %v2145 = vpack.c.b16 %v2005, %v2000
    %v2146 = vpack.c.b16 %v2011, %v2006
    %v2147 = vpack.c.b16 %v2012, %v2007
    %v2148 = vpack.c.b16 %v2013, %v2008
    %v2149 = vpack.c.b16 %v2014, %v2009
    %v2150 = vpack.c.b16 %v2015, %v2010
    %v2151 = vpack.c.b16 %v2021, %v2016
    %v2152 = vpack.c.b16 %v2022, %v2017
    %v2153 = vpack.c.b16 %v2023, %v2018
    %v2154 = vpack.c.b16 %v2024, %v2019
    %v2155 = vpack.c.b16 %v2025, %v2020
    %v2156 = vpack.c.b16 %v2031, %v2026
    %v2157 = vpack.c.b16 %v2032, %v2027
    %v2158 = vpack.c.b16 %v2033, %v2028
    %v2159 = vpack.c.b16 %v2034, %v2029
    %v2160 = vpack.c.b16 %v2035, %v2030
    %v2161 = vpack.c.b16 %v2041, %v2036
    %v2162 = vpack.c.b16 %v2042, %v2037
    %v2163 = vpack.c.b16 %v2043, %v2038
    %v2164 = vpack.c.b16 %v2044, %v2039
    %v2165 = vpack.c.b16 %v2045, %v2040
    %v2166 = vpack.c.b16 %v2051, %v2046
    %v2167 = vpack.c.b16 %v2052, %v2047
    %v2168 = vpack.c.b16 %v2053, %v2048
    %v2169 = vpack.c.b16 %v2054, %v2049
    %v2170 = vpack.c.b16 %v2055, %v2050
    %v2171 = vpack.c.b16 %v2061, %v2056
    %v2172 = vpack.c.b16 %v2062, %v2057
    %v2173 = vpack.c.b16 %v2063, %v2058
    %v2174 = vpack.c.b16 %v2064, %v2059
    %v2175 = vpack.c.b16 %v2065, %v2060
    %v2176 = vpack.c.b16 %v2071, %v2066
    %v2177 = vpack.c.b16 %v2072, %v2067
    %v2178 = vpack.c.b16 %v2073, %v2068
    %v2179 = vpack.c.b16 %v2074, %v2069
    %v2180 = vpack.c.b16 %v2075, %v2070
    %v2181 = vpack.c.b16 %v2081, %v2076
    %v2182 = vpack.c.b16 %v2082, %v2077
    %v2183 = vpack.c.b16 %v2083, %v2078
    %v2184 = vpack.c.b16 %v2084, %v2079
    %v2185 = vpack.c.b16 %v2085, %v2080
    %v2186 = vpack.c.b16 %v2091, %v2086
    %v2187 = vpack.c.b16 %v2092, %v2087
    %v2188 = vpack.c.b16 %v2093, %v2088
    %v2189 = vpack.c.b16 %v2094, %v2089
    %v2190 = vpack.c.b16 %v2095, %v2090
    %v2191 = vpack.c.b16 %v2101, %v2096
    %v2192 = vpack.c.b16 %v2102, %v2097
    %v2193 = vpack.c.b16 %v2103, %v2098
    %v2194 = vpack.c.b16 %v2104, %v2099
    %v2195 = vpack.c.b16 %v2105, %v2100
    %vm2268 = vcmask 523264
    %v2270 = vsel %vm2268, %v2110, 0
    %v2273 = vsel %vm2268, %v2115, 0
    %v2276 = vsel %vm2268, %v2120, 0
    %v2279 = vsel %vm2268, %v2125, 0
    %v2282 = vsel %vm2268, %v2130, 0
    %v2285 = vsel %vm2268, %v2135, 0
    %v2288 = vsel %vm2268, %v2140, 0
    %v2291 = vsel %vm2268, %v2145, 0
    %v2294 = vsel %vm2268, %v2150, 0
    %v2297 = vsel %vm2268, %v2155, 0
    %v2300 = vsel %vm2268, %v2160, 0
    %v2303 = vsel %vm2268, %v2165, 0
    %v2306 = vsel %vm2268, %v2170, 0
    %v2309 = vsel %vm2268, %v2175, 0
    %v2312 = vsel %vm2268, %v2180, 0
    %v2315 = vsel %vm2268, %v2185, 0
    %v2318 = vsel %vm2268, %v2190, 0
    %v2321 = vsel %vm2268, %v2195, 0
    %2323 = vmatprep.subr.mxu0 0.0
    %2324 = vmatpush1.msra.mxu0 %v1653
    %2325 = vmatprep.subr.mxu0 0.0
    %2326 = vmatpush1.msra.mxu0 %v1652
    %2327 = vmatprep.subr.mxu0 0.0
    %2328 = vmatpush1.msra.mxu0 %v1651
    %2329 = vmatprep.subr.mxu0 0.0
    %2330 = vmatpush1.msra.mxu0 %v1650
    %2331 = vmatprep.subr.mxu0 0.0
    %2332 = vmatpush1.msra.mxu0 %v1649
    %2333 = vmatprep.subr.mxu0 0.0
    %2334 = vmatpush1.msra.mxu0 %v1648
    %2335 = vmatprep.subr.mxu0 0.0
    %2336 = vmatpush1.msra.mxu0 %v1647
    %2337 = vmatprep.subr.mxu0 0.0
    %2338 = vmatpush1.msra.mxu0 %v1646
    %2339 = vmatprep.subr.mxu0 0.0
    %2340 = vmatpush1.msra.mxu0 %v1645
    %2341 = vmatprep.subr.mxu0 0.0
    %2342 = vmatpush1.msra.mxu0 %v1644
    %2343 = vmatprep.subr.mxu0 0.0
    %2344 = vmatpush1.msra.mxu0 %v1643
    %2345 = vmatprep.subr.mxu0 0.0
    %2346 = vmatpush1.msra.mxu0 %v1642
    %2347 = vmatprep.subr.mxu0 0.0
    %2348 = vmatpush1.msra.mxu0 %v1641
    %2349 = vmatprep.subr.mxu0 0.0
    %2350 = vmatpush1.msra.mxu0 %v1640
    %2351 = vmatprep.subr.mxu0 0.0
    %2352 = vmatpush1.msra.mxu0 %v1639
    %2353 = vmatprep.subr.mxu0 0.0
    %2354 = vmatpush1.msra.mxu0 %v1638
    %2355 = vmatprep.subr.mxu0 0.0
    %2356 = vmatpush2.msra.mxu0 %v1669
    %2357 = vmatprep.subr.mxu0 0.0
    %2358 = vmatpush2.msra.mxu0 %v1668
    %2359 = vmatprep.subr.mxu0 0.0
    %2360 = vmatpush2.msra.mxu0 %v1667
    %2361 = vmatprep.subr.mxu0 0.0
    %2362 = vmatpush2.msra.mxu0 %v1666
    %2363 = vmatprep.subr.mxu0 0.0
    %2364 = vmatpush2.msra.mxu0 %v1665
    %2365 = vmatprep.subr.mxu0 0.0
    %2366 = vmatpush2.msra.mxu0 %v1664
    %2367 = vmatprep.subr.mxu0 0.0
    %2368 = vmatpush2.msra.mxu0 %v1663
    %2369 = vmatprep.subr.mxu0 0.0
    %2370 = vmatpush2.msra.mxu0 %v1662
    %2371 = vmatprep.subr.mxu0 0.0
    %2372 = vmatpush2.msra.mxu0 %v1661
    %2373 = vmatprep.subr.mxu0 0.0
    %2374 = vmatpush2.msra.mxu0 %v1660
    %2375 = vmatprep.subr.mxu0 0.0
    %2376 = vmatpush2.msra.mxu0 %v1659
    %2377 = vmatprep.subr.mxu0 0.0
    %2378 = vmatpush2.msra.mxu0 %v1658
    %2379 = vmatprep.subr.mxu0 0.0
    %2380 = vmatpush2.msra.mxu0 %v1657
    %2381 = vmatprep.subr.mxu0 0.0
    %2382 = vmatpush2.msra.mxu0 %v1656
    %2383 = vmatprep.subr.mxu0 0.0
    %2384 = vmatpush2.msra.mxu0 %v1655
    %2385 = vmatprep.subr.mxu0 0.0
    %2386 = vmatpush2.msra.mxu0 %v1654
    %2387 = vmatprep.mubr.bf16.mxu0 %v2107
    %2388 = vmatmul.mubr.bf16.gmra.mxu0 %v2106
    %v2389 = vpop.f32.mrf.mxu0
    %v2390 = vadd.f32 0.0, %v2389
    %v2391 = vpop.f32.mrf.mxu0
    %v2392 = vpop.f32.mrf.mxu0
    %v2393 = vadd.f32 0.0, %v2392
    %v2394 = vpop.f32.mrf.mxu0
    %2395 = vmatprep.mubr.bf16.mxu0 %v2112
    %2396 = vmatmul.mubr.bf16.gmra.mxu0 %v2111
    %v2397 = vpop.f32.mrf.mxu0
    %v2398 = vadd.f32 0.0, %v2397
    %v2399 = vpop.f32.mrf.mxu0
    %v2400 = vpop.f32.mrf.mxu0
    %v2401 = vadd.f32 0.0, %v2400
    %v2402 = vpop.f32.mrf.mxu0
    %2403 = vmatprep.mubr.bf16.mxu0 %v2117
    %2404 = vmatmul.mubr.bf16.gmra.mxu0 %v2116
    %v2405 = vpop.f32.mrf.mxu0
    %v2406 = vadd.f32 0.0, %v2405
    %v2407 = vpop.f32.mrf.mxu0
    %v2408 = vpop.f32.mrf.mxu0
    %v2409 = vadd.f32 0.0, %v2408
    %v2410 = vpop.f32.mrf.mxu0
    %2411 = vmatprep.mubr.bf16.mxu0 %v2122
    %2412 = vmatmul.mubr.bf16.gmra.mxu0 %v2121
    %v2413 = vpop.f32.mrf.mxu0
    %v2414 = vadd.f32 0.0, %v2413
    %v2415 = vpop.f32.mrf.mxu0
    %v2416 = vpop.f32.mrf.mxu0
    %v2417 = vadd.f32 0.0, %v2416
    %v2418 = vpop.f32.mrf.mxu0
    %2419 = vmatprep.mubr.bf16.mxu0 %v2127
    %2420 = vmatmul.mubr.bf16.gmra.mxu0 %v2126
    %v2421 = vpop.f32.mrf.mxu0
    %v2422 = vadd.f32 0.0, %v2421
    %v2423 = vpop.f32.mrf.mxu0
    %v2424 = vpop.f32.mrf.mxu0
    %v2425 = vadd.f32 0.0, %v2424
    %v2426 = vpop.f32.mrf.mxu0
    %2427 = vmatprep.mubr.bf16.mxu0 %v2132
    %2428 = vmatmul.mubr.bf16.gmra.mxu0 %v2131
    %v2429 = vpop.f32.mrf.mxu0
    %v2430 = vadd.f32 0.0, %v2429
    %v2431 = vpop.f32.mrf.mxu0
    %v2432 = vpop.f32.mrf.mxu0
    %v2433 = vadd.f32 0.0, %v2432
    %v2434 = vpop.f32.mrf.mxu0
    %2435 = vmatprep.mubr.bf16.mxu0 %v2137
    %2436 = vmatmul.mubr.bf16.gmra.mxu0 %v2136
    %v2437 = vpop.f32.mrf.mxu0
    %v2438 = vadd.f32 0.0, %v2437
    %v2439 = vpop.f32.mrf.mxu0
    %v2440 = vpop.f32.mrf.mxu0
    %v2441 = vadd.f32 0.0, %v2440
    %v2442 = vpop.f32.mrf.mxu0
    %2443 = vmatprep.mubr.bf16.mxu0 %v2142
    %2444 = vmatmul.mubr.bf16.gmra.mxu0 %v2141
    %v2445 = vpop.f32.mrf.mxu0
    %v2446 = vadd.f32 0.0, %v2445
    %v2447 = vpop.f32.mrf.mxu0
    %v2448 = vpop.f32.mrf.mxu0
    %v2449 = vadd.f32 0.0, %v2448
    %v2450 = vpop.f32.mrf.mxu0
    %2451 = vmatprep.mubr.bf16.mxu0 %v2147
    %2452 = vmatmul.mubr.bf16.gmra.mxu0 %v2146
    %v2453 = vpop.f32.mrf.mxu0
    %v2454 = vadd.f32 0.0, %v2453
    %v2455 = vpop.f32.mrf.mxu0
    %v2456 = vpop.f32.mrf.mxu0
    %v2457 = vadd.f32 0.0, %v2456
    %v2458 = vpop.f32.mrf.mxu0
    %2459 = vmatprep.mubr.bf16.mxu0 %v2152
    %2460 = vmatmul.mubr.bf16.gmra.mxu0 %v2151
    %v2461 = vpop.f32.mrf.mxu0
    %v2462 = vadd.f32 0.0, %v2461
    %v2463 = vpop.f32.mrf.mxu0
    %v2464 = vpop.f32.mrf.mxu0
    %v2465 = vadd.f32 0.0, %v2464
    %v2466 = vpop.f32.mrf.mxu0
    %2467 = vmatprep.mubr.bf16.mxu0 %v2157
    %2468 = vmatmul.mubr.bf16.gmra.mxu0 %v2156
    %v2469 = vpop.f32.mrf.mxu0
    %v2470 = vadd.f32 0.0, %v2469
    %v2471 = vpop.f32.mrf.mxu0
    %v2472 = vpop.f32.mrf.mxu0
    %v2473 = vadd.f32 0.0, %v2472
    %v2474 = vpop.f32.mrf.mxu0
    %2475 = vmatprep.mubr.bf16.mxu0 %v2162
    %2476 = vmatmul.mubr.bf16.gmra.mxu0 %v2161
    %v2477 = vpop.f32.mrf.mxu0
    %v2478 = vadd.f32 0.0, %v2477
    %v2479 = vpop.f32.mrf.mxu0
    %v2480 = vpop.f32.mrf.mxu0
    %v2481 = vadd.f32 0.0, %v2480
    %v2482 = vpop.f32.mrf.mxu0
    %2483 = vmatprep.mubr.bf16.mxu0 %v2167
    %2484 = vmatmul.mubr.bf16.gmra.mxu0 %v2166
    %v2485 = vpop.f32.mrf.mxu0
    %v2486 = vadd.f32 0.0, %v2485
    %v2487 = vpop.f32.mrf.mxu0
    %v2488 = vpop.f32.mrf.mxu0
    %v2489 = vadd.f32 0.0, %v2488
    %v2490 = vpop.f32.mrf.mxu0
    %2491 = vmatprep.mubr.bf16.mxu0 %v2172
    %2492 = vmatmul.mubr.bf16.gmra.mxu0 %v2171
    %v2493 = vpop.f32.mrf.mxu0
    %v2494 = vadd.f32 0.0, %v2493
    %v2495 = vpop.f32.mrf.mxu0
    %v2496 = vpop.f32.mrf.mxu0
    %v2497 = vadd.f32 0.0, %v2496
    %v2498 = vpop.f32.mrf.mxu0
    %2499 = vmatprep.mubr.bf16.mxu0 %v2177
    %2500 = vmatmul.mubr.bf16.gmra.mxu0 %v2176
    %v2501 = vpop.f32.mrf.mxu0
    %v2502 = vadd.f32 0.0, %v2501
    %v2503 = vpop.f32.mrf.mxu0
    %v2504 = vpop.f32.mrf.mxu0
    %v2505 = vadd.f32 0.0, %v2504
    %v2506 = vpop.f32.mrf.mxu0
    %2507 = vmatprep.mubr.bf16.mxu0 %v2182
    %2508 = vmatmul.mubr.bf16.gmra.mxu0 %v2181
    %v2509 = vpop.f32.mrf.mxu0
    %v2510 = vadd.f32 0.0, %v2509
    %v2511 = vpop.f32.mrf.mxu0
    %v2512 = vpop.f32.mrf.mxu0
    %v2513 = vadd.f32 0.0, %v2512
    %v2514 = vpop.f32.mrf.mxu0
    %2515 = vmatprep.mubr.bf16.mxu0 %v2187
    %2516 = vmatmul.mubr.bf16.gmra.mxu0 %v2186
    %v2517 = vpop.f32.mrf.mxu0
    %v2518 = vadd.f32 0.0, %v2517
    %v2519 = vpop.f32.mrf.mxu0
    %v2520 = vpop.f32.mrf.mxu0
    %v2521 = vadd.f32 0.0, %v2520
    %v2522 = vpop.f32.mrf.mxu0
    %2523 = vmatprep.mubr.bf16.mxu0 %v2192
    %2524 = vmatmul.mubr.bf16.gmra.mxu0 %v2191
    %v2525 = vpop.f32.mrf.mxu0
    %v2526 = vadd.f32 0.0, %v2525
    %v2527 = vpop.f32.mrf.mxu0
    %v2528 = vpop.f32.mrf.mxu0
    %v2529 = vadd.f32 0.0, %v2528
    %v2530 = vpop.f32.mrf.mxu0
    %2531 = vdwg.mxu0
    %2532 = vmatprep.subr.mxu0 0.0
    %2533 = vmatpush1.msra.mxu0 %v1685
    %2534 = vmatprep.subr.mxu0 0.0
    %2535 = vmatpush1.msra.mxu0 %v1684
    %2536 = vmatprep.subr.mxu0 0.0
    %2537 = vmatpush1.msra.mxu0 %v1683
    %2538 = vmatprep.subr.mxu0 0.0
    %2539 = vmatpush1.msra.mxu0 %v1682
    %2540 = vmatprep.subr.mxu0 0.0
    %2541 = vmatpush1.msra.mxu0 %v1681
    %2542 = vmatprep.subr.mxu0 0.0
    %2543 = vmatpush1.msra.mxu0 %v1680
    %2544 = vmatprep.subr.mxu0 0.0
    %2545 = vmatpush1.msra.mxu0 %v1679
    %2546 = vmatprep.subr.mxu0 0.0
    %2547 = vmatpush1.msra.mxu0 %v1678
    %2548 = vmatprep.subr.mxu0 0.0
    %2549 = vmatpush1.msra.mxu0 %v1677
    %2550 = vmatprep.subr.mxu0 0.0
    %2551 = vmatpush1.msra.mxu0 %v1676
    %2552 = vmatprep.subr.mxu0 0.0
    %2553 = vmatpush1.msra.mxu0 %v1675
    %2554 = vmatprep.subr.mxu0 0.0
    %2555 = vmatpush1.msra.mxu0 %v1674
    %2556 = vmatprep.subr.mxu0 0.0
    %2557 = vmatpush1.msra.mxu0 %v1673
    %2558 = vmatprep.subr.mxu0 0.0
    %2559 = vmatpush1.msra.mxu0 %v1672
    %2560 = vmatprep.subr.mxu0 0.0
    %2561 = vmatpush1.msra.mxu0 %v1671
    %2562 = vmatprep.subr.mxu0 0.0
    %2563 = vmatpush1.msra.mxu0 %v1670
    %2564 = vmatprep.subr.mxu0 0.0
    %2565 = vmatpush2.msra.mxu0 %v1701
    %2566 = vmatprep.subr.mxu0 0.0
    %2567 = vmatpush2.msra.mxu0 %v1700
    %2568 = vmatprep.subr.mxu0 0.0
    %2569 = vmatpush2.msra.mxu0 %v1699
    %2570 = vmatprep.subr.mxu0 0.0
    %2571 = vmatpush2.msra.mxu0 %v1698
    %2572 = vmatprep.subr.mxu0 0.0
    %2573 = vmatpush2.msra.mxu0 %v1697
    %2574 = vmatprep.subr.mxu0 0.0
    %2575 = vmatpush2.msra.mxu0 %v1696
    %2576 = vmatprep.subr.mxu0 0.0
    %2577 = vmatpush2.msra.mxu0 %v1695
    %2578 = vmatprep.subr.mxu0 0.0
    %2579 = vmatpush2.msra.mxu0 %v1694
    %2580 = vmatprep.subr.mxu0 0.0
    %2581 = vmatpush2.msra.mxu0 %v1693
    %2582 = vmatprep.subr.mxu0 0.0
    %2583 = vmatpush2.msra.mxu0 %v1692
    %2584 = vmatprep.subr.mxu0 0.0
    %2585 = vmatpush2.msra.mxu0 %v1691
    %2586 = vmatprep.subr.mxu0 0.0
    %2587 = vmatpush2.msra.mxu0 %v1690
    %2588 = vmatprep.subr.mxu0 0.0
    %2589 = vmatpush2.msra.mxu0 %v1689
    %2590 = vmatprep.subr.mxu0 0.0
    %2591 = vmatpush2.msra.mxu0 %v1688
    %2592 = vmatprep.subr.mxu0 0.0
    %2593 = vmatpush2.msra.mxu0 %v1687
    %2594 = vmatprep.subr.mxu0 0.0
    %2595 = vmatpush2.msra.mxu0 %v1686
    %2596 = vmatprep.mubr.bf16.mxu0 %v2109
    %2597 = vmatmul.mubr.bf16.gmra.mxu0 %v2108
    %v2598 = vpop.f32.mrf.mxu0
    %v2599 = vadd.f32 %v2390, %v2598
    %v2600 = vpop.f32.mrf.mxu0
    %v2601 = vpop.f32.mrf.mxu0
    %v2602 = vadd.f32 %v2393, %v2601
    %v2603 = vpop.f32.mrf.mxu0
    %2604 = vmatprep.mubr.bf16.mxu0 %v2114
    %2605 = vmatmul.mubr.bf16.gmra.mxu0 %v2113
    %v2606 = vpop.f32.mrf.mxu0
    %v2607 = vadd.f32 %v2398, %v2606
    %v2608 = vpop.f32.mrf.mxu0
    %v2609 = vpop.f32.mrf.mxu0
    %v2610 = vadd.f32 %v2401, %v2609
    %v2611 = vpop.f32.mrf.mxu0
    %2612 = vmatprep.mubr.bf16.mxu0 %v2119
    %2613 = vmatmul.mubr.bf16.gmra.mxu0 %v2118
    %v2614 = vpop.f32.mrf.mxu0
    %v2615 = vadd.f32 %v2406, %v2614
    %v2616 = vpop.f32.mrf.mxu0
    %v2617 = vpop.f32.mrf.mxu0
    %v2618 = vadd.f32 %v2409, %v2617
    %v2619 = vpop.f32.mrf.mxu0
    %2620 = vmatprep.mubr.bf16.mxu0 %v2124
    %2621 = vmatmul.mubr.bf16.gmra.mxu0 %v2123
    %v2622 = vpop.f32.mrf.mxu0
    %v2623 = vadd.f32 %v2414, %v2622
    %v2624 = vpop.f32.mrf.mxu0
    %v2625 = vpop.f32.mrf.mxu0
    %v2626 = vadd.f32 %v2417, %v2625
    %v2627 = vpop.f32.mrf.mxu0
    %2628 = vmatprep.mubr.bf16.mxu0 %v2129
    %2629 = vmatmul.mubr.bf16.gmra.mxu0 %v2128
    %v2630 = vpop.f32.mrf.mxu0
    %v2631 = vadd.f32 %v2422, %v2630
    %v2632 = vpop.f32.mrf.mxu0
    %v2633 = vpop.f32.mrf.mxu0
    %v2634 = vadd.f32 %v2425, %v2633
    %v2635 = vpop.f32.mrf.mxu0
    %2636 = vmatprep.mubr.bf16.mxu0 %v2134
    %2637 = vmatmul.mubr.bf16.gmra.mxu0 %v2133
    %v2638 = vpop.f32.mrf.mxu0
    %v2639 = vadd.f32 %v2430, %v2638
    %v2640 = vpop.f32.mrf.mxu0
    %v2641 = vpop.f32.mrf.mxu0
    %v2642 = vadd.f32 %v2433, %v2641
    %v2643 = vpop.f32.mrf.mxu0
    %2644 = vmatprep.mubr.bf16.mxu0 %v2139
    %2645 = vmatmul.mubr.bf16.gmra.mxu0 %v2138
    %v2646 = vpop.f32.mrf.mxu0
    %v2647 = vadd.f32 %v2438, %v2646
    %v2648 = vpop.f32.mrf.mxu0
    %v2649 = vpop.f32.mrf.mxu0
    %v2650 = vadd.f32 %v2441, %v2649
    %v2651 = vpop.f32.mrf.mxu0
    %2652 = vmatprep.mubr.bf16.mxu0 %v2144
    %2653 = vmatmul.mubr.bf16.gmra.mxu0 %v2143
    %v2654 = vpop.f32.mrf.mxu0
    %v2655 = vadd.f32 %v2446, %v2654
    %v2656 = vpop.f32.mrf.mxu0
    %v2657 = vpop.f32.mrf.mxu0
    %v2658 = vadd.f32 %v2449, %v2657
    %v2659 = vpop.f32.mrf.mxu0
    %2660 = vmatprep.mubr.bf16.mxu0 %v2149
    %2661 = vmatmul.mubr.bf16.gmra.mxu0 %v2148
    %v2662 = vpop.f32.mrf.mxu0
    %v2663 = vadd.f32 %v2454, %v2662
    %v2664 = vpop.f32.mrf.mxu0
    %v2665 = vpop.f32.mrf.mxu0
    %v2666 = vadd.f32 %v2457, %v2665
    %v2667 = vpop.f32.mrf.mxu0
    %2668 = vmatprep.mubr.bf16.mxu0 %v2154
    %2669 = vmatmul.mubr.bf16.gmra.mxu0 %v2153
    %v2670 = vpop.f32.mrf.mxu0
    %v2671 = vadd.f32 %v2462, %v2670
    %v2672 = vpop.f32.mrf.mxu0
    %v2673 = vpop.f32.mrf.mxu0
    %v2674 = vadd.f32 %v2465, %v2673
    %v2675 = vpop.f32.mrf.mxu0
    %2676 = vmatprep.mubr.bf16.mxu0 %v2159
    %2677 = vmatmul.mubr.bf16.gmra.mxu0 %v2158
    %v2678 = vpop.f32.mrf.mxu0
    %v2679 = vadd.f32 %v2470, %v2678
    %v2680 = vpop.f32.mrf.mxu0
    %v2681 = vpop.f32.mrf.mxu0
    %v2682 = vadd.f32 %v2473, %v2681
    %v2683 = vpop.f32.mrf.mxu0
    %2684 = vmatprep.mubr.bf16.mxu0 %v2164
    %2685 = vmatmul.mubr.bf16.gmra.mxu0 %v2163
    %v2686 = vpop.f32.mrf.mxu0
    %v2687 = vadd.f32 %v2478, %v2686
    %v2688 = vpop.f32.mrf.mxu0
    %v2689 = vpop.f32.mrf.mxu0
    %v2690 = vadd.f32 %v2481, %v2689
    %v2691 = vpop.f32.mrf.mxu0
    %2692 = vmatprep.mubr.bf16.mxu0 %v2169
    %2693 = vmatmul.mubr.bf16.gmra.mxu0 %v2168
    %v2694 = vpop.f32.mrf.mxu0
    %v2695 = vadd.f32 %v2486, %v2694
    %v2696 = vpop.f32.mrf.mxu0
    %v2697 = vpop.f32.mrf.mxu0
    %v2698 = vadd.f32 %v2489, %v2697
    %v2699 = vpop.f32.mrf.mxu0
    %2700 = vmatprep.mubr.bf16.mxu0 %v2174
    %2701 = vmatmul.mubr.bf16.gmra.mxu0 %v2173
    %v2702 = vpop.f32.mrf.mxu0
    %v2703 = vadd.f32 %v2494, %v2702
    %v2704 = vpop.f32.mrf.mxu0
    %v2705 = vpop.f32.mrf.mxu0
    %v2706 = vadd.f32 %v2497, %v2705
    %v2707 = vpop.f32.mrf.mxu0
    %2708 = vmatprep.mubr.bf16.mxu0 %v2179
    %2709 = vmatmul.mubr.bf16.gmra.mxu0 %v2178
    %v2710 = vpop.f32.mrf.mxu0
    %v2711 = vadd.f32 %v2502, %v2710
    %v2712 = vpop.f32.mrf.mxu0
    %v2713 = vpop.f32.mrf.mxu0
    %v2714 = vadd.f32 %v2505, %v2713
    %v2715 = vpop.f32.mrf.mxu0
    %2716 = vmatprep.mubr.bf16.mxu0 %v2184
    %2717 = vmatmul.mubr.bf16.gmra.mxu0 %v2183
    %v2718 = vpop.f32.mrf.mxu0
    %v2719 = vadd.f32 %v2510, %v2718
    %v2720 = vpop.f32.mrf.mxu0
    %v2721 = vpop.f32.mrf.mxu0
    %v2722 = vadd.f32 %v2513, %v2721
    %v2723 = vpop.f32.mrf.mxu0
    %2724 = vmatprep.mubr.bf16.mxu0 %v2189
    %2725 = vmatmul.mubr.bf16.gmra.mxu0 %v2188
    %v2726 = vpop.f32.mrf.mxu0
    %v2727 = vadd.f32 %v2518, %v2726
    %v2728 = vpop.f32.mrf.mxu0
    %v2729 = vpop.f32.mrf.mxu0
    %v2730 = vadd.f32 %v2521, %v2729
    %v2731 = vpop.f32.mrf.mxu0
    %2732 = vmatprep.mubr.bf16.mxu0 %v2194
    %2733 = vmatmul.mubr.bf16.gmra.mxu0 %v2193
    %v2734 = vpop.f32.mrf.mxu0
    %v2735 = vadd.f32 %v2526, %v2734
    %v2736 = vpop.f32.mrf.mxu0
    %v2737 = vpop.f32.mrf.mxu0
    %v2738 = vadd.f32 %v2529, %v2737
    %v2739 = vpop.f32.mrf.mxu0
    %2740 = vdwg.mxu0
    %2741 = vmatprep.subr.mxu0 0.0
    %2742 = vmatpush1.msra.mxu0 0.0
    %2743 = vmatprep.subr.mxu0 0.0
    %2744 = vmatpush1.msra.mxu0 0.0
    %2745 = vmatprep.subr.mxu0 0.0
    %2746 = vmatpush1.msra.mxu0 0.0
    %2747 = vmatprep.subr.mxu0 0.0
    %2748 = vmatpush1.msra.mxu0 0.0
    %2749 = vmatprep.subr.mxu0 0.0
    %2750 = vmatpush1.msra.mxu0 0.0
    %2751 = vmatprep.subr.mxu0 0.0
    %2752 = vmatpush1.msra.mxu0 0.0
    %2753 = vmatprep.subr.mxu0 0.0
    %2754 = vmatpush1.msra.mxu0 0.0
    %2755 = vmatprep.subr.mxu0 0.0
    %2756 = vmatpush1.msra.mxu0 0.0
    %2757 = vmatprep.subr.mxu0 0.0
    %2758 = vmatpush1.msra.mxu0 %v1709
    %2759 = vmatprep.subr.mxu0 0.0
    %2760 = vmatpush1.msra.mxu0 %v1708
    %2761 = vmatprep.subr.mxu0 0.0
    %2762 = vmatpush1.msra.mxu0 %v1707
    %2763 = vmatprep.subr.mxu0 0.0
    %2764 = vmatpush1.msra.mxu0 %v1706
    %2765 = vmatprep.subr.mxu0 0.0
    %2766 = vmatpush1.msra.mxu0 %v1705
    %2767 = vmatprep.subr.mxu0 0.0
    %2768 = vmatpush1.msra.mxu0 %v1704
    %2769 = vmatprep.subr.mxu0 0.0
    %2770 = vmatpush1.msra.mxu0 %v1703
    %2771 = vmatprep.subr.mxu0 0.0
    %2772 = vmatpush1.msra.mxu0 %v1702
    %2773 = vmatprep.subr.mxu0 0.0
    %2774 = vmatpush2.msra.mxu0 0.0
    %2775 = vmatprep.subr.mxu0 0.0
    %2776 = vmatpush2.msra.mxu0 0.0
    %2777 = vmatprep.subr.mxu0 0.0
    %2778 = vmatpush2.msra.mxu0 0.0
    %2779 = vmatprep.subr.mxu0 0.0
    %2780 = vmatpush2.msra.mxu0 0.0
    %2781 = vmatprep.subr.mxu0 0.0
    %2782 = vmatpush2.msra.mxu0 0.0
    %2783 = vmatprep.subr.mxu0 0.0
    %2784 = vmatpush2.msra.mxu0 0.0
    %2785 = vmatprep.subr.mxu0 0.0
    %2786 = vmatpush2.msra.mxu0 0.0
    %2787 = vmatprep.subr.mxu0 0.0
    %2788 = vmatpush2.msra.mxu0 0.0
    %2789 = vmatprep.subr.mxu0 0.0
    %2790 = vmatpush2.msra.mxu0 0.0
    %2791 = vmatprep.subr.mxu0 0.0
    %2792 = vmatpush2.msra.mxu0 0.0
    %2793 = vmatprep.subr.mxu0 0.0
    %2794 = vmatpush2.msra.mxu0 0.0
    %2795 = vmatprep.subr.mxu0 0.0
    %2796 = vmatpush2.msra.mxu0 0.0
    %2797 = vmatprep.subr.mxu0 0.0
    %2798 = vmatpush2.msra.mxu0 0.0
    %2799 = vmatprep.subr.mxu0 0.0
    %2800 = vmatpush2.msra.mxu0 0.0
    %2801 = vmatprep.subr.mxu0 0.0
    %2802 = vmatpush2.msra.mxu0 0.0
    %2803 = vmatprep.subr.mxu0 0.0
    %2804 = vmatpush2.msra.mxu0 0.0
    %2805 = vmatprep.mubr.bf16.mxu0 0
    %2806 = vmatmul.mubr.bf16.gmra.mxu0 %v2270
    %v2807 = vpop.f32.mrf.mxu0
    %v2808 = vadd.f32 %v2599, %v2807
    %v2809 = vpop.f32.mrf.mxu0
    %v2810 = vpop.f32.mrf.mxu0
    %v2811 = vadd.f32 %v2602, %v2810
    %v2812 = vpop.f32.mrf.mxu0
    %2813 = vmatprep.mubr.bf16.mxu0 0
    %2814 = vmatmul.mubr.bf16.gmra.mxu0 %v2273
    %v2815 = vpop.f32.mrf.mxu0
    %v2816 = vadd.f32 %v2607, %v2815
    %v2817 = vpop.f32.mrf.mxu0
    %v2818 = vpop.f32.mrf.mxu0
    %v2819 = vadd.f32 %v2610, %v2818
    %v2820 = vpop.f32.mrf.mxu0
    %2821 = vmatprep.mubr.bf16.mxu0 0
    %2822 = vmatmul.mubr.bf16.gmra.mxu0 %v2276
    %v2823 = vpop.f32.mrf.mxu0
    %v2824 = vadd.f32 %v2615, %v2823
    %v2825 = vpop.f32.mrf.mxu0
    %v2826 = vpop.f32.mrf.mxu0
    %v2827 = vadd.f32 %v2618, %v2826
    %v2828 = vpop.f32.mrf.mxu0
    %2829 = vmatprep.mubr.bf16.mxu0 0
    %2830 = vmatmul.mubr.bf16.gmra.mxu0 %v2279
    %v2831 = vpop.f32.mrf.mxu0
    %v2832 = vadd.f32 %v2623, %v2831
    %v2833 = vpop.f32.mrf.mxu0
    %v2834 = vpop.f32.mrf.mxu0
    %v2835 = vadd.f32 %v2626, %v2834
    %v2836 = vpop.f32.mrf.mxu0
    %2837 = vmatprep.mubr.bf16.mxu0 0
    %2838 = vmatmul.mubr.bf16.gmra.mxu0 %v2282
    %v2839 = vpop.f32.mrf.mxu0
    %v2840 = vadd.f32 %v2631, %v2839
    %v2841 = vpop.f32.mrf.mxu0
    %v2842 = vpop.f32.mrf.mxu0
    %v2843 = vadd.f32 %v2634, %v2842
    %v2844 = vpop.f32.mrf.mxu0
    %2845 = vmatprep.mubr.bf16.mxu0 0
    %2846 = vmatmul.mubr.bf16.gmra.mxu0 %v2285
    %v2847 = vpop.f32.mrf.mxu0
    %v2848 = vadd.f32 %v2639, %v2847
    %v2849 = vpop.f32.mrf.mxu0
    %v2850 = vpop.f32.mrf.mxu0
    %v2851 = vadd.f32 %v2642, %v2850
    %v2852 = vpop.f32.mrf.mxu0
    %2853 = vmatprep.mubr.bf16.mxu0 0
    %2854 = vmatmul.mubr.bf16.gmra.mxu0 %v2288
    %v2855 = vpop.f32.mrf.mxu0
    %v2856 = vadd.f32 %v2647, %v2855
    %v2857 = vpop.f32.mrf.mxu0
    %v2858 = vpop.f32.mrf.mxu0
    %v2859 = vadd.f32 %v2650, %v2858
    %v2860 = vpop.f32.mrf.mxu0
    %2861 = vmatprep.mubr.bf16.mxu0 0
    %2862 = vmatmul.mubr.bf16.gmra.mxu0 %v2291
    %v2863 = vpop.f32.mrf.mxu0
    %v2864 = vadd.f32 %v2655, %v2863
    %v2865 = vpop.f32.mrf.mxu0
    %v2866 = vpop.f32.mrf.mxu0
    %v2867 = vadd.f32 %v2658, %v2866
    %v2868 = vpop.f32.mrf.mxu0
    %2869 = vmatprep.mubr.bf16.mxu0 0
    %2870 = vmatmul.mubr.bf16.gmra.mxu0 %v2294
    %v2871 = vpop.f32.mrf.mxu0
    %v2872 = vadd.f32 %v2663, %v2871
    %v2873 = vpop.f32.mrf.mxu0
    %v2874 = vpop.f32.mrf.mxu0
    %v2875 = vadd.f32 %v2666, %v2874
    %v2876 = vpop.f32.mrf.mxu0
    %2877 = vmatprep.mubr.bf16.mxu0 0
    %2878 = vmatmul.mubr.bf16.gmra.mxu0 %v2297
    %v2879 = vpop.f32.mrf.mxu0
    %v2880 = vadd.f32 %v2671, %v2879
    %v2881 = vpop.f32.mrf.mxu0
    %v2882 = vpop.f32.mrf.mxu0
    %v2883 = vadd.f32 %v2674, %v2882
    %v2884 = vpop.f32.mrf.mxu0
    %2885 = vmatprep.mubr.bf16.mxu0 0
    %2886 = vmatmul.mubr.bf16.gmra.mxu0 %v2300
    %v2887 = vpop.f32.mrf.mxu0
    %v2888 = vadd.f32 %v2679, %v2887
    %v2889 = vpop.f32.mrf.mxu0
    %v2890 = vpop.f32.mrf.mxu0
    %v2891 = vadd.f32 %v2682, %v2890
    %v2892 = vpop.f32.mrf.mxu0
    %2893 = vmatprep.mubr.bf16.mxu0 0
    %2894 = vmatmul.mubr.bf16.gmra.mxu0 %v2303
    %v2895 = vpop.f32.mrf.mxu0
    %v2896 = vadd.f32 %v2687, %v2895
    %v2897 = vpop.f32.mrf.mxu0
    %v2898 = vpop.f32.mrf.mxu0
    %v2899 = vadd.f32 %v2690, %v2898
    %v2900 = vpop.f32.mrf.mxu0
    %2901 = vmatprep.mubr.bf16.mxu0 0
    %2902 = vmatmul.mubr.bf16.gmra.mxu0 %v2306
    %v2903 = vpop.f32.mrf.mxu0
    %v2904 = vadd.f32 %v2695, %v2903
    %v2905 = vpop.f32.mrf.mxu0
    %v2906 = vpop.f32.mrf.mxu0
    %v2907 = vadd.f32 %v2698, %v2906
    %v2908 = vpop.f32.mrf.mxu0
    %2909 = vmatprep.mubr.bf16.mxu0 0
    %2910 = vmatmul.mubr.bf16.gmra.mxu0 %v2309
    %v2911 = vpop.f32.mrf.mxu0
    %v2912 = vadd.f32 %v2703, %v2911
    %v2913 = vpop.f32.mrf.mxu0
    %v2914 = vpop.f32.mrf.mxu0
    %v2915 = vadd.f32 %v2706, %v2914
    %v2916 = vpop.f32.mrf.mxu0
    %2917 = vmatprep.mubr.bf16.mxu0 0
    %2918 = vmatmul.mubr.bf16.gmra.mxu0 %v2312
    %v2919 = vpop.f32.mrf.mxu0
    %v2920 = vadd.f32 %v2711, %v2919
    %v2921 = vpop.f32.mrf.mxu0
    %v2922 = vpop.f32.mrf.mxu0
    %v2923 = vadd.f32 %v2714, %v2922
    %v2924 = vpop.f32.mrf.mxu0
    %2925 = vmatprep.mubr.bf16.mxu0 0
    %2926 = vmatmul.mubr.bf16.gmra.mxu0 %v2315
    %v2927 = vpop.f32.mrf.mxu0
    %v2928 = vadd.f32 %v2719, %v2927
    %v2929 = vpop.f32.mrf.mxu0
    %v2930 = vpop.f32.mrf.mxu0
    %v2931 = vadd.f32 %v2722, %v2930
    %v2932 = vpop.f32.mrf.mxu0
    %2933 = vmatprep.mubr.bf16.mxu0 0
    %2934 = vmatmul.mubr.bf16.gmra.mxu0 %v2318
    %v2935 = vpop.f32.mrf.mxu0
    %v2936 = vadd.f32 %v2727, %v2935
    %v2937 = vpop.f32.mrf.mxu0
    %v2938 = vpop.f32.mrf.mxu0
    %v2939 = vadd.f32 %v2730, %v2938
    %v2940 = vpop.f32.mrf.mxu0
    %2941 = vmatprep.mubr.bf16.mxu0 0
    %2942 = vmatmul.mubr.bf16.gmra.mxu0 %v2321
    %v2943 = vpop.f32.mrf.mxu0
    %v2944 = vadd.f32 %v2735, %v2943
    %v2945 = vpop.f32.mrf.mxu0
    %v2946 = vpop.f32.mrf.mxu0
    %v2947 = vadd.f32 %v2738, %v2946
    %v2948 = vpop.f32.mrf.mxu0
    %2949 = vdwg.mxu0
    %v2950 = vadd.f32 %v31, %v2808
    %v2951 = vadd.f32 %v32, %v2811
    %v2952 = vadd.f32 %v33, %v2816
    %v2953 = vadd.f32 %v34, %v2819
    %v2954 = vadd.f32 %v35, %v2824
    %v2955 = vadd.f32 %v36, %v2827
    %v2956 = vadd.f32 %v37, %v2832
    %v2957 = vadd.f32 %v38, %v2835
    %v2958 = vadd.f32 %v39, %v2840
    %v2959 = vadd.f32 %v40, %v2843
    %v2960 = vadd.f32 %v41, %v2848
    %v2961 = vadd.f32 %v42, %v2851
    %v2962 = vadd.f32 %v43, %v2856
    %v2963 = vadd.f32 %v44, %v2859
    %v2964 = vadd.f32 %v45, %v2864
    %v2965 = vadd.f32 %v46, %v2867
    %v2966 = vadd.f32 %v47, %v2872
    %v2967 = vadd.f32 %v48, %v2875
    %v2968 = vadd.f32 %v49, %v2880
    %v2969 = vadd.f32 %v50, %v2883
    %v2970 = vadd.f32 %v51, %v2888
    %v2971 = vadd.f32 %v52, %v2891
    %v2972 = vadd.f32 %v53, %v2896
    %v2973 = vadd.f32 %v54, %v2899
    %v2974 = vadd.f32 %v55, %v2904
    %v2975 = vadd.f32 %v56, %v2907
    %v2976 = vadd.f32 %v57, %v2912
    %v2977 = vadd.f32 %v58, %v2915
    %v2978 = vadd.f32 %v59, %v2920
    %v2979 = vadd.f32 %v60, %v2923
    %v2980 = vadd.f32 %v61, %v2928
    %v2981 = vadd.f32 %v62, %v2931
    %v2982 = vadd.f32 %v63, %v2936
    %v2983 = vadd.f32 %v64, %v2939
    %v2984 = vadd.f32 %v65, %v2944
    %v2985 = vadd.f32 %v66, %v2947
    %v2986 = vld [vmem:[%s4] sm:$0xff]
    %v2987 = vld [vmem:[%s4 + $0x8] sm:$0xff]
    %v2988 = vld [vmem:[%s4 + $0x10] sm:$0xff]
    %v2989 = vld [vmem:[%s4 + $0x18] sm:$0xff]
    %v2990 = vld [vmem:[%s5] sm:$0x1]
    %v2992 = vlaneseq
    %v2993 = vshrl.u32 %v2992, 7
    %v2994 = vsub.s32 0, %v2993
    %v2995 = vrot.slane %v2990, %v2994
    %v2998 = vsel %vm823, %v2950, 0
    %v3001 = vsel %vm823, %v2951, 0
    %v3004 = vsel %vm823, %v2952, 0
    %v3007 = vsel %vm823, %v2953, 0
    %v3010 = vsel %vm823, %v2954, 0
    %v3013 = vsel %vm823, %v2955, 0
    %v3016 = vsel %vm823, %v2956, 0
    %v3019 = vsel %vm823, %v2957, 0
    %v3022 = vsel %vm823, %v2958, 0
    %v3025 = vsel %vm823, %v2959, 0
    %v3028 = vsel %vm823, %v2960, 0
    %v3031 = vsel %vm823, %v2961, 0
    %v3034 = vsel %vm823, %v2962, 0
    %v3037 = vsel %vm823, %v2963, 0
    %v3040 = vsel %vm823, %v2964, 0
    %v3043 = vsel %vm823, %v2965, 0
    %v3046 = vsel %vm823, %v2966, 0
    %v3049 = vsel %vm823, %v2967, 0
    %v3052 = vsel %vm823, %v2968, 0
    %v3055 = vsel %vm823, %v2969, 0
    %v3058 = vsel %vm823, %v2970, 0
    %v3061 = vsel %vm823, %v2971, 0
    %v3064 = vsel %vm823, %v2972, 0
    %v3067 = vsel %vm823, %v2973, 0
    %v3070 = vsel %vm823, %v2974, 0
    %v3073 = vsel %vm823, %v2975, 0
    %v3076 = vsel %vm823, %v2976, 0
    %v3079 = vsel %vm823, %v2977, 0
    %v3082 = vsel %vm823, %v2978, 0
    %v3085 = vsel %vm823, %v2979, 0
    %v3088 = vsel %vm823, %v2980, 0
    %v3091 = vsel %vm823, %v2981, 0
    %v3094 = vsel %vm823, %v2982, 0
    %v3097 = vsel %vm823, %v2983, 0
    %v3100 = vsel %vm823, %v2984, 0
    %v3103 = vsel %vm823, %v2985, 0
    %3105 = vmatprep.subr.mxu0 0.0
    %3106 = vmatpush1.msra.mxu0 0.0
    %3107 = vmatprep.subr.mxu0 0.0
    %3108 = vmatpush1.msra.mxu0 0.0
    %3109 = vmatprep.subr.mxu0 0.0
    %3110 = vmatpush1.msra.mxu0 0.0
    %3111 = vmatprep.subr.mxu0 0.0
    %3112 = vmatpush1.msra.mxu0 0.0
    %3113 = vmatprep.subr.mxu0 0.0
    %3114 = vmatpush1.msra.mxu0 0.0
    %3115 = vmatprep.subr.mxu0 0.0
    %3116 = vmatpush1.msra.mxu0 0.0
    %3117 = vmatprep.subr.mxu0 0.0
    %3118 = vmatpush1.msra.mxu0 0.0
    %3119 = vmatprep.subr.mxu0 0.0
    %3120 = vmatpush1.msra.mxu0 0.0
    %3121 = vmatprep.subr.mxu0 0.0
    %3122 = vmatpush1.msra.mxu0 0.0
    %3123 = vmatprep.subr.mxu0 0.0
    %3124 = vmatpush1.msra.mxu0 0.0
    %3125 = vmatprep.subr.mxu0 0.0
    %3126 = vmatpush1.msra.mxu0 0.0
    %3127 = vmatprep.subr.mxu0 0.0
    %3128 = vmatpush1.msra.mxu0 0.0
    %3129 = vmatprep.subr.mxu0 0.0
    %3130 = vmatpush1.msra.mxu0 %v2989
    %3131 = vmatprep.subr.mxu0 0.0
    %3132 = vmatpush1.msra.mxu0 %v2988
    %3133 = vmatprep.subr.mxu0 0.0
    %3134 = vmatpush1.msra.mxu0 %v2987
    %3135 = vmatprep.subr.mxu0 0.0
    %3136 = vmatpush1.msra.mxu0 %v2986
    %3137 = vmatprep.subr.mxu0 0.0
    %3138 = vmatpush2.msra.mxu0 0.0
    %3139 = vmatprep.subr.mxu0 0.0
    %3140 = vmatpush2.msra.mxu0 0.0
    %3141 = vmatprep.subr.mxu0 0.0
    %3142 = vmatpush2.msra.mxu0 0.0
    %3143 = vmatprep.subr.mxu0 0.0
    %3144 = vmatpush2.msra.mxu0 0.0
    %3145 = vmatprep.subr.mxu0 0.0
    %3146 = vmatpush2.msra.mxu0 0.0
    %3147 = vmatprep.subr.mxu0 0.0
    %3148 = vmatpush2.msra.mxu0 0.0
    %3149 = vmatprep.subr.mxu0 0.0
    %3150 = vmatpush2.msra.mxu0 0.0
    %3151 = vmatprep.subr.mxu0 0.0
    %3152 = vmatpush2.msra.mxu0 0.0
    %3153 = vmatprep.subr.mxu0 0.0
    %3154 = vmatpush2.msra.mxu0 0.0
    %3155 = vmatprep.subr.mxu0 0.0
    %3156 = vmatpush2.msra.mxu0 0.0
    %3157 = vmatprep.subr.mxu0 0.0
    %3158 = vmatpush2.msra.mxu0 0.0
    %3159 = vmatprep.subr.mxu0 0.0
    %3160 = vmatpush2.msra.mxu0 0.0
    %3161 = vmatprep.subr.mxu0 0.0
    %3162 = vmatpush2.msra.mxu0 0.0
    %3163 = vmatprep.subr.mxu0 0.0
    %3164 = vmatpush2.msra.mxu0 0.0
    %3165 = vmatprep.subr.mxu0 0.0
    %3166 = vmatpush2.msra.mxu0 0.0
    %3167 = vmatprep.subr.mxu0 0.0
    %3168 = vmatpush2.msra.mxu0 0.0
    %3169 = vmatprep.mubr.f32.mxu0 0.0
    %3170 = vmatmul.mubr.f32.gmra.mxu0 %v2998
    %v3171 = vpop.f32.mrf.mxu0
    %v3172 = vadd.f32 %v2995, %v3171
    %v3173 = vpop.f32.mrf.mxu0
    %3174 = vmatprep.mubr.f32.mxu0 0.0
    %3175 = vmatmul.mubr.f32.gmra.mxu0 %v3001
    %v3176 = vpop.f32.mrf.mxu0
    %v3177 = vadd.f32 %v2995, %v3176
    %v3178 = vpop.f32.mrf.mxu0
    %3179 = vmatprep.mubr.f32.mxu0 0.0
    %3180 = vmatmul.mubr.f32.gmra.mxu0 %v3004
    %v3181 = vpop.f32.mrf.mxu0
    %v3182 = vadd.f32 %v2995, %v3181
    %v3183 = vpop.f32.mrf.mxu0
    %3184 = vmatprep.mubr.f32.mxu0 0.0
    %3185 = vmatmul.mubr.f32.gmra.mxu0 %v3007
    %v3186 = vpop.f32.mrf.mxu0
    %v3187 = vadd.f32 %v2995, %v3186
    %v3188 = vpop.f32.mrf.mxu0
    %3189 = vmatprep.mubr.f32.mxu0 0.0
    %3190 = vmatmul.mubr.f32.gmra.mxu0 %v3010
    %v3191 = vpop.f32.mrf.mxu0
    %v3192 = vadd.f32 %v2995, %v3191
    %v3193 = vpop.f32.mrf.mxu0
    %3194 = vmatprep.mubr.f32.mxu0 0.0
    %3195 = vmatmul.mubr.f32.gmra.mxu0 %v3013
    %v3196 = vpop.f32.mrf.mxu0
    %v3197 = vadd.f32 %v2995, %v3196
    %v3198 = vpop.f32.mrf.mxu0
    %3199 = vmatprep.mubr.f32.mxu0 0.0
    %3200 = vmatmul.mubr.f32.gmra.mxu0 %v3016
    %v3201 = vpop.f32.mrf.mxu0
    %v3202 = vadd.f32 %v2995, %v3201
    %v3203 = vpop.f32.mrf.mxu0
    %3204 = vmatprep.mubr.f32.mxu0 0.0
    %3205 = vmatmul.mubr.f32.gmra.mxu0 %v3019
    %v3206 = vpop.f32.mrf.mxu0
    %v3207 = vadd.f32 %v2995, %v3206
    %v3208 = vpop.f32.mrf.mxu0
    %3209 = vmatprep.mubr.f32.mxu0 0.0
    %3210 = vmatmul.mubr.f32.gmra.mxu0 %v3022
    %v3211 = vpop.f32.mrf.mxu0
    %v3212 = vadd.f32 %v2995, %v3211
    %v3213 = vpop.f32.mrf.mxu0
    %3214 = vmatprep.mubr.f32.mxu0 0.0
    %3215 = vmatmul.mubr.f32.gmra.mxu0 %v3025
    %v3216 = vpop.f32.mrf.mxu0
    %v3217 = vadd.f32 %v2995, %v3216
    %v3218 = vpop.f32.mrf.mxu0
    %3219 = vmatprep.mubr.f32.mxu0 0.0
    %3220 = vmatmul.mubr.f32.gmra.mxu0 %v3028
    %v3221 = vpop.f32.mrf.mxu0
    %v3222 = vadd.f32 %v2995, %v3221
    %v3223 = vpop.f32.mrf.mxu0
    %3224 = vmatprep.mubr.f32.mxu0 0.0
    %3225 = vmatmul.mubr.f32.gmra.mxu0 %v3031
    %v3226 = vpop.f32.mrf.mxu0
    %v3227 = vadd.f32 %v2995, %v3226
    %v3228 = vpop.f32.mrf.mxu0
    %3229 = vmatprep.mubr.f32.mxu0 0.0
    %3230 = vmatmul.mubr.f32.gmra.mxu0 %v3034
    %v3231 = vpop.f32.mrf.mxu0
    %v3232 = vadd.f32 %v2995, %v3231
    %v3233 = vpop.f32.mrf.mxu0
    %3234 = vmatprep.mubr.f32.mxu0 0.0
    %3235 = vmatmul.mubr.f32.gmra.mxu0 %v3037
    %v3236 = vpop.f32.mrf.mxu0
    %v3237 = vadd.f32 %v2995, %v3236
    %v3238 = vpop.f32.mrf.mxu0
    %3239 = vmatprep.mubr.f32.mxu0 0.0
    %3240 = vmatmul.mubr.f32.gmra.mxu0 %v3040
    %v3241 = vpop.f32.mrf.mxu0
    %v3242 = vadd.f32 %v2995, %v3241
    %v3243 = vpop.f32.mrf.mxu0
    %3244 = vmatprep.mubr.f32.mxu0 0.0
    %3245 = vmatmul.mubr.f32.gmra.mxu0 %v3043
    %v3246 = vpop.f32.mrf.mxu0
    %v3247 = vadd.f32 %v2995, %v3246
    %v3248 = vpop.f32.mrf.mxu0
    %3249 = vmatprep.mubr.f32.mxu0 0.0
    %3250 = vmatmul.mubr.f32.gmra.mxu0 %v3046
    %v3251 = vpop.f32.mrf.mxu0
    %v3252 = vadd.f32 %v2995, %v3251
    %v3253 = vpop.f32.mrf.mxu0
    %3254 = vmatprep.mubr.f32.mxu0 0.0
    %3255 = vmatmul.mubr.f32.gmra.mxu0 %v3049
    %v3256 = vpop.f32.mrf.mxu0
    %v3257 = vadd.f32 %v2995, %v3256
    %v3258 = vpop.f32.mrf.mxu0
    %3259 = vmatprep.mubr.f32.mxu0 0.0
    %3260 = vmatmul.mubr.f32.gmra.mxu0 %v3052
    %v3261 = vpop.f32.mrf.mxu0
    %v3262 = vadd.f32 %v2995, %v3261
    %v3263 = vpop.f32.mrf.mxu0
    %3264 = vmatprep.mubr.f32.mxu0 0.0
    %3265 = vmatmul.mubr.f32.gmra.mxu0 %v3055
    %v3266 = vpop.f32.mrf.mxu0
    %v3267 = vadd.f32 %v2995, %v3266
    %v3268 = vpop.f32.mrf.mxu0
    %3269 = vmatprep.mubr.f32.mxu0 0.0
    %3270 = vmatmul.mubr.f32.gmra.mxu0 %v3058
    %v3271 = vpop.f32.mrf.mxu0
    %v3272 = vadd.f32 %v2995, %v3271
    %v3273 = vpop.f32.mrf.mxu0
    %3274 = vmatprep.mubr.f32.mxu0 0.0
    %3275 = vmatmul.mubr.f32.gmra.mxu0 %v3061
    %v3276 = vpop.f32.mrf.mxu0
    %v3277 = vadd.f32 %v2995, %v3276
    %v3278 = vpop.f32.mrf.mxu0
    %3279 = vmatprep.mubr.f32.mxu0 0.0
    %3280 = vmatmul.mubr.f32.gmra.mxu0 %v3064
    %v3281 = vpop.f32.mrf.mxu0
    %v3282 = vadd.f32 %v2995, %v3281
    %v3283 = vpop.f32.mrf.mxu0
    %3284 = vmatprep.mubr.f32.mxu0 0.0
    %3285 = vmatmul.mubr.f32.gmra.mxu0 %v3067
    %v3286 = vpop.f32.mrf.mxu0
    %v3287 = vadd.f32 %v2995, %v3286
    %v3288 = vpop.f32.mrf.mxu0
    %3289 = vmatprep.mubr.f32.mxu0 0.0
    %3290 = vmatmul.mubr.f32.gmra.mxu0 %v3070
    %v3291 = vpop.f32.mrf.mxu0
    %v3292 = vadd.f32 %v2995, %v3291
    %v3293 = vpop.f32.mrf.mxu0
    %3294 = vmatprep.mubr.f32.mxu0 0.0
    %3295 = vmatmul.mubr.f32.gmra.mxu0 %v3073
    %v3296 = vpop.f32.mrf.mxu0
    %v3297 = vadd.f32 %v2995, %v3296
    %v3298 = vpop.f32.mrf.mxu0
    %3299 = vmatprep.mubr.f32.mxu0 0.0
    %3300 = vmatmul.mubr.f32.gmra.mxu0 %v3076
    %v3301 = vpop.f32.mrf.mxu0
    %v3302 = vadd.f32 %v2995, %v3301
    %v3303 = vpop.f32.mrf.mxu0
    %3304 = vmatprep.mubr.f32.mxu0 0.0
    %3305 = vmatmul.mubr.f32.gmra.mxu0 %v3079
    %v3306 = vpop.f32.mrf.mxu0
    %v3307 = vadd.f32 %v2995, %v3306
    %v3308 = vpop.f32.mrf.mxu0
    %3309 = vmatprep.mubr.f32.mxu0 0.0
    %3310 = vmatmul.mubr.f32.gmra.mxu0 %v3082
    %v3311 = vpop.f32.mrf.mxu0
    %v3312 = vadd.f32 %v2995, %v3311
    %v3313 = vpop.f32.mrf.mxu0
    %3314 = vmatprep.mubr.f32.mxu0 0.0
    %3315 = vmatmul.mubr.f32.gmra.mxu0 %v3085
    %v3316 = vpop.f32.mrf.mxu0
    %v3317 = vadd.f32 %v2995, %v3316
    %v3318 = vpop.f32.mrf.mxu0
    %3319 = vmatprep.mubr.f32.mxu0 0.0
    %3320 = vmatmul.mubr.f32.gmra.mxu0 %v3088
    %v3321 = vpop.f32.mrf.mxu0
    %v3322 = vadd.f32 %v2995, %v3321
    %v3323 = vpop.f32.mrf.mxu0
    %3324 = vmatprep.mubr.f32.mxu0 0.0
    %3325 = vmatmul.mubr.f32.gmra.mxu0 %v3091
    %v3326 = vpop.f32.mrf.mxu0
    %v3327 = vadd.f32 %v2995, %v3326
    %v3328 = vpop.f32.mrf.mxu0
    %3329 = vmatprep.mubr.f32.mxu0 0.0
    %3330 = vmatmul.mubr.f32.gmra.mxu0 %v3094
    %v3331 = vpop.f32.mrf.mxu0
    %v3332 = vadd.f32 %v2995, %v3331
    %v3333 = vpop.f32.mrf.mxu0
    %3334 = vmatprep.mubr.f32.mxu0 0.0
    %3335 = vmatmul.mubr.f32.gmra.mxu0 %v3097
    %v3336 = vpop.f32.mrf.mxu0
    %v3337 = vadd.f32 %v2995, %v3336
    %v3338 = vpop.f32.mrf.mxu0
    %3339 = vmatprep.mubr.f32.mxu0 0.0
    %3340 = vmatmul.mubr.f32.gmra.mxu0 %v3100
    %v3341 = vpop.f32.mrf.mxu0
    %v3342 = vadd.f32 %v2995, %v3341
    %v3343 = vpop.f32.mrf.mxu0
    %3344 = vmatprep.mubr.f32.mxu0 0.0
    %3345 = vmatmul.mubr.f32.gmra.mxu0 %v3103
    %v3346 = vpop.f32.mrf.mxu0
    %v3347 = vadd.f32 %v2995, %v3346
    %v3348 = vpop.f32.mrf.mxu0
    %3349 = vdwg.mxu0
    %v3350 = vmax.f32 %v3172, 0.0
    %v3351 = vmax.f32 %v3177, 0.0
    %v3352 = vmax.f32 %v3182, 0.0
    %v3353 = vmax.f32 %v3187, 0.0
    %v3354 = vmax.f32 %v3192, 0.0
    %v3355 = vmax.f32 %v3197, 0.0
    %v3356 = vmax.f32 %v3202, 0.0
    %v3357 = vmax.f32 %v3207, 0.0
    %v3358 = vmax.f32 %v3212, 0.0
    %v3359 = vmax.f32 %v3217, 0.0
    %v3360 = vmax.f32 %v3222, 0.0
    %v3361 = vmax.f32 %v3227, 0.0
    %v3362 = vmax.f32 %v3232, 0.0
    %v3363 = vmax.f32 %v3237, 0.0
    %v3364 = vmax.f32 %v3242, 0.0
    %v3365 = vmax.f32 %v3247, 0.0
    %v3366 = vmax.f32 %v3252, 0.0
    %v3367 = vmax.f32 %v3257, 0.0
    %v3368 = vmax.f32 %v3262, 0.0
    %v3369 = vmax.f32 %v3267, 0.0
    %v3370 = vmax.f32 %v3272, 0.0
    %v3371 = vmax.f32 %v3277, 0.0
    %v3372 = vmax.f32 %v3282, 0.0
    %v3373 = vmax.f32 %v3287, 0.0
    %v3374 = vmax.f32 %v3292, 0.0
    %v3375 = vmax.f32 %v3297, 0.0
    %v3376 = vmax.f32 %v3302, 0.0
    %v3377 = vmax.f32 %v3307, 0.0
    %v3378 = vmax.f32 %v3312, 0.0
    %v3379 = vmax.f32 %v3317, 0.0
    %v3380 = vmax.f32 %v3322, 0.0
    %v3381 = vmax.f32 %v3327, 0.0
    %v3382 = vmax.f32 %v3332, 0.0
    %v3383 = vmax.f32 %v3337, 0.0
    %v3384 = vmax.f32 %v3342, 0.0
    %v3385 = vmax.f32 %v3347, 0.0
    %v3386 = vsel %vm2268, %v3350, 0.0
    %v3387 = vsel %vm2268, %v3351, 0.0
    %v3388 = vadd.f32 %v3386, %v3387
    %v3389 = vrot.slane %v3388, 4
    %v3390 = vadd.f32 %v3388, %v3389
    %v3391 = vrot.slane %v3390, 2
    %v3392 = vadd.f32 %v3390, %v3391
    %v3393 = vrot.slane %v3392, 1
    %v3394 = vadd.f32 %v3392, %v3393
    %v3395 = vsel %vm2268, %v3352, 0.0
    %v3396 = vsel %vm2268, %v3353, 0.0
    %v3397 = vadd.f32 %v3395, %v3396
    %v3398 = vrot.slane %v3397, 4
    %v3399 = vadd.f32 %v3397, %v3398
    %v3400 = vrot.slane %v3399, 2
    %v3401 = vadd.f32 %v3399, %v3400
    %v3402 = vrot.slane %v3401, 1
    %v3403 = vadd.f32 %v3401, %v3402
    %v3404 = vsel %vm2268, %v3354, 0.0
    %v3405 = vsel %vm2268, %v3355, 0.0
    %v3406 = vadd.f32 %v3404, %v3405
    %v3407 = vrot.slane %v3406, 4
    %v3408 = vadd.f32 %v3406, %v3407
    %v3409 = vrot.slane %v3408, 2
    %v3410 = vadd.f32 %v3408, %v3409
    %v3411 = vrot.slane %v3410, 1
    %v3412 = vadd.f32 %v3410, %v3411
    %v3413 = vsel %vm2268, %v3356, 0.0
    %v3414 = vsel %vm2268, %v3357, 0.0
    %v3415 = vadd.f32 %v3413, %v3414
    %v3416 = vrot.slane %v3415, 4
    %v3417 = vadd.f32 %v3415, %v3416
    %v3418 = vrot.slane %v3417, 2
    %v3419 = vadd.f32 %v3417, %v3418
    %v3420 = vrot.slane %v3419, 1
    %v3421 = vadd.f32 %v3419, %v3420
    %v3422 = vsel %vm2268, %v3358, 0.0
    %v3423 = vsel %vm2268, %v3359, 0.0
    %v3424 = vadd.f32 %v3422, %v3423
    %v3425 = vrot.slane %v3424, 4
    %v3426 = vadd.f32 %v3424, %v3425
    %v3427 = vrot.slane %v3426, 2
    %v3428 = vadd.f32 %v3426, %v3427
    %v3429 = vrot.slane %v3428, 1
    %v3430 = vadd.f32 %v3428, %v3429
    %v3431 = vsel %vm2268, %v3360, 0.0
    %v3432 = vsel %vm2268, %v3361, 0.0
    %v3433 = vadd.f32 %v3431, %v3432
    %v3434 = vrot.slane %v3433, 4
    %v3435 = vadd.f32 %v3433, %v3434
    %v3436 = vrot.slane %v3435, 2
    %v3437 = vadd.f32 %v3435, %v3436
    %v3438 = vrot.slane %v3437, 1
    %v3439 = vadd.f32 %v3437, %v3438
    %v3440 = vsel %vm2268, %v3362, 0.0
    %v3441 = vsel %vm2268, %v3363, 0.0
    %v3442 = vadd.f32 %v3440, %v3441
    %v3443 = vrot.slane %v3442, 4
    %v3444 = vadd.f32 %v3442, %v3443
    %v3445 = vrot.slane %v3444, 2
    %v3446 = vadd.f32 %v3444, %v3445
    %v3447 = vrot.slane %v3446, 1
    %v3448 = vadd.f32 %v3446, %v3447
    %v3449 = vsel %vm2268, %v3364, 0.0
    %v3450 = vsel %vm2268, %v3365, 0.0
    %v3451 = vadd.f32 %v3449, %v3450
    %v3452 = vrot.slane %v3451, 4
    %v3453 = vadd.f32 %v3451, %v3452
    %v3454 = vrot.slane %v3453, 2
    %v3455 = vadd.f32 %v3453, %v3454
    %v3456 = vrot.slane %v3455, 1
    %v3457 = vadd.f32 %v3455, %v3456
    %v3458 = vsel %vm2268, %v3366, 0.0
    %v3459 = vsel %vm2268, %v3367, 0.0
    %v3460 = vadd.f32 %v3458, %v3459
    %v3461 = vrot.slane %v3460, 4
    %v3462 = vadd.f32 %v3460, %v3461
    %v3463 = vrot.slane %v3462, 2
    %v3464 = vadd.f32 %v3462, %v3463
    %v3465 = vrot.slane %v3464, 1
    %v3466 = vadd.f32 %v3464, %v3465
    %v3467 = vsel %vm2268, %v3368, 0.0
    %v3468 = vsel %vm2268, %v3369, 0.0
    %v3469 = vadd.f32 %v3467, %v3468
    %v3470 = vrot.slane %v3469, 4
    %v3471 = vadd.f32 %v3469, %v3470
    %v3472 = vrot.slane %v3471, 2
    %v3473 = vadd.f32 %v3471, %v3472
    %v3474 = vrot.slane %v3473, 1
    %v3475 = vadd.f32 %v3473, %v3474
    %v3476 = vsel %vm2268, %v3370, 0.0
    %v3477 = vsel %vm2268, %v3371, 0.0
    %v3478 = vadd.f32 %v3476, %v3477
    %v3479 = vrot.slane %v3478, 4
    %v3480 = vadd.f32 %v3478, %v3479
    %v3481 = vrot.slane %v3480, 2
    %v3482 = vadd.f32 %v3480, %v3481
    %v3483 = vrot.slane %v3482, 1
    %v3484 = vadd.f32 %v3482, %v3483
    %v3485 = vsel %vm2268, %v3372, 0.0
    %v3486 = vsel %vm2268, %v3373, 0.0
    %v3487 = vadd.f32 %v3485, %v3486
    %v3488 = vrot.slane %v3487, 4
    %v3489 = vadd.f32 %v3487, %v3488
    %v3490 = vrot.slane %v3489, 2
    %v3491 = vadd.f32 %v3489, %v3490
    %v3492 = vrot.slane %v3491, 1
    %v3493 = vadd.f32 %v3491, %v3492
    %v3494 = vsel %vm2268, %v3374, 0.0
    %v3495 = vsel %vm2268, %v3375, 0.0
    %v3496 = vadd.f32 %v3494, %v3495
    %v3497 = vrot.slane %v3496, 4
    %v3498 = vadd.f32 %v3496, %v3497
    %v3499 = vrot.slane %v3498, 2
    %v3500 = vadd.f32 %v3498, %v3499
    %v3501 = vrot.slane %v3500, 1
    %v3502 = vadd.f32 %v3500, %v3501
    %v3503 = vsel %vm2268, %v3376, 0.0
    %v3504 = vsel %vm2268, %v3377, 0.0
    %v3505 = vadd.f32 %v3503, %v3504
    %v3506 = vrot.slane %v3505, 4
    %v3507 = vadd.f32 %v3505, %v3506
    %v3508 = vrot.slane %v3507, 2
    %v3509 = vadd.f32 %v3507, %v3508
    %v3510 = vrot.slane %v3509, 1
    %v3511 = vadd.f32 %v3509, %v3510
    %v3512 = vsel %vm2268, %v3378, 0.0
    %v3513 = vsel %vm2268, %v3379, 0.0
    %v3514 = vadd.f32 %v3512, %v3513
    %v3515 = vrot.slane %v3514, 4
    %v3516 = vadd.f32 %v3514, %v3515
    %v3517 = vrot.slane %v3516, 2
    %v3518 = vadd.f32 %v3516, %v3517
    %v3519 = vrot.slane %v3518, 1
    %v3520 = vadd.f32 %v3518, %v3519
    %v3521 = vsel %vm2268, %v3380, 0.0
    %v3522 = vsel %vm2268, %v3381, 0.0
    %v3523 = vadd.f32 %v3521, %v3522
    %v3524 = vrot.slane %v3523, 4
    %v3525 = vadd.f32 %v3523, %v3524
    %v3526 = vrot.slane %v3525, 2
    %v3527 = vadd.f32 %v3525, %v3526
    %v3528 = vrot.slane %v3527, 1
    %v3529 = vadd.f32 %v3527, %v3528
    %v3530 = vsel %vm2268, %v3382, 0.0
    %v3531 = vsel %vm2268, %v3383, 0.0
    %v3532 = vadd.f32 %v3530, %v3531
    %v3533 = vrot.slane %v3532, 4
    %v3534 = vadd.f32 %v3532, %v3533
    %v3535 = vrot.slane %v3534, 2
    %v3536 = vadd.f32 %v3534, %v3535
    %v3537 = vrot.slane %v3536, 1
    %v3538 = vadd.f32 %v3536, %v3537
    %v3539 = vsel %vm2268, %v3384, 0.0
    %v3540 = vsel %vm2268, %v3385, 0.0
    %v3541 = vadd.f32 %v3539, %v3540
    %v3542 = vrot.slane %v3541, 4
    %v3543 = vadd.f32 %v3541, %v3542
    %v3544 = vrot.slane %v3543, 2
    %v3545 = vadd.f32 %v3543, %v3544
    %v3546 = vrot.slane %v3545, 1
    %v3547 = vadd.f32 %v3545, %v3546
    %v3548 = vrcp.pop 16.0
    %v3549 = vmul.f32 %v3394, %v3548
    %v3550 = vmul.f32 %v3403, %v3548
    %v3551 = vmul.f32 %v3412, %v3548
    %v3552 = vmul.f32 %v3421, %v3548
    %v3553 = vmul.f32 %v3430, %v3548
    %v3554 = vmul.f32 %v3439, %v3548
    %v3555 = vmul.f32 %v3448, %v3548
    %v3556 = vmul.f32 %v3457, %v3548
    %v3557 = vmul.f32 %v3466, %v3548
    %v3558 = vmul.f32 %v3475, %v3548
    %v3559 = vmul.f32 %v3484, %v3548
    %v3560 = vmul.f32 %v3493, %v3548
    %v3561 = vmul.f32 %v3502, %v3548
    %v3562 = vmul.f32 %v3511, %v3548
    %v3563 = vmul.f32 %v3520, %v3548
    %v3564 = vmul.f32 %v3529, %v3548
    %v3565 = vmul.f32 %v3538, %v3548
    %v3566 = vmul.f32 %v3547, %v3548
    %v3567 = vld [vmem:[%s6] sm:$0xff]
    %v3568 = vld [vmem:[%s6 + $0x8] sm:$0xff]
    %v3569 = vld [vmem:[%s6 + $0x10] sm:$0xff]
    %v3570 = vld [vmem:[%s6 + $0x18] sm:$0xff]
    %v3571 = vld [vmem:[%s6 + $0x20] sm:$0xff]
    %v3572 = vld [vmem:[%s6 + $0x28] sm:$0xff]
    %v3573 = vld [vmem:[%s6 + $0x30] sm:$0xff]
    %v3574 = vld [vmem:[%s6 + $0x38] sm:$0xff]
    %v3575 = vld [vmem:[%s7] sm:$0x1]
    %v3577 = vlaneseq
    %v3578 = vshrl.u32 %v3577, 7
    %v3579 = vsub.s32 0, %v3578
    %v3580 = vrot.slane %v3575, %v3579
    %vm3600 = vcmask 1041409
    %v3601 = vsel %vm3600, %v3550, %v3549
    %vm3602 = vcmask 1042434
    %v3603 = vsel %vm3602, %v3551, %v3601
    %vm3604 = vcmask 1043459
    %v3605 = vsel %vm3604, %v3552, %v3603
    %vm3606 = vcmask 1044484
    %v3607 = vsel %vm3606, %v3553, %v3605
    %vm3608 = vcmask 1045509
    %v3609 = vsel %vm3608, %v3554, %v3607
    %vm3610 = vcmask 1046534
    %v3611 = vsel %vm3610, %v3555, %v3609
    %vm3612 = vcmask 1047559
    %v3613 = vsel %vm3612, %v3556, %v3611
    %v3614 = vsel %vm3600, %v3558, %v3557
    %v3615 = vsel %vm3602, %v3559, %v3614
    %v3616 = vsel %vm3604, %v3560, %v3615
    %v3617 = vsel %vm3606, %v3561, %v3616
    %v3618 = vsel %vm3608, %v3562, %v3617
    %v3619 = vsel %vm3610, %v3563, %v3618
    %v3620 = vsel %vm3612, %v3564, %v3619
    %v3621 = vsel %vm3600, %v3566, %v3565
    %v3622 = vsel %vm2268, %v3613, 0
    %v3624 = vsel %vm2268, %v3620, 0
    %v3626 = vsel %vm2268, %v3621, 0
    %3628 = vmatprep.subr.mxu0 0.0
    %3629 = vmatpush1.msra.mxu0 0.0
    %3630 = vmatprep.subr.mxu0 0.0
    %3631 = vmatpush1.msra.mxu0 0.0
    %3632 = vmatprep.subr.mxu0 0.0
    %3633 = vmatpush1.msra.mxu0 0.0
    %3634 = vmatprep.subr.mxu0 0.0
    %3635 = vmatpush1.msra.mxu0 0.0
    %3636 = vmatprep.subr.mxu0 0.0
    %3637 = vmatpush1.msra.mxu0 0.0
    %3638 = vmatprep.subr.mxu0 0.0
    %3639 = vmatpush1.msra.mxu0 0.0
    %3640 = vmatprep.subr.mxu0 0.0
    %3641 = vmatpush1.msra.mxu0 0.0
    %3642 = vmatprep.subr.mxu0 0.0
    %3643 = vmatpush1.msra.mxu0 0.0
    %3644 = vmatprep.subr.mxu0 0.0
    %3645 = vmatpush1.msra.mxu0 %v3574
    %3646 = vmatprep.subr.mxu0 0.0
    %3647 = vmatpush1.msra.mxu0 %v3573
    %3648 = vmatprep.subr.mxu0 0.0
    %3649 = vmatpush1.msra.mxu0 %v3572
    %3650 = vmatprep.subr.mxu0 0.0
    %3651 = vmatpush1.msra.mxu0 %v3571
    %3652 = vmatprep.subr.mxu0 0.0
    %3653 = vmatpush1.msra.mxu0 %v3570
    %3654 = vmatprep.subr.mxu0 0.0
    %3655 = vmatpush1.msra.mxu0 %v3569
    %3656 = vmatprep.subr.mxu0 0.0
    %3657 = vmatpush1.msra.mxu0 %v3568
    %3658 = vmatprep.subr.mxu0 0.0
    %3659 = vmatpush1.msra.mxu0 %v3567
    %3660 = vmatprep.subr.mxu0 0.0
    %3661 = vmatpush2.msra.mxu0 0.0
    %3662 = vmatprep.subr.mxu0 0.0
    %3663 = vmatpush2.msra.mxu0 0.0
    %3664 = vmatprep.subr.mxu0 0.0
    %3665 = vmatpush2.msra.mxu0 0.0
    %3666 = vmatprep.subr.mxu0 0.0
    %3667 = vmatpush2.msra.mxu0 0.0
    %3668 = vmatprep.subr.mxu0 0.0
    %3669 = vmatpush2.msra.mxu0 0.0
    %3670 = vmatprep.subr.mxu0 0.0
    %3671 = vmatpush2.msra.mxu0 0.0
    %3672 = vmatprep.subr.mxu0 0.0
    %3673 = vmatpush2.msra.mxu0 0.0
    %3674 = vmatprep.subr.mxu0 0.0
    %3675 = vmatpush2.msra.mxu0 0.0
    %3676 = vmatprep.subr.mxu0 0.0
    %3677 = vmatpush2.msra.mxu0 0.0
    %3678 = vmatprep.subr.mxu0 0.0
    %3679 = vmatpush2.msra.mxu0 0.0
    %3680 = vmatprep.subr.mxu0 0.0
    %3681 = vmatpush2.msra.mxu0 0.0
    %3682 = vmatprep.subr.mxu0 0.0
    %3683 = vmatpush2.msra.mxu0 0.0
    %3684 = vmatprep.subr.mxu0 0.0
    %3685 = vmatpush2.msra.mxu0 0.0
    %3686 = vmatprep.subr.mxu0 0.0
    %3687 = vmatpush2.msra.mxu0 0.0
    %3688 = vmatprep.subr.mxu0 0.0
    %3689 = vmatpush2.msra.mxu0 0.0
    %3690 = vmatprep.subr.mxu0 0.0
    %3691 = vmatpush2.msra.mxu0 0.0
    %3692 = vmatprep.mubr.f32.mxu0 0.0
    %3693 = vmatmul.mubr.f32.gmra.mxu0 %v3622
    %v3694 = vpop.f32.mrf.mxu0
    %v3695 = vadd.f32 %v3580, %v3694
    %v3696 = vpop.f32.mrf.mxu0
    %3697 = vmatprep.mubr.f32.mxu0 0.0
    %3698 = vmatmul.mubr.f32.gmra.mxu0 %v3624
    %v3699 = vpop.f32.mrf.mxu0
    %v3700 = vadd.f32 %v3580, %v3699
    %v3701 = vpop.f32.mrf.mxu0
    %3702 = vmatprep.mubr.f32.mxu0 0.0
    %3703 = vmatmul.mubr.f32.gmra.mxu0 %v3626
    %v3704 = vpop.f32.mrf.mxu0
    %v3705 = vadd.f32 %v3580, %v3704
    %v3706 = vpop.f32.mrf.mxu0
    %3707 = vdwg.mxu0
    %3708 = vst [vmem:[#allocation2] sm:$0xff] %v3695
    %3709 = vst [vmem:[#allocation2 + $0x8] sm:$0xff] %v3700
    %3710 = vst [vmem:[#allocation2 + $0x10] sm:$0x3] %v3705
    // Predicated region
    $region34: #{tpu_custom_call.1} parent=1 // pred_check
      _
    $region35: #{tpu_custom_call.1} parent=1 // pred_check_branch
      %3712 = sbr.rel (0) target = $region37
    $region36: #{tpu_custom_call.1} parent=1 // pred_region
      %s3714 = ssub.s32 384, 384
      %3715 = vsyncadd [#allocation3], %s3714
      %s3716 = sshll.u32 [#allocation2], 4
      %s3717 = int_to_ptr.vmem [resolvable:$true] %s3716
      %3722 = dma.vmem_to_hbm [thread:$0]  %s3717, 384, %s8, [#allocation3], 128, 128, 8
    $region37: #{tpu_custom_call.1} parent=1 // pred_fallthru
      _
    // Predicated region
    $region38: #{tpu_custom_call.1} parent=1 // pred_check
      _
    $region39: #{tpu_custom_call.1} parent=1 // pred_check_branch
      %3724 = sbr.rel (0) target = $region41
    $region40: #{tpu_custom_call.1} parent=1 // pred_region
      %3725 = dma.done [#allocation3], 384
    $region41: #{tpu_custom_call.1} parent=1 // pred_fallthru
      _
    %3726 = vsyncpa [#allocation3], 1

</llo_original>
